<compile_context>
chip_gen: v7x
topology: tpu7x:2x2x1
jax: 0.10.0
libtpu: 0.0.40
codegen_flags: <defaults>
</compile_context>

<pallas_src>
import functools

import jax
import jax.numpy as jnp
import numpy as np
from jax.experimental import pallas as pl
from jax.experimental.pallas import tpu as pltpu


# ------------------------------ small helpers --------------------------------

def _round_up(x, m):
    return (x + m - 1) // m * m


def _pick_row_tile(n):
    for cand in (512, 256, 128, 64, 32, 16, 8):
        if n % cand == 0:
            return cand
    return n                       # full block (always legal)


def _pick_time_chunk(t):
    for cand in (32, 16, 8):
        if t % cand == 0:
            return cand
    return t                       # full block (always legal)


def _pad_gate_weight(w, H, Hp):
    """(4H, K) PyTorch-layout gate weight -> (K, 4Hp) transposed, each gate block
    padded from H to Hp columns with zeros (gate order i, f, g, o preserved)."""
    K = w.shape[1]
    w4 = w.reshape(4, H, K)
    w4p = jnp.zeros((4, Hp, K), w.dtype).at[:, :H, :].set(w4)
    return jnp.transpose(w4p.reshape(4 * Hp, K))


def _pad_gate_bias(b, H, Hp):
    b4 = b.reshape(4, H)
    return jnp.zeros((4, Hp), b.dtype).at[:, :H].set(b4).reshape(4 * Hp)


def _pad_rows(w, rows_padded):
    return jnp.zeros((rows_padded,) + w.shape[1:], w.dtype).at[: w.shape[0]].set(w)


# -------------------------- matmul + bias kernel ------------------------------
# Used for (a) the all-timestep input->gate precompute and (b) the output Linear.

def _matmul_bias_kernel(x_ref, w_ref, b_ref, o_ref):
    o_ref[...] = (
        jnp.dot(x_ref[...], w_ref[...], preferred_element_type=jnp.float32)
        + b_ref[...]
    )


def matmul_bias(x2d, w, b):
    """(N, K) @ (K, M) + b -> (N, M) f32.  x/w are bf16, bias & accumulation f32."""
    N, K = x2d.shape
    M = w.shape[1]
    tn = _pick_row_tile(N)
    return pl.pallas_call(
        _matmul_bias_kernel,
        out_shape=jax.ShapeDtypeStruct((N, M), jnp.float32),
        grid_spec=pltpu.PrefetchScalarGridSpec(
            num_scalar_prefetch=0,
            grid=(N // tn,),
            in_specs=[
                pl.BlockSpec((tn, K), lambda i: (i, 0)),
                pl.BlockSpec((K, M), lambda i: (0, 0)),
                pl.BlockSpec((1, M), lambda i: (0, 0)),
            ],
            out_specs=pl.BlockSpec((tn, M), lambda i: (i, 0)),
        ),
        compiler_params=pltpu.CompilerParams(
            # Row tiles are independent -> shards across megacore / v7x's 2 TCs.
            dimension_semantics=("parallel",),
        ),
    )(x2d, w, b.reshape(1, M))


# --------------------------- LSTM recurrence kernel ---------------------------

def _lstm_recurrence_kernel(gates_ref, whh_ref, out_ref, h_sc, c_sc):
    # gates_ref: (B, Tc*4Hp) f32   precomputed x_t @ W_ih^T + b for this chunk
    # whh_ref:   (Hp, 4Hp)   bf16  hidden->gate weights (transposed, gate-padded)
    # out_ref:   (B, Tc*Hp)  f32   h_t for every step of the chunk
    # h_sc/c_sc: (B, Hp)     f32   recurrent state, persists across grid steps
    @pl.when(pl.program_id(0) == 0)
    def _():
        h_sc[...] = jnp.zeros_like(h_sc)
        c_sc[...] = jnp.zeros_like(c_sc)

    hp = h_sc.shape[1]
    g4 = 4 * hp
    tc = out_ref.shape[1] // hp

    h = h_sc[...]
    c = c_sc[...]
    # Static unroll over the chunk: every slice below is static and 128-lane
    # aligned (zero-cost views, unmasked stores).  The W_hh read stays inside
    # the loop so vreg live ranges stay bounded.
    for s in range(tc):
        g = gates_ref[:, s * g4:(s + 1) * g4] + jnp.dot(
            h.astype(whh_ref.dtype), whh_ref[...],
            preferred_element_type=jnp.float32)
        i_g = jax.nn.sigmoid(g[:, 0 * hp:1 * hp])
        f_g = jax.nn.sigmoid(g[:, 1 * hp:2 * hp])
        g_g = jnp.tanh(g[:, 2 * hp:3 * hp])
        o_g = jax.nn.sigmoid(g[:, 3 * hp:4 * hp])
        c = f_g * c + i_g * g_g
        h = o_g * jnp.tanh(c)
        out_ref[:, s * hp:(s + 1) * hp] = h
    h_sc[...] = h
    c_sc[...] = c


def lstm_recurrence(gates_flat, whh_t, hidden_padded, time_chunk):
    """gates_flat: (B, T*4Hp) f32, whh_t: (Hp, 4Hp) bf16 -> (B, T*Hp) f32."""
    B, TG = gates_flat.shape
    g4 = 4 * hidden_padded
    T = TG // g4
    assert T % time_chunk == 0, (T, time_chunk)
    return pl.pallas_call(
        _lstm_recurrence_kernel,
        out_shape=jax.ShapeDtypeStruct((B, T * hidden_padded), jnp.float32),
        grid_spec=pltpu.PrefetchScalarGridSpec(
            num_scalar_prefetch=0,
            grid=(T // time_chunk,),
            in_specs=[
                pl.BlockSpec((B, time_chunk * g4), lambda t: (0, t)),
                pl.BlockSpec((hidden_padded, g4), lambda t: (0, 0)),
            ],
            out_specs=pl.BlockSpec((B, time_chunk * hidden_padded),
                                   lambda t: (0, t)),
            scratch_shapes=[
                pltpu.VMEM((B, hidden_padded), jnp.float32),
                pltpu.VMEM((B, hidden_padded), jnp.float32),
            ],
        ),
        compiler_params=pltpu.CompilerParams(
            dimension_semantics=("arbitrary",),   # sequential recurrence over time
        ),
    )(gates_flat, whh_t)


# --------------------------- Module-level wrapper -----------------------------

def init_lstm_network_params(key, input_dim, hidden_dims, output_dim):
    """Deterministic init matching PyTorch shapes (uniform +/- 1/sqrt(H))."""
    H = hidden_dims[0]
    num_layers = len(hidden_dims)
    bound = 1.0 / np.sqrt(H)
    layers = []
    for l in range(num_layers):
        D = input_dim if l == 0 else H
        key, k1, k2, k3, k4 = jax.random.split(key, 5)
        layers.append(dict(
            w_ih=jax.random.uniform(k1, (4 * H, D), jnp.float32, -bound, bound),
            w_hh=jax.random.uniform(k2, (4 * H, H), jnp.float32, -bound, bound),
            b_ih=jax.random.uniform(k3, (4 * H,), jnp.float32, -bound, bound),
            b_hh=jax.random.uniform(k4, (4 * H,), jnp.float32, -bound, bound),
        ))
    key, k5, k6 = jax.random.split(key, 3)
    fc_w = jax.random.uniform(k5, (output_dim, H), jnp.float32, -bound, bound)
    fc_b = jax.random.uniform(k6, (output_dim,), jnp.float32, -bound, bound)
    return dict(lstm=layers, fc_w=fc_w, fc_b=fc_b)


def lstm_network_forward(x, params, time_chunk=None):
    """x: (B, T, input_dim) -> (B, T, output_dim).  All hot-path math in Pallas."""
    B, T, _ = x.shape
    H = params["lstm"][0]["w_hh"].shape[1]
    Hp = _round_up(H, 128)
    O = params["fc_w"].shape[0]
    Op = _round_up(O, 128)
    tc = time_chunk if time_chunk is not None else _pick_time_chunk(T)

    # Activations kept as flat batch-major rows; every reshape below is free.
    h_rows = x.reshape(B * T, -1).astype(jnp.float32)          # (B*T, K)
    for layer in params["lstm"]:
        K = h_rows.shape[1]
        # One-time weight packing (transpose + lane-pad gate blocks); in real
        # use this would be done once outside the forward pass.
        wih_t = _pad_gate_weight(layer["w_ih"], H, Hp)         # (K_raw, 4Hp)
        if wih_t.shape[0] != K:                                # layers > 0: H -> Hp rows
            wih_t = _pad_rows(wih_t, K)
        whh_t = _pad_rows(_pad_gate_weight(layer["w_hh"], H, Hp), Hp)   # (Hp, 4Hp)
        bias = _pad_gate_bias(layer["b_ih"] + layer["b_hh"], H, Hp)     # (4Hp,) f32

        # (1) all-timestep input->gate matmul on the MXU (bf16 in, f32 acc).
        gates = matmul_bias(h_rows.astype(jnp.bfloat16),
                            wih_t.astype(jnp.bfloat16), bias)  # (B*T, 4Hp) f32
        # (2) sequential recurrence, time-chunked; only h @ W_hh inside the loop.
        h_flat = lstm_recurrence(gates.reshape(B, T * 4 * Hp),
                                 whh_t.astype(jnp.bfloat16), Hp, tc)    # (B, T*Hp)
        h_rows = h_flat.reshape(B * T, Hp)

    # Output Linear, padded to a lane-dense (., Op) store; real columns sliced after.
    fc_w_t = jnp.zeros((Hp, Op), jnp.float32).at[:H, :O].set(
        jnp.transpose(params["fc_w"]))
    fc_b = jnp.zeros((Op,), jnp.float32).at[:O].set(params["fc_b"])
    out = matmul_bias(h_rows.astype(jnp.bfloat16), fc_w_t.astype(jnp.bfloat16), fc_b)
    return out.reshape(B, T, Op)[:, :, :O]


# --------------------------- Pure-JAX references -------------------------------

def _lstm_network_ref(x, params, cast_matmul_inputs):
    """Pure-JAX reference.  cast_matmul_inputs=True mirrors the kernel's
    bf16-input / f32-accumulate matmul numerics; False is plain f32."""
    def mm(a, b):
        if cast_matmul_inputs:
            a = a.astype(jnp.bfloat16)
            b = b.astype(jnp.bfloat16)
        return jnp.dot(a, b, preferred_element_type=jnp.float32)

    h = x.astype(jnp.float32)
    for layer in params["lstm"]:
        B, T, D = h.shape
        Hh = layer["w_hh"].shape[1]
        bias = (layer["b_ih"] + layer["b_hh"]).astype(jnp.float32)
        gates_x = mm(h.reshape(B * T, D), layer["w_ih"].T).reshape(B, T, 4 * Hh) + bias

        def step(carry, gx, whh=layer["w_hh"]):
            hp, cp = carry
            g = gx + mm(hp, whh.T)
            i, f, gg, o = jnp.split(g, 4, axis=-1)
            i, f, o = jax.nn.sigmoid(i), jax.nn.sigmoid(f), jax.nn.sigmoid(o)
            gg = jnp.tanh(gg)
            c = f * cp + i * gg
            hn = o * jnp.tanh(c)
            return (hn, c), hn

        init = (jnp.zeros((B, Hh), jnp.float32), jnp.zeros((B, Hh), jnp.float32))
        _, hs = jax.lax.scan(step, init, jnp.swapaxes(gates_x, 0, 1))
        h = jnp.swapaxes(hs, 0, 1)

    B, T, Hh = h.shape
    out = mm(h.reshape(B * T, Hh), params["fc_w"].T) + params["fc_b"]
    return out.reshape(B, T, -1)


# ----------------------------------- Main -------------------------------------

if __name__ == "__main__":
    B, T = 2, 16
    input_dim, hidden_dims, output_dim = 16, [32, 32], 8

    key = jax.random.PRNGKey(0)
    key_p, key_x = jax.random.split(key)
    params = init_lstm_network_params(key_p, input_dim, hidden_dims, output_dim)
    x = jax.random.normal(key_x, (B, T, input_dim), jnp.float32)

    fwd = jax.jit(functools.partial(lstm_network_forward, time_chunk=8))
    out = jax.block_until_ready(fwd(x, params))
    assert out.shape == (B, T, output_dim), out.shape

    # Numerics-matched reference (same bf16-input / f32-accumulate matmuls).
    ref_matched = _lstm_network_ref(x, params, cast_matmul_inputs=True)
    np.testing.assert_allclose(np.asarray(out), np.asarray(ref_matched),
                               rtol=1e-3, atol=1e-3)
    # Loose sanity check against the plain f32 PyTorch-semantics forward.
    ref_f32 = _lstm_network_ref(x, params, cast_matmul_inputs=False)
    np.testing.assert_allclose(np.asarray(out), np.asarray(ref_f32),
                               rtol=1e-1, atol=1e-1)

    print("KERNEL_OK")
</pallas_src>

<mosaic_0001>
module attributes {stable_mosaic.version = 11 : i64} {
  func.func @_matmul_bias_kernel(%arg0: i32, %arg1: memref<32x16xbf16, #tpu.memory_space<vmem>>, %arg2: memref<16x512xbf16, #tpu.memory_space<vmem>>, %arg3: memref<1x512xf32, #tpu.memory_space<vmem>>, %arg4: memref<32x512xf32, #tpu.memory_space<vmem>>) attributes {dimension_semantics = [#tpu.dimension_semantics<parallel>], iteration_bounds = array<i64: 1>, scalar_prefetch = 0 : i64, scratch_operands = 0 : i64, tpu.core_type = #tpu.core_type<tc>, window_params = [{transform_indices = @transform_0, window_bounds = array<i64: 32, 16>}, {pipeline_mode = #tpu.pipeline_mode<synchronous>, transform_indices = @transform_1, window_bounds = array<i64: 16, 512>}, {pipeline_mode = #tpu.pipeline_mode<synchronous>, transform_indices = @transform_2, window_bounds = array<i64: 1, 512>}, {transform_indices = @transform_3, window_bounds = array<i64: 32, 512>}]} {
    %c0 = arith.constant 0 : index
    %c0_0 = arith.constant 0 : index
    %0 = vector.load %arg1[%c0, %c0_0] : memref<32x16xbf16, #tpu.memory_space<vmem>>, vector<32x16xbf16>
    %c0_1 = arith.constant 0 : index
    %c0_2 = arith.constant 0 : index
    %1 = vector.load %arg2[%c0_1, %c0_2] : memref<16x512xbf16, #tpu.memory_space<vmem>>, vector<16x512xbf16>
    %cst = arith.constant dense<0.000000e+00> : vector<32x512xf32>
    %2 = tpu.matmul %0, %1, %cst {dimension_numbers = #tpu.dot_dimension_numbers<[1], [0], [0], [1], [0, 0, 1, 1], [], []>} : vector<32x16xbf16>, vector<16x512xbf16>, vector<32x512xf32> -> vector<32x512xf32>
    %c0_3 = arith.constant 0 : index
    %c0_4 = arith.constant 0 : index
    %3 = vector.load %arg3[%c0_3, %c0_4] : memref<1x512xf32, #tpu.memory_space<vmem>>, vector<1x512xf32>
    %4 = vector.broadcast %3 : vector<1x512xf32> to vector<32x512xf32>
    %5 = arith.addf %2, %4 : vector<32x512xf32>
    %c0_5 = arith.constant 0 : index
    %c0_6 = arith.constant 0 : index
    %6 = vector.load %arg4[%c0_5, %c0_6] : memref<32x512xf32, #tpu.memory_space<vmem>>, vector<32x512xf32>
    tpu.vector_store %arg4[%c0_5, %c0_6], %5 {strides = array<i32>} : memref<32x512xf32, #tpu.memory_space<vmem>>, vector<32x512xf32>,
    return
  }
  func.func @transform_0(%arg0: i32) -> (i32, i32) {
    %c0_i32 = arith.constant 0 : i32
    %c0_i32_0 = arith.constant 0 : i32
    return %arg0, %c0_i32 : i32, i32
  }
  func.func @transform_1(%arg0: i32) -> (i32, i32) {
    %c0_i32 = arith.constant 0 : i32
    %c0_i32_0 = arith.constant 0 : i32
    %c0_i32_1 = arith.constant 0 : i32
    return %c0_i32, %c0_i32_0 : i32, i32
  }
  func.func @transform_2(%arg0: i32) -> (i32, i32) {
    %c0_i32 = arith.constant 0 : i32
    %c0_i32_0 = arith.constant 0 : i32
    %c0_i32_1 = arith.constant 0 : i32
    return %c0_i32, %c0_i32_0 : i32, i32
  }
  func.func @transform_3(%arg0: i32) -> (i32, i32) {
    %c0_i32 = arith.constant 0 : i32
    %c0_i32_0 = arith.constant 0 : i32
    return %arg0, %c0_i32 : i32, i32
  }
}

module attributes {stable_mosaic.version = 11 : i64} {
  func.func @_matmul_bias_kernel(%arg0: i32, %arg1: memref<32x128xbf16, #tpu.memory_space<vmem>>, %arg2: memref<128x512xbf16, #tpu.memory_space<vmem>>, %arg3: memref<1x512xf32, #tpu.memory_space<vmem>>, %arg4: memref<32x512xf32, #tpu.memory_space<vmem>>) attributes {dimension_semantics = [#tpu.dimension_semantics<parallel>], iteration_bounds = array<i64: 1>, scalar_prefetch = 0 : i64, scratch_operands = 0 : i64, tpu.core_type = #tpu.core_type<tc>, window_params = [{transform_indices = @transform_0, window_bounds = array<i64: 32, 128>}, {pipeline_mode = #tpu.pipeline_mode<synchronous>, transform_indices = @transform_1, window_bounds = array<i64: 128, 512>}, {pipeline_mode = #tpu.pipeline_mode<synchronous>, transform_indices = @transform_2, window_bounds = array<i64: 1, 512>}, {transform_indices = @transform_3, window_bounds = array<i64: 32, 512>}]} {
    %c0 = arith.constant 0 : index
    %c0_0 = arith.constant 0 : index
    %0 = vector.load %arg1[%c0, %c0_0] : memref<32x128xbf16, #tpu.memory_space<vmem>>, vector<32x128xbf16>
    %c0_1 = arith.constant 0 : index
    %c0_2 = arith.constant 0 : index
    %1 = vector.load %arg2[%c0_1, %c0_2] : memref<128x512xbf16, #tpu.memory_space<vmem>>, vector<128x512xbf16>
    %cst = arith.constant dense<0.000000e+00> : vector<32x512xf32>
    %2 = tpu.matmul %0, %1, %cst {dimension_numbers = #tpu.dot_dimension_numbers<[1], [0], [0], [1], [0, 0, 1, 1], [], []>} : vector<32x128xbf16>, vector<128x512xbf16>, vector<32x512xf32> -> vector<32x512xf32>
    %c0_3 = arith.constant 0 : index
    %c0_4 = arith.constant 0 : index
    %3 = vector.load %arg3[%c0_3, %c0_4] : memref<1x512xf32, #tpu.memory_space<vmem>>, vector<1x512xf32>
    %4 = vector.broadcast %3 : vector<1x512xf32> to vector<32x512xf32>
    %5 = arith.addf %2, %4 : vector<32x512xf32>
    %c0_5 = arith.constant 0 : index
    %c0_6 = arith.constant 0 : index
    %6 = vector.load %arg4[%c0_5, %c0_6] : memref<32x512xf32, #tpu.memory_space<vmem>>, vector<32x512xf32>
    tpu.vector_store %arg4[%c0_5, %c0_6], %5 {strides = array<i32>} : memref<32x512xf32, #tpu.memory_space<vmem>>, vector<32x512xf32>,
    return
  }
  func.func @transform_0(%arg0: i32) -> (i32, i32) {
    %c0_i32 = arith.constant 0 : i32
    %c0_i32_0 = arith.constant 0 : i32
    return %arg0, %c0_i32 : i32, i32
  }
  func.func @transform_1(%arg0: i32) -> (i32, i32) {
    %c0_i32 = arith.constant 0 : i32
    %c0_i32_0 = arith.constant 0 : i32
    %c0_i32_1 = arith.constant 0 : i32
    return %c0_i32, %c0_i32_0 : i32, i32
  }
  func.func @transform_2(%arg0: i32) -> (i32, i32) {
    %c0_i32 = arith.constant 0 : i32
    %c0_i32_0 = arith.constant 0 : i32
    %c0_i32_1 = arith.constant 0 : i32
    return %c0_i32, %c0_i32_0 : i32, i32
  }
  func.func @transform_3(%arg0: i32) -> (i32, i32) {
    %c0_i32 = arith.constant 0 : i32
    %c0_i32_0 = arith.constant 0 : i32
    return %arg0, %c0_i32 : i32, i32
  }
}

module attributes {stable_mosaic.version = 11 : i64} {
  func.func @_lstm_recurrence_kernel(%arg0: i32, %arg1: memref<2x4096xf32, #tpu.memory_space<vmem>>, %arg2: memref<128x512xbf16, #tpu.memory_space<vmem>>, %arg3: memref<2x1024xf32, #tpu.memory_space<vmem>>, %arg4: memref<2x128xf32, #tpu.memory_space<vmem>>, %arg5: memref<2x128xf32, #tpu.memory_space<vmem>>) attributes {dimension_semantics = [#tpu.dimension_semantics<arbitrary>], iteration_bounds = array<i64: 2>, scalar_prefetch = 0 : i64, scratch_operands = 2 : i64, tpu.core_type = #tpu.core_type<tc>, window_params = [{transform_indices = @transform_0, window_bounds = array<i64: 2, 4096>}, {pipeline_mode = #tpu.pipeline_mode<synchronous>, transform_indices = @transform_1, window_bounds = array<i64: 128, 512>}, {transform_indices = @transform_2, window_bounds = array<i64: 2, 1024>}]} {
    %c0_i32 = arith.constant 0 : i32
    %0 = arith.cmpi eq, %arg0, %c0_i32 : i32
    %1 = arith.extui %0 : i1 to i32
    %c0_i32_0 = arith.constant 0 : i32
    %2 = arith.cmpi ne, %1, %c0_i32_0 : i32
    scf.if %2 {
      %cst_74 = arith.constant 0.000000e+00 : f32
      %255 = vector.broadcast %cst_74 : f32 to vector<2x128xf32>
      %c0_75 = arith.constant 0 : index
      %c0_76 = arith.constant 0 : index
      %256 = vector.load %arg4[%c0_75, %c0_76] : memref<2x128xf32, #tpu.memory_space<vmem>>, vector<2x128xf32>
      tpu.vector_store %arg4[%c0_75, %c0_76], %255 {strides = array<i32>} : memref<2x128xf32, #tpu.memory_space<vmem>>, vector<2x128xf32>,
      %cst_77 = arith.constant 0.000000e+00 : f32
      %257 = vector.broadcast %cst_77 : f32 to vector<2x128xf32>
      %c0_78 = arith.constant 0 : index
      %c0_79 = arith.constant 0 : index
      %258 = vector.load %arg5[%c0_78, %c0_79] : memref<2x128xf32, #tpu.memory_space<vmem>>, vector<2x128xf32>
      tpu.vector_store %arg5[%c0_78, %c0_79], %257 {strides = array<i32>} : memref<2x128xf32, #tpu.memory_space<vmem>>, vector<2x128xf32>,
    } else {
    }
    %c0 = arith.constant 0 : index
    %c0_1 = arith.constant 0 : index
    %3 = vector.load %arg4[%c0, %c0_1] : memref<2x128xf32, #tpu.memory_space<vmem>>, vector<2x128xf32>
    %c0_2 = arith.constant 0 : index
    %c0_3 = arith.constant 0 : index
    %4 = vector.load %arg5[%c0_2, %c0_3] : memref<2x128xf32, #tpu.memory_space<vmem>>, vector<2x128xf32>
    %c0_4 = arith.constant 0 : index
    %c0_5 = arith.constant 0 : index
    %5 = vector.load %arg1[%c0_4, %c0_5] : memref<2x4096xf32, #tpu.memory_space<vmem>>, vector<2x512xf32>
    %6 = arith.truncf %3 : vector<2x128xf32> to vector<2x128xbf16>
    %c0_6 = arith.constant 0 : index
    %c0_7 = arith.constant 0 : index
    %7 = vector.load %arg2[%c0_6, %c0_7] : memref<128x512xbf16, #tpu.memory_space<vmem>>, vector<128x512xbf16>
    %cst = arith.constant dense<0.000000e+00> : vector<2x512xf32>
    %8 = tpu.matmul %6, %7, %cst {dimension_numbers = #tpu.dot_dimension_numbers<[1], [0], [0], [1], [0, 0, 1, 1], [], []>} : vector<2x128xbf16>, vector<128x512xbf16>, vector<2x512xf32> -> vector<2x512xf32>
    %9 = arith.addf %5, %8 : vector<2x512xf32>
    %10 = vector.extract_strided_slice %9 {offsets = [0, 0], sizes = [2, 128], strides = [1, 1]} : vector<2x512xf32> to vector<2x128xf32>
    %11 = arith.negf %10 : vector<2x128xf32>
    %12 = math.exp %11 : vector<2x128xf32>
    %cst_8 = arith.constant 1.000000e+00 : f32
    %13 = vector.broadcast %cst_8 : f32 to vector<2x128xf32>
    %14 = arith.addf %13, %12 : vector<2x128xf32>
    %15 = arith.divf %13, %14 : vector<2x128xf32>
    %16 = vector.extract_strided_slice %9 {offsets = [0, 128], sizes = [2, 128], strides = [1, 1]} : vector<2x512xf32> to vector<2x128xf32>
    %17 = arith.negf %16 : vector<2x128xf32>
    %18 = math.exp %17 : vector<2x128xf32>
    %cst_9 = arith.constant 1.000000e+00 : f32
    %19 = vector.broadcast %cst_9 : f32 to vector<2x128xf32>
    %20 = arith.addf %19, %18 : vector<2x128xf32>
    %21 = arith.divf %19, %20 : vector<2x128xf32>
    %22 = vector.extract_strided_slice %9 {offsets = [0, 256], sizes = [2, 128], strides = [1, 1]} : vector<2x512xf32> to vector<2x128xf32>
    %23 = math.tanh %22 : vector<2x128xf32>
    %24 = vector.extract_strided_slice %9 {offsets = [0, 384], sizes = [2, 128], strides = [1, 1]} : vector<2x512xf32> to vector<2x128xf32>
    %25 = arith.negf %24 : vector<2x128xf32>
    %26 = math.exp %25 : vector<2x128xf32>
    %cst_10 = arith.constant 1.000000e+00 : f32
    %27 = vector.broadcast %cst_10 : f32 to vector<2x128xf32>
    %28 = arith.addf %27, %26 : vector<2x128xf32>
    %29 = arith.divf %27, %28 : vector<2x128xf32>
    %30 = arith.mulf %21, %4 : vector<2x128xf32>
    %31 = arith.mulf %15, %23 : vector<2x128xf32>
    %32 = arith.addf %30, %31 : vector<2x128xf32>
    %33 = math.tanh %32 : vector<2x128xf32>
    %34 = arith.mulf %29, %33 : vector<2x128xf32>
    %c0_11 = arith.constant 0 : index
    %c0_12 = arith.constant 0 : index
    %35 = vector.load %arg3[%c0_11, %c0_12] : memref<2x1024xf32, #tpu.memory_space<vmem>>, vector<2x128xf32>
    tpu.vector_store %arg3[%c0_11, %c0_12], %34 {strides = array<i32>} : memref<2x1024xf32, #tpu.memory_space<vmem>>, vector<2x128xf32>,
    %c0_13 = arith.constant 0 : index
    %c512 = arith.constant 512 : index
    %36 = vector.load %arg1[%c0_13, %c512] : memref<2x4096xf32, #tpu.memory_space<vmem>>, vector<2x512xf32>
    %37 = arith.truncf %34 : vector<2x128xf32> to vector<2x128xbf16>
    %c0_14 = arith.constant 0 : index
    %c0_15 = arith.constant 0 : index
    %38 = vector.load %arg2[%c0_14, %c0_15] : memref<128x512xbf16, #tpu.memory_space<vmem>>, vector<128x512xbf16>
    %cst_16 = arith.constant dense<0.000000e+00> : vector<2x512xf32>
    %39 = tpu.matmul %37, %38, %cst_16 {dimension_numbers = #tpu.dot_dimension_numbers<[1], [0], [0], [1], [0, 0, 1, 1], [], []>} : vector<2x128xbf16>, vector<128x512xbf16>, vector<2x512xf32> -> vector<2x512xf32>
    %40 = arith.addf %36, %39 : vector<2x512xf32>
    %41 = vector.extract_strided_slice %40 {offsets = [0, 0], sizes = [2, 128], strides = [1, 1]} : vector<2x512xf32> to vector<2x128xf32>
    %42 = arith.negf %41 : vector<2x128xf32>
    %43 = math.exp %42 : vector<2x128xf32>
    %cst_17 = arith.constant 1.000000e+00 : f32
    %44 = vector.broadcast %cst_17 : f32 to vector<2x128xf32>
    %45 = arith.addf %44, %43 : vector<2x128xf32>
    %46 = arith.divf %44, %45 : vector<2x128xf32>
    %47 = vector.extract_strided_slice %40 {offsets = [0, 128], sizes = [2, 128], strides = [1, 1]} : vector<2x512xf32> to vector<2x128xf32>
    %48 = arith.negf %47 : vector<2x128xf32>
    %49 = math.exp %48 : vector<2x128xf32>
    %cst_18 = arith.constant 1.000000e+00 : f32
    %50 = vector.broadcast %cst_18 : f32 to vector<2x128xf32>
    %51 = arith.addf %50, %49 : vector<2x128xf32>
    %52 = arith.divf %50, %51 : vector<2x128xf32>
    %53 = vector.extract_strided_slice %40 {offsets = [0, 256], sizes = [2, 128], strides = [1, 1]} : vector<2x512xf32> to vector<2x128xf32>
    %54 = math.tanh %53 : vector<2x128xf32>
    %55 = vector.extract_strided_slice %40 {offsets = [0, 384], sizes = [2, 128], strides = [1, 1]} : vector<2x512xf32> to vector<2x128xf32>
    %56 = arith.negf %55 : vector<2x128xf32>
    %57 = math.exp %56 : vector<2x128xf32>
    %cst_19 = arith.constant 1.000000e+00 : f32
    %58 = vector.broadcast %cst_19 : f32 to vector<2x128xf32>
    %59 = arith.addf %58, %57 : vector<2x128xf32>
    %60 = arith.divf %58, %59 : vector<2x128xf32>
    %61 = arith.mulf %52, %32 : vector<2x128xf32>
    %62 = arith.mulf %46, %54 : vector<2x128xf32>
    %63 = arith.addf %61, %62 : vector<2x128xf32>
    %64 = math.tanh %63 : vector<2x128xf32>
    %65 = arith.mulf %60, %64 : vector<2x128xf32>
    %c0_20 = arith.constant 0 : index
    %c128 = arith.constant 128 : index
    %66 = vector.load %arg3[%c0_20, %c128] : memref<2x1024xf32, #tpu.memory_space<vmem>>, vector<2x128xf32>
    tpu.vector_store %arg3[%c0_20, %c128], %65 {strides = array<i32>} : memref<2x1024xf32, #tpu.memory_space<vmem>>, vector<2x128xf32>,
    %c0_21 = arith.constant 0 : index
    %c1024 = arith.constant 1024 : index
    %67 = vector.load %arg1[%c0_21, %c1024] : memref<2x4096xf32, #tpu.memory_space<vmem>>, vector<2x512xf32>
    %68 = arith.truncf %65 : vector<2x128xf32> to vector<2x128xbf16>
    %c0_22 = arith.constant 0 : index
    %c0_23 = arith.constant 0 : index
    %69 = vector.load %arg2[%c0_22, %c0_23] : memref<128x512xbf16, #tpu.memory_space<vmem>>, vector<128x512xbf16>
    %cst_24 = arith.constant dense<0.000000e+00> : vector<2x512xf32>
    %70 = tpu.matmul %68, %69, %cst_24 {dimension_numbers = #tpu.dot_dimension_numbers<[1], [0], [0], [1], [0, 0, 1, 1], [], []>} : vector<2x128xbf16>, vector<128x512xbf16>, vector<2x512xf32> -> vector<2x512xf32>
    %71 = arith.addf %67, %70 : vector<2x512xf32>
    %72 = vector.extract_strided_slice %71 {offsets = [0, 0], sizes = [2, 128], strides = [1, 1]} : vector<2x512xf32> to vector<2x128xf32>
    %73 = arith.negf %72 : vector<2x128xf32>
    %74 = math.exp %73 : vector<2x128xf32>
    %cst_25 = arith.constant 1.000000e+00 : f32
    %75 = vector.broadcast %cst_25 : f32 to vector<2x128xf32>
    %76 = arith.addf %75, %74 : vector<2x128xf32>
    %77 = arith.divf %75, %76 : vector<2x128xf32>
    %78 = vector.extract_strided_slice %71 {offsets = [0, 128], sizes = [2, 128], strides = [1, 1]} : vector<2x512xf32> to vector<2x128xf32>
    %79 = arith.negf %78 : vector<2x128xf32>
    %80 = math.exp %79 : vector<2x128xf32>
    %cst_26 = arith.constant 1.000000e+00 : f32
    %81 = vector.broadcast %cst_26 : f32 to vector<2x128xf32>
    %82 = arith.addf %81, %80 : vector<2x128xf32>
    %83 = arith.divf %81, %82 : vector<2x128xf32>
    %84 = vector.extract_strided_slice %71 {offsets = [0, 256], sizes = [2, 128], strides = [1, 1]} : vector<2x512xf32> to vector<2x128xf32>
    %85 = math.tanh %84 : vector<2x128xf32>
    %86 = vector.extract_strided_slice %71 {offsets = [0, 384], sizes = [2, 128], strides = [1, 1]} : vector<2x512xf32> to vector<2x128xf32>
    %87 = arith.negf %86 : vector<2x128xf32>
    %88 = math.exp %87 : vector<2x128xf32>
    %cst_27 = arith.constant 1.000000e+00 : f32
    %89 = vector.broadcast %cst_27 : f32 to vector<2x128xf32>
    %90 = arith.addf %89, %88 : vector<2x128xf32>
    %91 = arith.divf %89, %90 : vector<2x128xf32>
    %92 = arith.mulf %83, %63 : vector<2x128xf32>
    %93 = arith.mulf %77, %85 : vector<2x128xf32>
    %94 = arith.addf %92, %93 : vector<2x128xf32>
    %95 = math.tanh %94 : vector<2x128xf32>
    %96 = arith.mulf %91, %95 : vector<2x128xf32>
    %c0_28 = arith.constant 0 : index
    %c256 = arith.constant 256 : index
    %97 = vector.load %arg3[%c0_28, %c256] : memref<2x1024xf32, #tpu.memory_space<vmem>>, vector<2x128xf32>
    tpu.vector_store %arg3[%c0_28, %c256], %96 {strides = array<i32>} : memref<2x1024xf32, #tpu.memory_space<vmem>>, vector<2x128xf32>,
    %c0_29 = arith.constant 0 : index
    %c1536 = arith.constant 1536 : index
    %98 = vector.load %arg1[%c0_29, %c1536] : memref<2x4096xf32, #tpu.memory_space<vmem>>, vector<2x512xf32>
    %99 = arith.truncf %96 : vector<2x128xf32> to vector<2x128xbf16>
    %c0_30 = arith.constant 0 : index
    %c0_31 = arith.constant 0 : index
    %100 = vector.load %arg2[%c0_30, %c0_31] : memref<128x512xbf16, #tpu.memory_space<vmem>>, vector<128x512xbf16>
    %cst_32 = arith.constant dense<0.000000e+00> : vector<2x512xf32>
    %101 = tpu.matmul %99, %100, %cst_32 {dimension_numbers = #tpu.dot_dimension_numbers<[1], [0], [0], [1], [0, 0, 1, 1], [], []>} : vector<2x128xbf16>, vector<128x512xbf16>, vector<2x512xf32> -> vector<2x512xf32>
    %102 = arith.addf %98, %101 : vector<2x512xf32>
    %103 = vector.extract_strided_slice %102 {offsets = [0, 0], sizes = [2, 128], strides = [1, 1]} : vector<2x512xf32> to vector<2x128xf32>
    %104 = arith.negf %103 : vector<2x128xf32>
    %105 = math.exp %104 : vector<2x128xf32>
    %cst_33 = arith.constant 1.000000e+00 : f32
    %106 = vector.broadcast %cst_33 : f32 to vector<2x128xf32>
    %107 = arith.addf %106, %105 : vector<2x128xf32>
    %108 = arith.divf %106, %107 : vector<2x128xf32>
    %109 = vector.extract_strided_slice %102 {offsets = [0, 128], sizes = [2, 128], strides = [1, 1]} : vector<2x512xf32> to vector<2x128xf32>
    %110 = arith.negf %109 : vector<2x128xf32>
    %111 = math.exp %110 : vector<2x128xf32>
    %cst_34 = arith.constant 1.000000e+00 : f32
    %112 = vector.broadcast %cst_34 : f32 to vector<2x128xf32>
    %113 = arith.addf %112, %111 : vector<2x128xf32>
    %114 = arith.divf %112, %113 : vector<2x128xf32>
    %115 = vector.extract_strided_slice %102 {offsets = [0, 256], sizes = [2, 128], strides = [1, 1]} : vector<2x512xf32> to vector<2x128xf32>
    %116 = math.tanh %115 : vector<2x128xf32>
    %117 = vector.extract_strided_slice %102 {offsets = [0, 384], sizes = [2, 128], strides = [1, 1]} : vector<2x512xf32> to vector<2x128xf32>
    %118 = arith.negf %117 : vector<2x128xf32>
    %119 = math.exp %118 : vector<2x128xf32>
    %cst_35 = arith.constant 1.000000e+00 : f32
    %120 = vector.broadcast %cst_35 : f32 to vector<2x128xf32>
    %121 = arith.addf %120, %119 : vector<2x128xf32>
    %122 = arith.divf %120, %121 : vector<2x128xf32>
    %123 = arith.mulf %114, %94 : vector<2x128xf32>
    %124 = arith.mulf %108, %116 : vector<2x128xf32>
    %125 = arith.addf %123, %124 : vector<2x128xf32>
    %126 = math.tanh %125 : vector<2x128xf32>
    %127 = arith.mulf %122, %126 : vector<2x128xf32>
    %c0_36 = arith.constant 0 : index
    %c384 = arith.constant 384 : index
    %128 = vector.load %arg3[%c0_36, %c384] : memref<2x1024xf32, #tpu.memory_space<vmem>>, vector<2x128xf32>
    tpu.vector_store %arg3[%c0_36, %c384], %127 {strides = array<i32>} : memref<2x1024xf32, #tpu.memory_space<vmem>>, vector<2x128xf32>,
    %c0_37 = arith.constant 0 : index
    %c2048 = arith.constant 2048 : index
    %129 = vector.load %arg1[%c0_37, %c2048] : memref<2x4096xf32, #tpu.memory_space<vmem>>, vector<2x512xf32>
    %130 = arith.truncf %127 : vector<2x128xf32> to vector<2x128xbf16>
    %c0_38 = arith.constant 0 : index
    %c0_39 = arith.constant 0 : index
    %131 = vector.load %arg2[%c0_38, %c0_39] : memref<128x512xbf16, #tpu.memory_space<vmem>>, vector<128x512xbf16>
    %cst_40 = arith.constant dense<0.000000e+00> : vector<2x512xf32>
    %132 = tpu.matmul %130, %131, %cst_40 {dimension_numbers = #tpu.dot_dimension_numbers<[1], [0], [0], [1], [0, 0, 1, 1], [], []>} : vector<2x128xbf16>, vector<128x512xbf16>, vector<2x512xf32> -> vector<2x512xf32>
    %133 = arith.addf %129, %132 : vector<2x512xf32>
    %134 = vector.extract_strided_slice %133 {offsets = [0, 0], sizes = [2, 128], strides = [1, 1]} : vector<2x512xf32> to vector<2x128xf32>
    %135 = arith.negf %134 : vector<2x128xf32>
    %136 = math.exp %135 : vector<2x128xf32>
    %cst_41 = arith.constant 1.000000e+00 : f32
    %137 = vector.broadcast %cst_41 : f32 to vector<2x128xf32>
    %138 = arith.addf %137, %136 : vector<2x128xf32>
    %139 = arith.divf %137, %138 : vector<2x128xf32>
    %140 = vector.extract_strided_slice %133 {offsets = [0, 128], sizes = [2, 128], strides = [1, 1]} : vector<2x512xf32> to vector<2x128xf32>
    %141 = arith.negf %140 : vector<2x128xf32>
    %142 = math.exp %141 : vector<2x128xf32>
    %cst_42 = arith.constant 1.000000e+00 : f32
    %143 = vector.broadcast %cst_42 : f32 to vector<2x128xf32>
    %144 = arith.addf %143, %142 : vector<2x128xf32>
    %145 = arith.divf %143, %144 : vector<2x128xf32>
    %146 = vector.extract_strided_slice %133 {offsets = [0, 256], sizes = [2, 128], strides = [1, 1]} : vector<2x512xf32> to vector<2x128xf32>
    %147 = math.tanh %146 : vector<2x128xf32>
    %148 = vector.extract_strided_slice %133 {offsets = [0, 384], sizes = [2, 128], strides = [1, 1]} : vector<2x512xf32> to vector<2x128xf32>
    %149 = arith.negf %148 : vector<2x128xf32>
    %150 = math.exp %149 : vector<2x128xf32>
    %cst_43 = arith.constant 1.000000e+00 : f32
    %151 = vector.broadcast %cst_43 : f32 to vector<2x128xf32>
    %152 = arith.addf %151, %150 : vector<2x128xf32>
    %153 = arith.divf %151, %152 : vector<2x128xf32>
    %154 = arith.mulf %145, %125 : vector<2x128xf32>
    %155 = arith.mulf %139, %147 : vector<2x128xf32>
    %156 = arith.addf %154, %155 : vector<2x128xf32>
    %157 = math.tanh %156 : vector<2x128xf32>
    %158 = arith.mulf %153, %157 : vector<2x128xf32>
    %c0_44 = arith.constant 0 : index
    %c512_45 = arith.constant 512 : index
    %159 = vector.load %arg3[%c0_44, %c512_45] : memref<2x1024xf32, #tpu.memory_space<vmem>>, vector<2x128xf32>
    tpu.vector_store %arg3[%c0_44, %c512_45], %158 {strides = array<i32>} : memref<2x1024xf32, #tpu.memory_space<vmem>>, vector<2x128xf32>,
    %c0_46 = arith.constant 0 : index
    %c2560 = arith.constant 2560 : index
    %160 = vector.load %arg1[%c0_46, %c2560] : memref<2x4096xf32, #tpu.memory_space<vmem>>, vector<2x512xf32>
    %161 = arith.truncf %158 : vector<2x128xf32> to vector<2x128xbf16>
    %c0_47 = arith.constant 0 : index
    %c0_48 = arith.constant 0 : index
    %162 = vector.load %arg2[%c0_47, %c0_48] : memref<128x512xbf16, #tpu.memory_space<vmem>>, vector<128x512xbf16>
    %cst_49 = arith.constant dense<0.000000e+00> : vector<2x512xf32>
    %163 = tpu.matmul %161, %162, %cst_49 {dimension_numbers = #tpu.dot_dimension_numbers<[1], [0], [0], [1], [0, 0, 1, 1], [], []>} : vector<2x128xbf16>, vector<128x512xbf16>, vector<2x512xf32> -> vector<2x512xf32>
    %164 = arith.addf %160, %163 : vector<2x512xf32>
    %165 = vector.extract_strided_slice %164 {offsets = [0, 0], sizes = [2, 128], strides = [1, 1]} : vector<2x512xf32> to vector<2x128xf32>
    %166 = arith.negf %165 : vector<2x128xf32>
    %167 = math.exp %166 : vector<2x128xf32>
    %cst_50 = arith.constant 1.000000e+00 : f32
    %168 = vector.broadcast %cst_50 : f32 to vector<2x128xf32>
    %169 = arith.addf %168, %167 : vector<2x128xf32>
    %170 = arith.divf %168, %169 : vector<2x128xf32>
    %171 = vector.extract_strided_slice %164 {offsets = [0, 128], sizes = [2, 128], strides = [1, 1]} : vector<2x512xf32> to vector<2x128xf32>
    %172 = arith.negf %171 : vector<2x128xf32>
    %173 = math.exp %172 : vector<2x128xf32>
    %cst_51 = arith.constant 1.000000e+00 : f32
    %174 = vector.broadcast %cst_51 : f32 to vector<2x128xf32>
    %175 = arith.addf %174, %173 : vector<2x128xf32>
    %176 = arith.divf %174, %175 : vector<2x128xf32>
    %177 = vector.extract_strided_slice %164 {offsets = [0, 256], sizes = [2, 128], strides = [1, 1]} : vector<2x512xf32> to vector<2x128xf32>
    %178 = math.tanh %177 : vector<2x128xf32>
    %179 = vector.extract_strided_slice %164 {offsets = [0, 384], sizes = [2, 128], strides = [1, 1]} : vector<2x512xf32> to vector<2x128xf32>
    %180 = arith.negf %179 : vector<2x128xf32>
    %181 = math.exp %180 : vector<2x128xf32>
    %cst_52 = arith.constant 1.000000e+00 : f32
    %182 = vector.broadcast %cst_52 : f32 to vector<2x128xf32>
    %183 = arith.addf %182, %181 : vector<2x128xf32>
    %184 = arith.divf %182, %183 : vector<2x128xf32>
    %185 = arith.mulf %176, %156 : vector<2x128xf32>
    %186 = arith.mulf %170, %178 : vector<2x128xf32>
    %187 = arith.addf %185, %186 : vector<2x128xf32>
    %188 = math.tanh %187 : vector<2x128xf32>
    %189 = arith.mulf %184, %188 : vector<2x128xf32>
    %c0_53 = arith.constant 0 : index
    %c640 = arith.constant 640 : index
    %190 = vector.load %arg3[%c0_53, %c640] : memref<2x1024xf32, #tpu.memory_space<vmem>>, vector<2x128xf32>
    tpu.vector_store %arg3[%c0_53, %c640], %189 {strides = array<i32>} : memref<2x1024xf32, #tpu.memory_space<vmem>>, vector<2x128xf32>,
    %c0_54 = arith.constant 0 : index
    %c3072 = arith.constant 3072 : index
    %191 = vector.load %arg1[%c0_54, %c3072] : memref<2x4096xf32, #tpu.memory_space<vmem>>, vector<2x512xf32>
    %192 = arith.truncf %189 : vector<2x128xf32> to vector<2x128xbf16>
    %c0_55 = arith.constant 0 : index
    %c0_56 = arith.constant 0 : index
    %193 = vector.load %arg2[%c0_55, %c0_56] : memref<128x512xbf16, #tpu.memory_space<vmem>>, vector<128x512xbf16>
    %cst_57 = arith.constant dense<0.000000e+00> : vector<2x512xf32>
    %194 = tpu.matmul %192, %193, %cst_57 {dimension_numbers = #tpu.dot_dimension_numbers<[1], [0], [0], [1], [0, 0, 1, 1], [], []>} : vector<2x128xbf16>, vector<128x512xbf16>, vector<2x512xf32> -> vector<2x512xf32>
    %195 = arith.addf %191, %194 : vector<2x512xf32>
    %196 = vector.extract_strided_slice %195 {offsets = [0, 0], sizes = [2, 128], strides = [1, 1]} : vector<2x512xf32> to vector<2x128xf32>
    %197 = arith.negf %196 : vector<2x128xf32>
    %198 = math.exp %197 : vector<2x128xf32>
    %cst_58 = arith.constant 1.000000e+00 : f32
    %199 = vector.broadcast %cst_58 : f32 to vector<2x128xf32>
    %200 = arith.addf %199, %198 : vector<2x128xf32>
    %201 = arith.divf %199, %200 : vector<2x128xf32>
    %202 = vector.extract_strided_slice %195 {offsets = [0, 128], sizes = [2, 128], strides = [1, 1]} : vector<2x512xf32> to vector<2x128xf32>
    %203 = arith.negf %202 : vector<2x128xf32>
    %204 = math.exp %203 : vector<2x128xf32>
    %cst_59 = arith.constant 1.000000e+00 : f32
    %205 = vector.broadcast %cst_59 : f32 to vector<2x128xf32>
    %206 = arith.addf %205, %204 : vector<2x128xf32>
    %207 = arith.divf %205, %206 : vector<2x128xf32>
    %208 = vector.extract_strided_slice %195 {offsets = [0, 256], sizes = [2, 128], strides = [1, 1]} : vector<2x512xf32> to vector<2x128xf32>
    %209 = math.tanh %208 : vector<2x128xf32>
    %210 = vector.extract_strided_slice %195 {offsets = [0, 384], sizes = [2, 128], strides = [1, 1]} : vector<2x512xf32> to vector<2x128xf32>
    %211 = arith.negf %210 : vector<2x128xf32>
    %212 = math.exp %211 : vector<2x128xf32>
    %cst_60 = arith.constant 1.000000e+00 : f32
    %213 = vector.broadcast %cst_60 : f32 to vector<2x128xf32>
    %214 = arith.addf %213, %212 : vector<2x128xf32>
    %215 = arith.divf %213, %214 : vector<2x128xf32>
    %216 = arith.mulf %207, %187 : vector<2x128xf32>
    %217 = arith.mulf %201, %209 : vector<2x128xf32>
    %218 = arith.addf %216, %217 : vector<2x128xf32>
    %219 = math.tanh %218 : vector<2x128xf32>
    %220 = arith.mulf %215, %219 : vector<2x128xf32>
    %c0_61 = arith.constant 0 : index
    %c768 = arith.constant 768 : index
    %221 = vector.load %arg3[%c0_61, %c768] : memref<2x1024xf32, #tpu.memory_space<vmem>>, vector<2x128xf32>
    tpu.vector_store %arg3[%c0_61, %c768], %220 {strides = array<i32>} : memref<2x1024xf32, #tpu.memory_space<vmem>>, vector<2x128xf32>,
    %c0_62 = arith.constant 0 : index
    %c3584 = arith.constant 3584 : index
    %222 = vector.load %arg1[%c0_62, %c3584] : memref<2x4096xf32, #tpu.memory_space<vmem>>, vector<2x512xf32>
    %223 = arith.truncf %220 : vector<2x128xf32> to vector<2x128xbf16>
    %c0_63 = arith.constant 0 : index
    %c0_64 = arith.constant 0 : index
    %224 = vector.load %arg2[%c0_63, %c0_64] : memref<128x512xbf16, #tpu.memory_space<vmem>>, vector<128x512xbf16>
    %cst_65 = arith.constant dense<0.000000e+00> : vector<2x512xf32>
    %225 = tpu.matmul %223, %224, %cst_65 {dimension_numbers = #tpu.dot_dimension_numbers<[1], [0], [0], [1], [0, 0, 1, 1], [], []>} : vector<2x128xbf16>, vector<128x512xbf16>, vector<2x512xf32> -> vector<2x512xf32>
    %226 = arith.addf %222, %225 : vector<2x512xf32>
    %227 = vector.extract_strided_slice %226 {offsets = [0, 0], sizes = [2, 128], strides = [1, 1]} : vector<2x512xf32> to vector<2x128xf32>
    %228 = arith.negf %227 : vector<2x128xf32>
    %229 = math.exp %228 : vector<2x128xf32>
    %cst_66 = arith.constant 1.000000e+00 : f32
    %230 = vector.broadcast %cst_66 : f32 to vector<2x128xf32>
    %231 = arith.addf %230, %229 : vector<2x128xf32>
    %232 = arith.divf %230, %231 : vector<2x128xf32>
    %233 = vector.extract_strided_slice %226 {offsets = [0, 128], sizes = [2, 128], strides = [1, 1]} : vector<2x512xf32> to vector<2x128xf32>
    %234 = arith.negf %233 : vector<2x128xf32>
    %235 = math.exp %234 : vector<2x128xf32>
    %cst_67 = arith.constant 1.000000e+00 : f32
    %236 = vector.broadcast %cst_67 : f32 to vector<2x128xf32>
    %237 = arith.addf %236, %235 : vector<2x128xf32>
    %238 = arith.divf %236, %237 : vector<2x128xf32>
    %239 = vector.extract_strided_slice %226 {offsets = [0, 256], sizes = [2, 128], strides = [1, 1]} : vector<2x512xf32> to vector<2x128xf32>
    %240 = math.tanh %239 : vector<2x128xf32>
    %241 = vector.extract_strided_slice %226 {offsets = [0, 384], sizes = [2, 128], strides = [1, 1]} : vector<2x512xf32> to vector<2x128xf32>
    %242 = arith.negf %241 : vector<2x128xf32>
    %243 = math.exp %242 : vector<2x128xf32>
    %cst_68 = arith.constant 1.000000e+00 : f32
    %244 = vector.broadcast %cst_68 : f32 to vector<2x128xf32>
    %245 = arith.addf %244, %243 : vector<2x128xf32>
    %246 = arith.divf %244, %245 : vector<2x128xf32>
    %247 = arith.mulf %238, %218 : vector<2x128xf32>
    %248 = arith.mulf %232, %240 : vector<2x128xf32>
    %249 = arith.addf %247, %248 : vector<2x128xf32>
    %250 = math.tanh %249 : vector<2x128xf32>
    %251 = arith.mulf %246, %250 : vector<2x128xf32>
    %c0_69 = arith.constant 0 : index
    %c896 = arith.constant 896 : index
    %252 = vector.load %arg3[%c0_69, %c896] : memref<2x1024xf32, #tpu.memory_space<vmem>>, vector<2x128xf32>
    tpu.vector_store %arg3[%c0_69, %c896], %251 {strides = array<i32>} : memref<2x1024xf32, #tpu.memory_space<vmem>>, vector<2x128xf32>,
    %c0_70 = arith.constant 0 : index
    %c0_71 = arith.constant 0 : index
    %253 = vector.load %arg4[%c0_70, %c0_71] : memref<2x128xf32, #tpu.memory_space<vmem>>, vector<2x128xf32>
    tpu.vector_store %arg4[%c0_70, %c0_71], %251 {strides = array<i32>} : memref<2x128xf32, #tpu.memory_space<vmem>>, vector<2x128xf32>,
    %c0_72 = arith.constant 0 : index
    %c0_73 = arith.constant 0 : index
    %254 = vector.load %arg5[%c0_72, %c0_73] : memref<2x128xf32, #tpu.memory_space<vmem>>, vector<2x128xf32>
    tpu.vector_store %arg5[%c0_72, %c0_73], %249 {strides = array<i32>} : memref<2x128xf32, #tpu.memory_space<vmem>>, vector<2x128xf32>,
    return
  }
  func.func @transform_0(%arg0: i32) -> (i32, i32) {
    %c0_i32 = arith.constant 0 : i32
    %c0_i32_0 = arith.constant 0 : i32
    return %c0_i32, %arg0 : i32, i32
  }
  func.func @transform_1(%arg0: i32) -> (i32, i32) {
    %c0_i32 = arith.constant 0 : i32
    %c0_i32_0 = arith.constant 0 : i32
    %c0_i32_1 = arith.constant 0 : i32
    return %c0_i32, %c0_i32_0 : i32, i32
  }
  func.func @transform_2(%arg0: i32) -> (i32, i32) {
    %c0_i32 = arith.constant 0 : i32
    %c0_i32_0 = arith.constant 0 : i32
    return %c0_i32, %arg0 : i32, i32
  }
}

module attributes {stable_mosaic.version = 11 : i64} {
  func.func @_matmul_bias_kernel(%arg0: i32, %arg1: memref<32x128xbf16, #tpu.memory_space<vmem>>, %arg2: memref<128x128xbf16, #tpu.memory_space<vmem>>, %arg3: memref<1x128xf32, #tpu.memory_space<vmem>>, %arg4: memref<32x128xf32, #tpu.memory_space<vmem>>) attributes {dimension_semantics = [#tpu.dimension_semantics<parallel>], iteration_bounds = array<i64: 1>, scalar_prefetch = 0 : i64, scratch_operands = 0 : i64, tpu.core_type = #tpu.core_type<tc>, window_params = [{transform_indices = @transform_0, window_bounds = array<i64: 32, 128>}, {pipeline_mode = #tpu.pipeline_mode<synchronous>, transform_indices = @transform_1, window_bounds = array<i64: 128, 128>}, {pipeline_mode = #tpu.pipeline_mode<synchronous>, transform_indices = @transform_2, window_bounds = array<i64: 1, 128>}, {transform_indices = @transform_3, window_bounds = array<i64: 32, 128>}]} {
    %c0 = arith.constant 0 : index
    %c0_0 = arith.constant 0 : index
    %0 = vector.load %arg1[%c0, %c0_0] : memref<32x128xbf16, #tpu.memory_space<vmem>>, vector<32x128xbf16>
    %c0_1 = arith.constant 0 : index
    %c0_2 = arith.constant 0 : index
    %1 = vector.load %arg2[%c0_1, %c0_2] : memref<128x128xbf16, #tpu.memory_space<vmem>>, vector<128x128xbf16>
    %cst = arith.constant dense<0.000000e+00> : vector<32x128xf32>
    %2 = tpu.matmul %0, %1, %cst {dimension_numbers = #tpu.dot_dimension_numbers<[1], [0], [0], [1], [0, 0, 1, 1], [], []>} : vector<32x128xbf16>, vector<128x128xbf16>, vector<32x128xf32> -> vector<32x128xf32>
    %c0_3 = arith.constant 0 : index
    %c0_4 = arith.constant 0 : index
    %3 = vector.load %arg3[%c0_3, %c0_4] : memref<1x128xf32, #tpu.memory_space<vmem>>, vector<1x128xf32>
    %4 = vector.broadcast %3 : vector<1x128xf32> to vector<32x128xf32>
    %5 = arith.addf %2, %4 : vector<32x128xf32>
    %c0_5 = arith.constant 0 : index
    %c0_6 = arith.constant 0 : index
    %6 = vector.load %arg4[%c0_5, %c0_6] : memref<32x128xf32, #tpu.memory_space<vmem>>, vector<32x128xf32>
    tpu.vector_store %arg4[%c0_5, %c0_6], %5 {strides = array<i32>} : memref<32x128xf32, #tpu.memory_space<vmem>>, vector<32x128xf32>,
    return
  }
  func.func @transform_0(%arg0: i32) -> (i32, i32) {
    %c0_i32 = arith.constant 0 : i32
    %c0_i32_0 = arith.constant 0 : i32
    return %arg0, %c0_i32 : i32, i32
  }
  func.func @transform_1(%arg0: i32) -> (i32, i32) {
    %c0_i32 = arith.constant 0 : i32
    %c0_i32_0 = arith.constant 0 : i32
    %c0_i32_1 = arith.constant 0 : i32
    return %c0_i32, %c0_i32_0 : i32, i32
  }
  func.func @transform_2(%arg0: i32) -> (i32, i32) {
    %c0_i32 = arith.constant 0 : i32
    %c0_i32_0 = arith.constant 0 : i32
    %c0_i32_1 = arith.constant 0 : i32
    return %c0_i32, %c0_i32_0 : i32, i32
  }
  func.func @transform_3(%arg0: i32) -> (i32, i32) {
    %c0_i32 = arith.constant 0 : i32
    %c0_i32_0 = arith.constant 0 : i32
    return %arg0, %c0_i32 : i32, i32
  }
}

</mosaic_0001>

<llo_original>
// kernel: lstm_network_forward.5
$region0: #{lstm_network_forward.5}
  #allocation0 [shape = 'u32[]', space=smem, size = 0x4, offset = 0x4, fixed_abs, tag = 'smem constant byte address 0x4 - core index']
  #allocation1 [shape = 'u32[144,128]{1,0:T(1,128)}', space=vmem, size = 0x12000, scoped, tag = 'internal scratch']
  %s0 = inlined_call_operand.vmem [shape: bf16[32,16], index: 0, kind: input, shape index: {}]
  %s1 = inlined_call_operand.vmem [shape: bf16[16,512], index: 1, kind: input, shape index: {}]
  %s2 = inlined_call_operand.vmem [shape: f32[1,512], index: 2, kind: input, shape index: {}]
  %s3 = inlined_call_operand.vmem [shape: f32[32,512], index: 3, kind: output, shape index: {}]
  %s4 = sld [smem:[#allocation0]]
  $region22: #{lstm_network_forward.5} parent=0
    _
  %s6 = ssub.s32 1, %s4
  %s7 = scalar_select 0, %s6, %s4
  // Predicated region
  $region2: #{lstm_network_forward.5} parent=0 // pred_check
    _
  $region3: #{lstm_network_forward.5} parent=0 // pred_check_branch
    %9 = sbr.rel (0) target = $region5
  $region4: #{lstm_network_forward.5} parent=0 // pred_region
    _
  $region5: #{lstm_network_forward.5} parent=0 // pred_fallthru
    _
  // Predicated region
  $region6: #{lstm_network_forward.5} parent=0 // pred_check
    _
  $region7: #{lstm_network_forward.5} parent=0 // pred_check_branch
    %11 = sbr.rel (0) target = $region9
  $region8: #{lstm_network_forward.5} parent=0 // pred_region
    _
  $region9: #{lstm_network_forward.5} parent=0 // pred_fallthru
    _
  // Predicated region
  $region10: #{lstm_network_forward.5} parent=0 // pred_check
    _
  $region11: #{lstm_network_forward.5} parent=0 // pred_check_branch
    %13 = sbr.rel (0) target = $region13
  $region12: #{lstm_network_forward.5} parent=0 // pred_region
    _
  $region13: #{lstm_network_forward.5} parent=0 // pred_fallthru
    _
  %v15 = vld [vmem:[%s0] sm:$0xf]
  %v16 = vld [vmem:[%s0 + $0x4] sm:$0xf]
  %v17 = vld [vmem:[%s0 + $0x8] sm:$0xf]
  %v18 = vld [vmem:[%s0 + $0xc] sm:$0xf]
  %v19 = vld [vmem:[%s1] sm:$0xff]
  %v20 = vld [vmem:[%s1 + $0x8] sm:$0xff]
  %v21 = vld [vmem:[%s1 + $0x10] sm:$0xff]
  %v22 = vld [vmem:[%s1 + $0x18] sm:$0xff]
  %v23 = vld [vmem:[%s2] sm:$0xf]
  %v25 = vlaneseq
  %v26 = vshrl.u32 %v25, 7
  %v27 = vsub.s32 0, %v26
  %v28 = vrot.slane %v23, %v27
  %v29 = vlaneseq
  %v30 = vshrl.u32 %v29, 7
  %v31 = vsub.s32 1, %v30
  %v32 = vrot.slane %v23, %v31
  %v33 = vlaneseq
  %v34 = vshrl.u32 %v33, 7
  %v35 = vsub.s32 2, %v34
  %v36 = vrot.slane %v23, %v35
  %v37 = vlaneseq
  %v38 = vshrl.u32 %v37, 7
  %v39 = vsub.s32 3, %v38
  %v40 = vrot.slane %v23, %v39
  %v49 = vunpack.c.l.b16 %v15
  %v50 = vunpack.c.l.b16 %v16
  %v51 = vunpack.c.l.b16 %v17
  %v52 = vunpack.c.l.b16 %v18
  %v53 = vpack.c.b16 %v50, %v49
  %v54 = vpack.c.b16 %v52, %v51
  %v59 = vunpack.c.l.b16 %v19
  %v60 = vunpack.c.h.b16 %v19
  %v61 = vunpack.c.l.b16 %v20
  %v62 = vunpack.c.h.b16 %v20
  %v63 = vunpack.c.l.b16 %v21
  %v64 = vunpack.c.h.b16 %v21
  %v65 = vunpack.c.l.b16 %v22
  %v66 = vunpack.c.h.b16 %v22
  %v67 = vpack.c.b16 %v63, %v59
  %v68 = vpack.c.b16 %v64, %v60
  %v69 = vpack.c.b16 %v65, %v61
  %v70 = vpack.c.b16 %v66, %v62
  %vm75 = vcmask 130048
  %v77 = vsel %vm75, %v53, 0
  %v80 = vsel %vm75, %v54, 0
  %82 = vmatprep.subr.bf16.mxu0 %v68
  %83 = vmatpush1.bf16.msra.mxu0 %v67
  %84 = vmatprep.subr.bf16.mxu0 0
  %85 = vmatpush1.bf16.msra.mxu0 0
  %86 = vmatprep.subr.bf16.mxu0 0
  %87 = vmatpush1.bf16.msra.mxu0 0
  %88 = vmatprep.subr.bf16.mxu0 0
  %89 = vmatpush1.bf16.msra.mxu0 0
  %90 = vmatprep.subr.bf16.mxu0 0
  %91 = vmatpush1.bf16.msra.mxu0 0
  %92 = vmatprep.subr.bf16.mxu0 0
  %93 = vmatpush1.bf16.msra.mxu0 0
  %94 = vmatprep.subr.bf16.mxu0 0
  %95 = vmatpush1.bf16.msra.mxu0 0
  %96 = vmatprep.subr.bf16.mxu0 0
  %97 = vmatpush1.bf16.msra.mxu0 0
  %98 = vmatprep.subr.bf16.mxu0 0
  %99 = vmatpush1.bf16.msra.mxu0 0
  %100 = vmatprep.subr.bf16.mxu0 0
  %101 = vmatpush1.bf16.msra.mxu0 0
  %102 = vmatprep.subr.bf16.mxu0 0
  %103 = vmatpush1.bf16.msra.mxu0 0
  %104 = vmatprep.subr.bf16.mxu0 0
  %105 = vmatpush1.bf16.msra.mxu0 0
  %106 = vmatprep.subr.bf16.mxu0 0
  %107 = vmatpush1.bf16.msra.mxu0 0
  %108 = vmatprep.subr.bf16.mxu0 0
  %109 = vmatpush1.bf16.msra.mxu0 0
  %110 = vmatprep.subr.bf16.mxu0 0
  %111 = vmatpush1.bf16.msra.mxu0 0
  %112 = vmatprep.subr.bf16.mxu0 0
  %113 = vmatpush1.bf16.msra.mxu0 0
  %114 = vmatprep.mubr.bf16.mxu0 0
  %115 = vmatmul.mubr.bf16.gmra.mrb[0].mxu0 %v77
  %v116 = vpop.f32.mrb[0].mxu0
  %v117 = vadd.f32 %v28, %v116
  %v118 = vpop.f32.mrb[0].mxu0
  %v119 = vadd.f32 %v32, %v118
  %v120 = vpop.f32.mrb[0].mxu0
  %v121 = vadd.f32 %v28, %v120
  %v122 = vpop.f32.mrb[0].mxu0
  %v123 = vadd.f32 %v32, %v122
  %124 = vmatprep.mubr.bf16.mxu0 0
  %125 = vmatmul.mubr.bf16.gmra.mrb[0].mxu0 %v80
  %v126 = vpop.f32.mrb[0].mxu0
  %v127 = vadd.f32 %v28, %v126
  %v128 = vpop.f32.mrb[0].mxu0
  %v129 = vadd.f32 %v32, %v128
  %v130 = vpop.f32.mrb[0].mxu0
  %v131 = vadd.f32 %v28, %v130
  %v132 = vpop.f32.mrb[0].mxu0
  %v133 = vadd.f32 %v32, %v132
  %134 = vdwg.mxu0
  %135 = vmatprep.subr.bf16.mxu0 %v70
  %136 = vmatpush1.bf16.msra.mxu0 %v69
  %137 = vmatprep.subr.bf16.mxu0 0
  %138 = vmatpush1.bf16.msra.mxu0 0
  %139 = vmatprep.subr.bf16.mxu0 0
  %140 = vmatpush1.bf16.msra.mxu0 0
  %141 = vmatprep.subr.bf16.mxu0 0
  %142 = vmatpush1.bf16.msra.mxu0 0
  %143 = vmatprep.subr.bf16.mxu0 0
  %144 = vmatpush1.bf16.msra.mxu0 0
  %145 = vmatprep.subr.bf16.mxu0 0
  %146 = vmatpush1.bf16.msra.mxu0 0
  %147 = vmatprep.subr.bf16.mxu0 0
  %148 = vmatpush1.bf16.msra.mxu0 0
  %149 = vmatprep.subr.bf16.mxu0 0
  %150 = vmatpush1.bf16.msra.mxu0 0
  %151 = vmatprep.subr.bf16.mxu0 0
  %152 = vmatpush1.bf16.msra.mxu0 0
  %153 = vmatprep.subr.bf16.mxu0 0
  %154 = vmatpush1.bf16.msra.mxu0 0
  %155 = vmatprep.subr.bf16.mxu0 0
  %156 = vmatpush1.bf16.msra.mxu0 0
  %157 = vmatprep.subr.bf16.mxu0 0
  %158 = vmatpush1.bf16.msra.mxu0 0
  %159 = vmatprep.subr.bf16.mxu0 0
  %160 = vmatpush1.bf16.msra.mxu0 0
  %161 = vmatprep.subr.bf16.mxu0 0
  %162 = vmatpush1.bf16.msra.mxu0 0
  %163 = vmatprep.subr.bf16.mxu0 0
  %164 = vmatpush1.bf16.msra.mxu0 0
  %165 = vmatprep.subr.bf16.mxu0 0
  %166 = vmatpush1.bf16.msra.mxu0 0
  %167 = vmatprep.mubr.bf16.mxu0 0
  %168 = vmatmul.mubr.bf16.gmra.mrb[0].mxu0 %v77
  %v169 = vpop.f32.mrb[0].mxu0
  %v170 = vadd.f32 %v36, %v169
  %v171 = vpop.f32.mrb[0].mxu0
  %v172 = vadd.f32 %v40, %v171
  %v173 = vpop.f32.mrb[0].mxu0
  %v174 = vadd.f32 %v36, %v173
  %v175 = vpop.f32.mrb[0].mxu0
  %v176 = vadd.f32 %v40, %v175
  %177 = vmatprep.mubr.bf16.mxu0 0
  %178 = vmatmul.mubr.bf16.gmra.mrb[0].mxu0 %v80
  %v179 = vpop.f32.mrb[0].mxu0
  %v180 = vadd.f32 %v36, %v179
  %v181 = vpop.f32.mrb[0].mxu0
  %v182 = vadd.f32 %v40, %v181
  %v183 = vpop.f32.mrb[0].mxu0
  %v184 = vadd.f32 %v36, %v183
  %v185 = vpop.f32.mrb[0].mxu0
  %v186 = vadd.f32 %v40, %v185
  %187 = vdwg.mxu0
  %188 = vst [vmem:[%s3] sm:$0xff] %v117
  %189 = vst [vmem:[%s3 + $0x8] sm:$0xff] %v119
  %190 = vst [vmem:[%s3 + $0x10] sm:$0xff] %v170
  %191 = vst [vmem:[%s3 + $0x18] sm:$0xff] %v172
  %192 = vst [vmem:[%s3 + $0x20] sm:$0xff] %v121
  %193 = vst [vmem:[%s3 + $0x28] sm:$0xff] %v123
  %194 = vst [vmem:[%s3 + $0x30] sm:$0xff] %v174
  %195 = vst [vmem:[%s3 + $0x38] sm:$0xff] %v176
  %196 = vst [vmem:[%s3 + $0x40] sm:$0xff] %v127
  %197 = vst [vmem:[%s3 + $0x48] sm:$0xff] %v129
  %198 = vst [vmem:[%s3 + $0x50] sm:$0xff] %v180
  %199 = vst [vmem:[%s3 + $0x58] sm:$0xff] %v182
  %200 = vst [vmem:[%s3 + $0x60] sm:$0xff] %v131
  %201 = vst [vmem:[%s3 + $0x68] sm:$0xff] %v133
  %202 = vst [vmem:[%s3 + $0x70] sm:$0xff] %v184
  %203 = vst [vmem:[%s3 + $0x78] sm:$0xff] %v186
  // Predicated region
  $region14: #{lstm_network_forward.5} parent=0 // pred_check
    _
  $region15: #{lstm_network_forward.5} parent=0 // pred_check_branch
    %205 = sbr.rel (0) target = $region17
  $region16: #{lstm_network_forward.5} parent=0 // pred_region
    _
  $region17: #{lstm_network_forward.5} parent=0 // pred_fallthru
    _
  // Predicated region
  $region18: #{lstm_network_forward.5} parent=0 // pred_check
    _
  $region19: #{lstm_network_forward.5} parent=0 // pred_check_branch
    %207 = sbr.rel (0) target = $region21
  $region20: #{lstm_network_forward.5} parent=0 // pred_region
    _
  $region21: #{lstm_network_forward.5} parent=0 // pred_fallthru
    _

// kernel: lstm_network_forward.7
$region0: #{lstm_network_forward.7}
  #allocation0 [shape = 'u32[]', space=smem, size = 0x4, offset = 0x4, fixed_abs, tag = 'smem constant byte address 0x4 - core index']
  #allocation1 [shape = 'u32[144,128]{1,0:T(1,128)}', space=vmem, size = 0x12000, scoped, tag = 'internal scratch']
  %s0 = inlined_call_operand.vmem [shape: bf16[32,128], index: 0, kind: input, shape index: {}]
  %s1 = inlined_call_operand.vmem [shape: bf16[128,512], index: 1, kind: input, shape index: {}]
  %s2 = inlined_call_operand.vmem [shape: f32[1,512], index: 2, kind: input, shape index: {}]
  %s3 = inlined_call_operand.vmem [shape: f32[32,512], index: 3, kind: output, shape index: {}]
  %s4 = sld [smem:[#allocation0]]
  $region22: #{lstm_network_forward.7} parent=0
    _
  %s6 = ssub.s32 1, %s4
  %s7 = scalar_select 0, %s6, %s4
  // Predicated region
  $region2: #{lstm_network_forward.7} parent=0 // pred_check
    _
  $region3: #{lstm_network_forward.7} parent=0 // pred_check_branch
    %9 = sbr.rel (0) target = $region5
  $region4: #{lstm_network_forward.7} parent=0 // pred_region
    _
  $region5: #{lstm_network_forward.7} parent=0 // pred_fallthru
    _
  // Predicated region
  $region6: #{lstm_network_forward.7} parent=0 // pred_check
    _
  $region7: #{lstm_network_forward.7} parent=0 // pred_check_branch
    %11 = sbr.rel (0) target = $region9
  $region8: #{lstm_network_forward.7} parent=0 // pred_region
    _
  $region9: #{lstm_network_forward.7} parent=0 // pred_fallthru
    _
  // Predicated region
  $region10: #{lstm_network_forward.7} parent=0 // pred_check
    _
  $region11: #{lstm_network_forward.7} parent=0 // pred_check_branch
    %13 = sbr.rel (0) target = $region13
  $region12: #{lstm_network_forward.7} parent=0 // pred_region
    _
  $region13: #{lstm_network_forward.7} parent=0 // pred_fallthru
    _
  %v15 = vld [vmem:[%s0] sm:$0xf]
  %v16 = vld [vmem:[%s0 + $0x4] sm:$0xf]
  %v17 = vld [vmem:[%s0 + $0x8] sm:$0xf]
  %v18 = vld [vmem:[%s0 + $0xc] sm:$0xf]
  %v19 = vld [vmem:[%s1] sm:$0xff]
  %v20 = vld [vmem:[%s1 + $0x8] sm:$0xff]
  %v21 = vld [vmem:[%s1 + $0x10] sm:$0xff]
  %v22 = vld [vmem:[%s1 + $0x18] sm:$0xff]
  %v23 = vld [vmem:[%s1 + $0x20] sm:$0xff]
  %v24 = vld [vmem:[%s1 + $0x28] sm:$0xff]
  %v25 = vld [vmem:[%s1 + $0x30] sm:$0xff]
  %v26 = vld [vmem:[%s1 + $0x38] sm:$0xff]
  %v27 = vld [vmem:[%s1 + $0x40] sm:$0xff]
  %v28 = vld [vmem:[%s1 + $0x48] sm:$0xff]
  %v29 = vld [vmem:[%s1 + $0x50] sm:$0xff]
  %v30 = vld [vmem:[%s1 + $0x58] sm:$0xff]
  %v31 = vld [vmem:[%s1 + $0x60] sm:$0xff]
  %v32 = vld [vmem:[%s1 + $0x68] sm:$0xff]
  %v33 = vld [vmem:[%s1 + $0x70] sm:$0xff]
  %v34 = vld [vmem:[%s1 + $0x78] sm:$0xff]
  %v35 = vld [vmem:[%s1 + $0x80] sm:$0xff]
  %v36 = vld [vmem:[%s1 + $0x88] sm:$0xff]
  %v37 = vld [vmem:[%s1 + $0x90] sm:$0xff]
  %v38 = vld [vmem:[%s1 + $0x98] sm:$0xff]
  %v39 = vld [vmem:[%s1 + $0xa0] sm:$0xff]
  %v40 = vld [vmem:[%s1 + $0xa8] sm:$0xff]
  %v41 = vld [vmem:[%s1 + $0xb0] sm:$0xff]
  %v42 = vld [vmem:[%s1 + $0xb8] sm:$0xff]
  %v43 = vld [vmem:[%s1 + $0xc0] sm:$0xff]
  %v44 = vld [vmem:[%s1 + $0xc8] sm:$0xff]
  %v45 = vld [vmem:[%s1 + $0xd0] sm:$0xff]
  %v46 = vld [vmem:[%s1 + $0xd8] sm:$0xff]
  %v47 = vld [vmem:[%s1 + $0xe0] sm:$0xff]
  %v48 = vld [vmem:[%s1 + $0xe8] sm:$0xff]
  %v49 = vld [vmem:[%s1 + $0xf0] sm:$0xff]
  %v50 = vld [vmem:[%s1 + $0xf8] sm:$0xff]
  %v51 = vld [vmem:[%s2] sm:$0xf]
  %v53 = vlaneseq
  %v54 = vshrl.u32 %v53, 7
  %v55 = vsub.s32 0, %v54
  %v56 = vrot.slane %v51, %v55
  %v57 = vlaneseq
  %v58 = vshrl.u32 %v57, 7
  %v59 = vsub.s32 1, %v58
  %v60 = vrot.slane %v51, %v59
  %v61 = vlaneseq
  %v62 = vshrl.u32 %v61, 7
  %v63 = vsub.s32 2, %v62
  %v64 = vrot.slane %v51, %v63
  %v65 = vlaneseq
  %v66 = vshrl.u32 %v65, 7
  %v67 = vsub.s32 3, %v66
  %v68 = vrot.slane %v51, %v67
  %v77 = vunpack.c.l.b16 %v15
  %v78 = vunpack.c.l.b16 %v16
  %v79 = vunpack.c.l.b16 %v17
  %v80 = vunpack.c.l.b16 %v18
  %v81 = vpack.c.b16 %v78, %v77
  %v82 = vpack.c.b16 %v80, %v79
  %v117 = vunpack.c.l.b16 %v19
  %v118 = vunpack.c.h.b16 %v19
  %v119 = vunpack.c.l.b16 %v20
  %v120 = vunpack.c.h.b16 %v20
  %v121 = vunpack.c.l.b16 %v21
  %v122 = vunpack.c.h.b16 %v21
  %v123 = vunpack.c.l.b16 %v22
  %v124 = vunpack.c.h.b16 %v22
  %v125 = vunpack.c.l.b16 %v23
  %v126 = vunpack.c.h.b16 %v23
  %v127 = vunpack.c.l.b16 %v24
  %v128 = vunpack.c.h.b16 %v24
  %v129 = vunpack.c.l.b16 %v25
  %v130 = vunpack.c.h.b16 %v25
  %v131 = vunpack.c.l.b16 %v26
  %v132 = vunpack.c.h.b16 %v26
  %v133 = vunpack.c.l.b16 %v27
  %v134 = vunpack.c.h.b16 %v27
  %v135 = vunpack.c.l.b16 %v28
  %v136 = vunpack.c.h.b16 %v28
  %v137 = vunpack.c.l.b16 %v29
  %v138 = vunpack.c.h.b16 %v29
  %v139 = vunpack.c.l.b16 %v30
  %v140 = vunpack.c.h.b16 %v30
  %v141 = vunpack.c.l.b16 %v31
  %v142 = vunpack.c.h.b16 %v31
  %v143 = vunpack.c.l.b16 %v32
  %v144 = vunpack.c.h.b16 %v32
  %v145 = vunpack.c.l.b16 %v33
  %v146 = vunpack.c.h.b16 %v33
  %v147 = vunpack.c.l.b16 %v34
  %v148 = vunpack.c.h.b16 %v34
  %v149 = vunpack.c.l.b16 %v35
  %v150 = vunpack.c.h.b16 %v35
  %v151 = vunpack.c.l.b16 %v36
  %v152 = vunpack.c.h.b16 %v36
  %v153 = vunpack.c.l.b16 %v37
  %v154 = vunpack.c.h.b16 %v37
  %v155 = vunpack.c.l.b16 %v38
  %v156 = vunpack.c.h.b16 %v38
  %v157 = vunpack.c.l.b16 %v39
  %v158 = vunpack.c.h.b16 %v39
  %v159 = vunpack.c.l.b16 %v40
  %v160 = vunpack.c.h.b16 %v40
  %v161 = vunpack.c.l.b16 %v41
  %v162 = vunpack.c.h.b16 %v41
  %v163 = vunpack.c.l.b16 %v42
  %v164 = vunpack.c.h.b16 %v42
  %v165 = vunpack.c.l.b16 %v43
  %v166 = vunpack.c.h.b16 %v43
  %v167 = vunpack.c.l.b16 %v44
  %v168 = vunpack.c.h.b16 %v44
  %v169 = vunpack.c.l.b16 %v45
  %v170 = vunpack.c.h.b16 %v45
  %v171 = vunpack.c.l.b16 %v46
  %v172 = vunpack.c.h.b16 %v46
  %v173 = vunpack.c.l.b16 %v47
  %v174 = vunpack.c.h.b16 %v47
  %v175 = vunpack.c.l.b16 %v48
  %v176 = vunpack.c.h.b16 %v48
  %v177 = vunpack.c.l.b16 %v49
  %v178 = vunpack.c.h.b16 %v49
  %v179 = vunpack.c.l.b16 %v50
  %v180 = vunpack.c.h.b16 %v50
  %v181 = vpack.c.b16 %v121, %v117
  %v182 = vpack.c.b16 %v122, %v118
  %v183 = vpack.c.b16 %v123, %v119
  %v184 = vpack.c.b16 %v124, %v120
  %v185 = vpack.c.b16 %v129, %v125
  %v186 = vpack.c.b16 %v130, %v126
  %v187 = vpack.c.b16 %v131, %v127
  %v188 = vpack.c.b16 %v132, %v128
  %v189 = vpack.c.b16 %v137, %v133
  %v190 = vpack.c.b16 %v138, %v134
  %v191 = vpack.c.b16 %v139, %v135
  %v192 = vpack.c.b16 %v140, %v136
  %v193 = vpack.c.b16 %v145, %v141
  %v194 = vpack.c.b16 %v146, %v142
  %v195 = vpack.c.b16 %v147, %v143
  %v196 = vpack.c.b16 %v148, %v144
  %v197 = vpack.c.b16 %v153, %v149
  %v198 = vpack.c.b16 %v154, %v150
  %v199 = vpack.c.b16 %v155, %v151
  %v200 = vpack.c.b16 %v156, %v152
  %v201 = vpack.c.b16 %v161, %v157
  %v202 = vpack.c.b16 %v162, %v158
  %v203 = vpack.c.b16 %v163, %v159
  %v204 = vpack.c.b16 %v164, %v160
  %v205 = vpack.c.b16 %v169, %v165
  %v206 = vpack.c.b16 %v170, %v166
  %v207 = vpack.c.b16 %v171, %v167
  %v208 = vpack.c.b16 %v172, %v168
  %v209 = vpack.c.b16 %v177, %v173
  %v210 = vpack.c.b16 %v178, %v174
  %v211 = vpack.c.b16 %v179, %v175
  %v212 = vpack.c.b16 %v180, %v176
  %245 = vmatprep.subr.bf16.mxu0 %v182
  %246 = vmatpush1.bf16.msra.mxu0 %v181
  %247 = vmatprep.subr.bf16.mxu0 %v186
  %248 = vmatpush1.bf16.msra.mxu0 %v185
  %249 = vmatprep.subr.bf16.mxu0 %v190
  %250 = vmatpush1.bf16.msra.mxu0 %v189
  %251 = vmatprep.subr.bf16.mxu0 %v194
  %252 = vmatpush1.bf16.msra.mxu0 %v193
  %253 = vmatprep.subr.bf16.mxu0 %v198
  %254 = vmatpush1.bf16.msra.mxu0 %v197
  %255 = vmatprep.subr.bf16.mxu0 %v202
  %256 = vmatpush1.bf16.msra.mxu0 %v201
  %257 = vmatprep.subr.bf16.mxu0 %v206
  %258 = vmatpush1.bf16.msra.mxu0 %v205
  %259 = vmatprep.subr.bf16.mxu0 %v210
  %260 = vmatpush1.bf16.msra.mxu0 %v209
  %261 = vmatprep.subr.bf16.mxu0 0
  %262 = vmatpush1.bf16.msra.mxu0 0
  %263 = vmatprep.subr.bf16.mxu0 0
  %264 = vmatpush1.bf16.msra.mxu0 0
  %265 = vmatprep.subr.bf16.mxu0 0
  %266 = vmatpush1.bf16.msra.mxu0 0
  %267 = vmatprep.subr.bf16.mxu0 0
  %268 = vmatpush1.bf16.msra.mxu0 0
  %269 = vmatprep.subr.bf16.mxu0 0
  %270 = vmatpush1.bf16.msra.mxu0 0
  %271 = vmatprep.subr.bf16.mxu0 0
  %272 = vmatpush1.bf16.msra.mxu0 0
  %273 = vmatprep.subr.bf16.mxu0 0
  %274 = vmatpush1.bf16.msra.mxu0 0
  %275 = vmatprep.subr.bf16.mxu0 0
  %276 = vmatpush1.bf16.msra.mxu0 0
  %277 = vmatprep.mubr.bf16.mxu0 0
  %278 = vmatmul.mubr.bf16.gmra.mrb[0].mxu0 %v81
  %v279 = vpop.f32.mrb[0].mxu0
  %v280 = vadd.f32 %v56, %v279
  %v281 = vpop.f32.mrb[0].mxu0
  %v282 = vadd.f32 %v60, %v281
  %v283 = vpop.f32.mrb[0].mxu0
  %v284 = vadd.f32 %v56, %v283
  %v285 = vpop.f32.mrb[0].mxu0
  %v286 = vadd.f32 %v60, %v285
  %287 = vmatprep.mubr.bf16.mxu0 0
  %288 = vmatmul.mubr.bf16.gmra.mrb[0].mxu0 %v82
  %v289 = vpop.f32.mrb[0].mxu0
  %v290 = vadd.f32 %v56, %v289
  %v291 = vpop.f32.mrb[0].mxu0
  %v292 = vadd.f32 %v60, %v291
  %v293 = vpop.f32.mrb[0].mxu0
  %v294 = vadd.f32 %v56, %v293
  %v295 = vpop.f32.mrb[0].mxu0
  %v296 = vadd.f32 %v60, %v295
  %297 = vdwg.mxu0
  %298 = vmatprep.subr.bf16.mxu0 %v184
  %299 = vmatpush1.bf16.msra.mxu0 %v183
  %300 = vmatprep.subr.bf16.mxu0 %v188
  %301 = vmatpush1.bf16.msra.mxu0 %v187
  %302 = vmatprep.subr.bf16.mxu0 %v192
  %303 = vmatpush1.bf16.msra.mxu0 %v191
  %304 = vmatprep.subr.bf16.mxu0 %v196
  %305 = vmatpush1.bf16.msra.mxu0 %v195
  %306 = vmatprep.subr.bf16.mxu0 %v200
  %307 = vmatpush1.bf16.msra.mxu0 %v199
  %308 = vmatprep.subr.bf16.mxu0 %v204
  %309 = vmatpush1.bf16.msra.mxu0 %v203
  %310 = vmatprep.subr.bf16.mxu0 %v208
  %311 = vmatpush1.bf16.msra.mxu0 %v207
  %312 = vmatprep.subr.bf16.mxu0 %v212
  %313 = vmatpush1.bf16.msra.mxu0 %v211
  %314 = vmatprep.subr.bf16.mxu0 0
  %315 = vmatpush1.bf16.msra.mxu0 0
  %316 = vmatprep.subr.bf16.mxu0 0
  %317 = vmatpush1.bf16.msra.mxu0 0
  %318 = vmatprep.subr.bf16.mxu0 0
  %319 = vmatpush1.bf16.msra.mxu0 0
  %320 = vmatprep.subr.bf16.mxu0 0
  %321 = vmatpush1.bf16.msra.mxu0 0
  %322 = vmatprep.subr.bf16.mxu0 0
  %323 = vmatpush1.bf16.msra.mxu0 0
  %324 = vmatprep.subr.bf16.mxu0 0
  %325 = vmatpush1.bf16.msra.mxu0 0
  %326 = vmatprep.subr.bf16.mxu0 0
  %327 = vmatpush1.bf16.msra.mxu0 0
  %328 = vmatprep.subr.bf16.mxu0 0
  %329 = vmatpush1.bf16.msra.mxu0 0
  %330 = vmatprep.mubr.bf16.mxu0 0
  %331 = vmatmul.mubr.bf16.gmra.mrb[0].mxu0 %v81
  %v332 = vpop.f32.mrb[0].mxu0
  %v333 = vadd.f32 %v64, %v332
  %v334 = vpop.f32.mrb[0].mxu0
  %v335 = vadd.f32 %v68, %v334
  %v336 = vpop.f32.mrb[0].mxu0
  %v337 = vadd.f32 %v64, %v336
  %v338 = vpop.f32.mrb[0].mxu0
  %v339 = vadd.f32 %v68, %v338
  %340 = vmatprep.mubr.bf16.mxu0 0
  %341 = vmatmul.mubr.bf16.gmra.mrb[0].mxu0 %v82
  %v342 = vpop.f32.mrb[0].mxu0
  %v343 = vadd.f32 %v64, %v342
  %v344 = vpop.f32.mrb[0].mxu0
  %v345 = vadd.f32 %v68, %v344
  %v346 = vpop.f32.mrb[0].mxu0
  %v347 = vadd.f32 %v64, %v346
  %v348 = vpop.f32.mrb[0].mxu0
  %v349 = vadd.f32 %v68, %v348
  %350 = vdwg.mxu0
  %351 = vst [vmem:[%s3] sm:$0xff] %v280
  %352 = vst [vmem:[%s3 + $0x8] sm:$0xff] %v282
  %353 = vst [vmem:[%s3 + $0x10] sm:$0xff] %v333
  %354 = vst [vmem:[%s3 + $0x18] sm:$0xff] %v335
  %355 = vst [vmem:[%s3 + $0x20] sm:$0xff] %v284
  %356 = vst [vmem:[%s3 + $0x28] sm:$0xff] %v286
  %357 = vst [vmem:[%s3 + $0x30] sm:$0xff] %v337
  %358 = vst [vmem:[%s3 + $0x38] sm:$0xff] %v339
  %359 = vst [vmem:[%s3 + $0x40] sm:$0xff] %v290
  %360 = vst [vmem:[%s3 + $0x48] sm:$0xff] %v292
  %361 = vst [vmem:[%s3 + $0x50] sm:$0xff] %v343
  %362 = vst [vmem:[%s3 + $0x58] sm:$0xff] %v345
  %363 = vst [vmem:[%s3 + $0x60] sm:$0xff] %v294
  %364 = vst [vmem:[%s3 + $0x68] sm:$0xff] %v296
  %365 = vst [vmem:[%s3 + $0x70] sm:$0xff] %v347
  %366 = vst [vmem:[%s3 + $0x78] sm:$0xff] %v349
  // Predicated region
  $region14: #{lstm_network_forward.7} parent=0 // pred_check
    _
  $region15: #{lstm_network_forward.7} parent=0 // pred_check_branch
    %368 = sbr.rel (0) target = $region17
  $region16: #{lstm_network_forward.7} parent=0 // pred_region
    _
  $region17: #{lstm_network_forward.7} parent=0 // pred_fallthru
    _
  // Predicated region
  $region18: #{lstm_network_forward.7} parent=0 // pred_check
    _
  $region19: #{lstm_network_forward.7} parent=0 // pred_check_branch
    %370 = sbr.rel (0) target = $region21
  $region20: #{lstm_network_forward.7} parent=0 // pred_region
    _
  $region21: #{lstm_network_forward.7} parent=0 // pred_fallthru
    _

// kernel: lstm_network_forward.9
$region0: #{lstm_network_forward.9}
  #allocation0 [shape = 'u32[]', space=smem, size = 0x4, offset = 0x4, fixed_abs, tag = 'smem constant byte address 0x4 - core index']
  #allocation1 [shape = 'u32[144,128]{1,0:T(1,128)}', space=vmem, size = 0x12000, scoped, tag = 'internal scratch']
  %s0 = inlined_call_operand.vmem [shape: bf16[32,128], index: 0, kind: input, shape index: {}]
  %s1 = inlined_call_operand.vmem [shape: bf16[128,128], index: 1, kind: input, shape index: {}]
  %s2 = inlined_call_operand.vmem [shape: f32[1,128], index: 2, kind: input, shape index: {}]
  %s3 = inlined_call_operand.vmem [shape: f32[32,128], index: 3, kind: output, shape index: {}]
  %s4 = sld [smem:[#allocation0]]
  $region22: #{lstm_network_forward.9} parent=0
    _
  %s6 = ssub.s32 1, %s4
  %s7 = scalar_select 0, %s6, %s4
  // Predicated region
  $region2: #{lstm_network_forward.9} parent=0 // pred_check
    _
  $region3: #{lstm_network_forward.9} parent=0 // pred_check_branch
    %9 = sbr.rel (0) target = $region5
  $region4: #{lstm_network_forward.9} parent=0 // pred_region
    _
  $region5: #{lstm_network_forward.9} parent=0 // pred_fallthru
    _
  // Predicated region
  $region6: #{lstm_network_forward.9} parent=0 // pred_check
    _
  $region7: #{lstm_network_forward.9} parent=0 // pred_check_branch
    %11 = sbr.rel (0) target = $region9
  $region8: #{lstm_network_forward.9} parent=0 // pred_region
    _
  $region9: #{lstm_network_forward.9} parent=0 // pred_fallthru
    _
  // Predicated region
  $region10: #{lstm_network_forward.9} parent=0 // pred_check
    _
  $region11: #{lstm_network_forward.9} parent=0 // pred_check_branch
    %13 = sbr.rel (0) target = $region13
  $region12: #{lstm_network_forward.9} parent=0 // pred_region
    _
  $region13: #{lstm_network_forward.9} parent=0 // pred_fallthru
    _
  %v15 = vld [vmem:[%s0] sm:$0xf]
  %v16 = vld [vmem:[%s0 + $0x4] sm:$0xf]
  %v17 = vld [vmem:[%s0 + $0x8] sm:$0xf]
  %v18 = vld [vmem:[%s0 + $0xc] sm:$0xf]
  %v19 = vld [vmem:[%s1] sm:$0xf]
  %v20 = vld [vmem:[%s1 + $0x4] sm:$0xf]
  %v21 = vld [vmem:[%s1 + $0x8] sm:$0xf]
  %v22 = vld [vmem:[%s1 + $0xc] sm:$0xf]
  %v23 = vld [vmem:[%s1 + $0x10] sm:$0xf]
  %v24 = vld [vmem:[%s1 + $0x14] sm:$0xf]
  %v25 = vld [vmem:[%s1 + $0x18] sm:$0xf]
  %v26 = vld [vmem:[%s1 + $0x1c] sm:$0xf]
  %v27 = vld [vmem:[%s1 + $0x20] sm:$0xf]
  %v28 = vld [vmem:[%s1 + $0x24] sm:$0xf]
  %v29 = vld [vmem:[%s1 + $0x28] sm:$0xf]
  %v30 = vld [vmem:[%s1 + $0x2c] sm:$0xf]
  %v31 = vld [vmem:[%s1 + $0x30] sm:$0xf]
  %v32 = vld [vmem:[%s1 + $0x34] sm:$0xf]
  %v33 = vld [vmem:[%s1 + $0x38] sm:$0xf]
  %v34 = vld [vmem:[%s1 + $0x3c] sm:$0xf]
  %v35 = vld [vmem:[%s2] sm:$0x1]
  %v37 = vlaneseq
  %v38 = vshrl.u32 %v37, 7
  %v39 = vsub.s32 0, %v38
  %v40 = vrot.slane %v35, %v39
  %v46 = vunpack.c.l.b16 %v15
  %v47 = vunpack.c.l.b16 %v16
  %v48 = vunpack.c.l.b16 %v17
  %v49 = vunpack.c.l.b16 %v18
  %v50 = vpack.c.b16 %v47, %v46
  %v51 = vpack.c.b16 %v49, %v48
  %v70 = vunpack.c.l.b16 %v19
  %v71 = vunpack.c.l.b16 %v20
  %v72 = vunpack.c.l.b16 %v21
  %v73 = vunpack.c.l.b16 %v22
  %v74 = vunpack.c.l.b16 %v23
  %v75 = vunpack.c.l.b16 %v24
  %v76 = vunpack.c.l.b16 %v25
  %v77 = vunpack.c.l.b16 %v26
  %v78 = vunpack.c.l.b16 %v27
  %v79 = vunpack.c.l.b16 %v28
  %v80 = vunpack.c.l.b16 %v29
  %v81 = vunpack.c.l.b16 %v30
  %v82 = vunpack.c.l.b16 %v31
  %v83 = vunpack.c.l.b16 %v32
  %v84 = vunpack.c.l.b16 %v33
  %v85 = vunpack.c.l.b16 %v34
  %v86 = vpack.c.b16 %v71, %v70
  %v87 = vpack.c.b16 %v73, %v72
  %v88 = vpack.c.b16 %v75, %v74
  %v89 = vpack.c.b16 %v77, %v76
  %v90 = vpack.c.b16 %v79, %v78
  %v91 = vpack.c.b16 %v81, %v80
  %v92 = vpack.c.b16 %v83, %v82
  %v93 = vpack.c.b16 %v85, %v84
  %102 = vmatprep.subr.bf16.mxu0 0
  %103 = vmatpush1.bf16.msra.mxu0 %v86
  %104 = vmatprep.subr.bf16.mxu0 0
  %105 = vmatpush1.bf16.msra.mxu0 %v87
  %106 = vmatprep.subr.bf16.mxu0 0
  %107 = vmatpush1.bf16.msra.mxu0 %v88
  %108 = vmatprep.subr.bf16.mxu0 0
  %109 = vmatpush1.bf16.msra.mxu0 %v89
  %110 = vmatprep.subr.bf16.mxu0 0
  %111 = vmatpush1.bf16.msra.mxu0 %v90
  %112 = vmatprep.subr.bf16.mxu0 0
  %113 = vmatpush1.bf16.msra.mxu0 %v91
  %114 = vmatprep.subr.bf16.mxu0 0
  %115 = vmatpush1.bf16.msra.mxu0 %v92
  %116 = vmatprep.subr.bf16.mxu0 0
  %117 = vmatpush1.bf16.msra.mxu0 %v93
  %118 = vmatprep.subr.bf16.mxu0 0
  %119 = vmatpush1.bf16.msra.mxu0 0
  %120 = vmatprep.subr.bf16.mxu0 0
  %121 = vmatpush1.bf16.msra.mxu0 0
  %122 = vmatprep.subr.bf16.mxu0 0
  %123 = vmatpush1.bf16.msra.mxu0 0
  %124 = vmatprep.subr.bf16.mxu0 0
  %125 = vmatpush1.bf16.msra.mxu0 0
  %126 = vmatprep.subr.bf16.mxu0 0
  %127 = vmatpush1.bf16.msra.mxu0 0
  %128 = vmatprep.subr.bf16.mxu0 0
  %129 = vmatpush1.bf16.msra.mxu0 0
  %130 = vmatprep.subr.bf16.mxu0 0
  %131 = vmatpush1.bf16.msra.mxu0 0
  %132 = vmatprep.subr.bf16.mxu0 0
  %133 = vmatpush1.bf16.msra.mxu0 0
  %134 = vmatprep.mubr.bf16.mxu0 0
  %135 = vmatmul.mubr.bf16.gmra.mrb[0].mxu0 %v50
  %v136 = vpop.f32.mrb[0].mxu0
  %v137 = vadd.f32 %v40, %v136
  %v138 = vpop.f32.mrb[0].mxu0
  %v139 = vpop.f32.mrb[0].mxu0
  %v140 = vadd.f32 %v40, %v139
  %v141 = vpop.f32.mrb[0].mxu0
  %142 = vmatprep.mubr.bf16.mxu0 0
  %143 = vmatmul.mubr.bf16.gmra.mrb[0].mxu0 %v51
  %v144 = vpop.f32.mrb[0].mxu0
  %v145 = vadd.f32 %v40, %v144
  %v146 = vpop.f32.mrb[0].mxu0
  %v147 = vpop.f32.mrb[0].mxu0
  %v148 = vadd.f32 %v40, %v147
  %v149 = vpop.f32.mrb[0].mxu0
  %150 = vdwg.mxu0
  %151 = vst [vmem:[%s3] sm:$0xff] %v137
  %152 = vst [vmem:[%s3 + $0x8] sm:$0xff] %v140
  %153 = vst [vmem:[%s3 + $0x10] sm:$0xff] %v145
  %154 = vst [vmem:[%s3 + $0x18] sm:$0xff] %v148
  // Predicated region
  $region14: #{lstm_network_forward.9} parent=0 // pred_check
    _
  $region15: #{lstm_network_forward.9} parent=0 // pred_check_branch
    %156 = sbr.rel (0) target = $region17
  $region16: #{lstm_network_forward.9} parent=0 // pred_region
    _
  $region17: #{lstm_network_forward.9} parent=0 // pred_fallthru
    _
  // Predicated region
  $region18: #{lstm_network_forward.9} parent=0 // pred_check
    _
  $region19: #{lstm_network_forward.9} parent=0 // pred_check_branch
    %158 = sbr.rel (0) target = $region21
  $region20: #{lstm_network_forward.9} parent=0 // pred_region
    _
  $region21: #{lstm_network_forward.9} parent=0 // pred_fallthru
    _

// kernel: lstm_network_forward.6
$region0: #{lstm_network_forward.6}
  #allocation0 [shape = 'u32[]', space=smem, size = 0x4, offset = 0x4, fixed_abs, tag = 'smem constant byte address 0x4 - core index']
  #allocation1 [shape = 'u32[144,128]{1,0:T(1,128)}', space=vmem, size = 0x12000, scoped, tag = 'internal scratch']
  #allocation2 [shape = 'f32[2,128]{1,0:T(2,128)}', space=vmem, size = 0x400, scoped, tag = 'scratch operand']
  #allocation3 [shape = 'f32[2,128]{1,0:T(2,128)}', space=vmem, size = 0x400, scoped, tag = 'scratch operand']
  %s0 = inlined_call_operand.vmem [shape: f32[2,8192], index: 0, kind: input, shape index: {}]
  %s1 = inlined_call_operand.vmem [shape: bf16[128,512], index: 1, kind: input, shape index: {}]
  %s2 = inlined_call_operand.vmem [shape: f32[2,2048], index: 2, kind: output, shape index: {}]
  %s3 = sld [smem:[#allocation0]]
  $region45: #{lstm_network_forward.6} parent=0
    _
  %s5 = ssub.s32 1, %s3
  %s6 = scalar_select 0, %s5, %s3
  loop: start=0, step=1, limit=4
  $region2: #{lstm_network_forward.6} parent=0 // loop_pre_header
    _
  $region3: #{lstm_network_forward.6} parent=0 // loop_header
    %s8 = sphi 0, %s12
    %p9 = scmp.ge.s32.totalorder %s8, 4
    %s18 = sphi 0, %s20
    %s21 = sphi 0, %s18
    %s22 = sphi 0, %s21
    %s38 = sphi 0, %s22
    %s42 = sphi 0, %s42
    %s44 = sphi 0, %s42
    %s45 = sphi 0, %s44
    %s59 = sphi 0, %s45
    %s65 = sphi 0, %s67
    %s68 = sphi 0, %s65
    %s69 = sphi 0, %s68
    %s85 = sphi 0, %s69
  $region4: #{lstm_network_forward.6} parent=0 // loop_header_branch
    %11 = sbr.rel (%p9) target = $region8
  $region5: #{lstm_network_forward.6} parent=0 // loop_body
    %s13 = ssub.s32 %s8, 1
    %s14 = ssub.s32 %s8, 2
    %s15 = sadd.s32 %s8, 1
    %s16 = ssub.s32 %s8, %s15
    %p17 = scmp.eq.s32.totalorder %s16, 0
    %s19 = sadd.s32 %s18, 1
    %s20 = scalar_select %p17, %s18, %s19
    %p23 = pneg %p17
    %p24 = scmp.eq.s32.totalorder %s8, 1
    %p25 = por %p23, %p24
    %p26 = scmp.ne.s32.totalorder %s18, %s21
    %p27 = scmp.eq.s32.totalorder %s8, 0
    %p28 = por %p26, %p27
    %p29 = scmp.ne.s32.totalorder %s18, %s21
    %p30 = scmp.eq.s32.totalorder %s13, 1
    %p31 = por %p29, %p30
    %p32 = scmp.ne.s32.totalorder %s21, %s22
    %p33 = scmp.eq.s32.totalorder %s13, 0
    %p34 = por %p32, %p33
    %p35 = scmp.ne.s32.totalorder %s21, %s22
    %p36 = scmp.eq.s32.totalorder %s14, 1
    %p37 = por %p35, %p36
    %p39 = scmp.ne.s32.totalorder %s22, %s38
    %p40 = scmp.eq.s32.totalorder %s14, 0
    %p41 = por %p39, %p40
    %s43 = sadd.s32 %s42, 1
    %p46 = scmp.eq.s32.totalorder %s8, 1
    %p47 = scmp.ne.s32.totalorder %s42, %s44
    %p48 = scmp.eq.s32.totalorder %s8, 0
    %p49 = por %p47, %p48
    %p50 = scmp.ne.s32.totalorder %s42, %s44
    %p51 = scmp.eq.s32.totalorder %s13, 1
    %p52 = por %p50, %p51
    %p53 = scmp.ne.s32.totalorder %s44, %s45
    %p54 = scmp.eq.s32.totalorder %s13, 0
    %p55 = por %p53, %p54
    %p56 = scmp.ne.s32.totalorder %s44, %s45
    %p57 = scmp.eq.s32.totalorder %s14, 1
    %p58 = por %p56, %p57
    %p60 = scmp.ne.s32.totalorder %s45, %s59
    %p61 = scmp.eq.s32.totalorder %s14, 0
    %p62 = por %p60, %p61
    %s63 = ssub.s32 %s8, %s15
    %p64 = scmp.eq.s32.totalorder %s63, 0
    %s66 = sadd.s32 %s65, 1
    %s67 = scalar_select %p64, %s65, %s66
    %p70 = pneg %p64
    %p71 = scmp.eq.s32.totalorder %s8, 1
    %p72 = por %p70, %p71
    %p73 = scmp.ne.s32.totalorder %s65, %s68
    %p74 = scmp.eq.s32.totalorder %s8, 0
    %p75 = por %p73, %p74
    %p76 = scmp.ne.s32.totalorder %s65, %s68
    %p77 = scmp.eq.s32.totalorder %s13, 1
    %p78 = por %p76, %p77
    %p79 = scmp.ne.s32.totalorder %s68, %s69
    %p80 = scmp.eq.s32.totalorder %s13, 0
    %p81 = por %p79, %p80
    %p82 = scmp.ne.s32.totalorder %s68, %s69
    %p83 = scmp.eq.s32.totalorder %s14, 1
    %p84 = por %p82, %p83
    %p86 = scmp.ne.s32.totalorder %s69, %s85
    %p87 = scmp.eq.s32.totalorder %s14, 0
    %p88 = por %p86, %p87
    %p89 = scmp.le.s32.totalorder 1, %s8
    %p90 = scmp.lt.s32.totalorder %s8, 3
    %p91 = pnand %p89, %p90
    %p92 = pneg %p91
    // Predicated region
    $region9: #{lstm_network_forward.6} parent=5 // pred_check
      _
    $region10: #{lstm_network_forward.6} parent=5 // pred_check_branch
      %94 = sbr.rel (%p91) target = $region12
    $region11: #{lstm_network_forward.6} parent=5 // pred_region
      %s95 = ssub.s32 %s8, 1
      // Predicated region
      $region13: #{lstm_network_forward.6} parent=11 // pred_check
        %p96 = pneg %p55
      $region14: #{lstm_network_forward.6} parent=11 // pred_check_branch
        %98 = sbr.rel (%p96) target = $region16
      $region15: #{lstm_network_forward.6} parent=11 // pred_region
        _
      $region16: #{lstm_network_forward.6} parent=11 // pred_fallthru
        _
    $region12: #{lstm_network_forward.6} parent=5 // pred_fallthru
      _
    %p99 = scmp.lt.s32.totalorder %s8, 2
    // Predicated region
    $region17: #{lstm_network_forward.6} parent=5 // pred_check
      %p100 = pneg %p99
    $region18: #{lstm_network_forward.6} parent=5 // pred_check_branch
      %102 = sbr.rel (%p100) target = $region20
    $region19: #{lstm_network_forward.6} parent=5 // pred_region
      // Predicated region
      $region21: #{lstm_network_forward.6} parent=19 // pred_check
        %p103 = pneg %p28
      $region22: #{lstm_network_forward.6} parent=19 // pred_check_branch
        %105 = sbr.rel (%p103) target = $region24
      $region23: #{lstm_network_forward.6} parent=19 // pred_region
        %s106 = smul.u32 32, %s8
        %p107 = scmp.lt.s32.totalorder %s106, 63
        %s108 = scalar_select %p107, %s106, 63
        %s109 = smul.addr %s108, 2
        %s110 = scalar_lea.vmem %s0, %s109
        %s111 = smul.u32 32, %s8
      $region24: #{lstm_network_forward.6} parent=19 // pred_fallthru
        _
    $region20: #{lstm_network_forward.6} parent=5 // pred_fallthru
      _
    %p112 = scmp.le.s32.totalorder 1, %s8
    %p113 = scmp.lt.s32.totalorder %s8, 3
    %p114 = pnand %p112, %p113
    %p115 = pneg %p114
    // Predicated region
    $region25: #{lstm_network_forward.6} parent=5 // pred_check
      _
    $region26: #{lstm_network_forward.6} parent=5 // pred_check_branch
      %117 = sbr.rel (%p114) target = $region28
    $region27: #{lstm_network_forward.6} parent=5 // pred_region
      %s118 = ssub.s32 %s8, 1
      %s119 = smul.u32 32, %s13
      %p120 = scmp.lt.s32.totalorder %s119, 63
      %s121 = scalar_select %p120, %s119, 63
      %s122 = smul.addr %s121, 2
      %s123 = scalar_lea.vmem %s0, %s122
      %p124 = pneg %p34
      %p125 = pneg %p31
      %p126 = pneg %p55
      %p127 = pneg %p52
      %p128 = pneg %p81
      %p129 = pneg %p78
      %s130 = smul.u32 8, %s13
      %p131 = scmp.lt.s32.totalorder %s130, 15
      %s132 = scalar_select %p131, %s130, 15
      %s133 = smul.addr %s132, 2
      %s134 = scalar_lea.vmem %s2, %s133
      %s135 = smul.u32 32, %s13
      %p136 = scmp.lt.s32.totalorder %s135, 63
      %s137 = scalar_select %p136, %s135, 63
      %s138 = smul.addr %s137, 2
      %s139 = scalar_lea.vmem %s0, %s138
      %s140 = smul.u32 32, %s13
      %s141 = smul.u32 8, %s13
      %p142 = scmp.lt.s32.totalorder %s141, 15
      %s143 = scalar_select %p142, %s141, 15
      %s144 = smul.addr %s143, 2
      %s145 = scalar_lea.vmem %s2, %s144
      %s146 = smul.u32 8, %s13
      %p148 = scmp.eq.s32.totalorder %s13, 0
      // Predicated region
      $region29: #{lstm_network_forward.6} parent=27 // pred_check
        %p149 = pneg %p148
      $region30: #{lstm_network_forward.6} parent=27 // pred_check_branch
        %151 = sbr.rel (%p149) target = $region32
      $region31: #{lstm_network_forward.6} parent=27 // pred_region
        %152 = vst [vmem:[#allocation2] sm:$0x3] 0.0
        %153 = vst [vmem:[#allocation3] sm:$0x3] 0.0
      $region32: #{lstm_network_forward.6} parent=27 // pred_fallthru
        _
      %v154 = vld [vmem:[#allocation2] sm:$0x3]
      %v155 = vld [vmem:[#allocation3] sm:$0x3]
      %v156 = vld [vmem:[%s139] sm:$0xff]
      %v157 = vpack.c.bf16 %v154, %v154
      %v158 = vld [vmem:[%s1] sm:$0xff]
      %v159 = vld [vmem:[%s1 + $0x8] sm:$0xff]
      %v160 = vld [vmem:[%s1 + $0x10] sm:$0xff]
      %v161 = vld [vmem:[%s1 + $0x18] sm:$0xff]
      %v162 = vld [vmem:[%s1 + $0x20] sm:$0xff]
      %v163 = vld [vmem:[%s1 + $0x28] sm:$0xff]
      %v164 = vld [vmem:[%s1 + $0x30] sm:$0xff]
      %v165 = vld [vmem:[%s1 + $0x38] sm:$0xff]
      %v166 = vld [vmem:[%s1 + $0x40] sm:$0xff]
      %v167 = vld [vmem:[%s1 + $0x48] sm:$0xff]
      %v168 = vld [vmem:[%s1 + $0x50] sm:$0xff]
      %v169 = vld [vmem:[%s1 + $0x58] sm:$0xff]
      %v170 = vld [vmem:[%s1 + $0x60] sm:$0xff]
      %v171 = vld [vmem:[%s1 + $0x68] sm:$0xff]
      %v172 = vld [vmem:[%s1 + $0x70] sm:$0xff]
      %v173 = vld [vmem:[%s1 + $0x78] sm:$0xff]
      %v174 = vld [vmem:[%s1 + $0x80] sm:$0xff]
      %v175 = vld [vmem:[%s1 + $0x88] sm:$0xff]
      %v176 = vld [vmem:[%s1 + $0x90] sm:$0xff]
      %v177 = vld [vmem:[%s1 + $0x98] sm:$0xff]
      %v178 = vld [vmem:[%s1 + $0xa0] sm:$0xff]
      %v179 = vld [vmem:[%s1 + $0xa8] sm:$0xff]
      %v180 = vld [vmem:[%s1 + $0xb0] sm:$0xff]
      %v181 = vld [vmem:[%s1 + $0xb8] sm:$0xff]
      %v182 = vld [vmem:[%s1 + $0xc0] sm:$0xff]
      %v183 = vld [vmem:[%s1 + $0xc8] sm:$0xff]
      %v184 = vld [vmem:[%s1 + $0xd0] sm:$0xff]
      %v185 = vld [vmem:[%s1 + $0xd8] sm:$0xff]
      %v186 = vld [vmem:[%s1 + $0xe0] sm:$0xff]
      %v187 = vld [vmem:[%s1 + $0xe8] sm:$0xff]
      %v188 = vld [vmem:[%s1 + $0xf0] sm:$0xff]
      %v189 = vld [vmem:[%s1 + $0xf8] sm:$0xff]
      %v222 = vunpack.c.l.b16 %v158
      %v223 = vunpack.c.h.b16 %v158
      %v224 = vunpack.c.l.b16 %v159
      %v225 = vunpack.c.h.b16 %v159
      %v226 = vunpack.c.l.b16 %v160
      %v227 = vunpack.c.h.b16 %v160
      %v228 = vunpack.c.l.b16 %v161
      %v229 = vunpack.c.h.b16 %v161
      %v230 = vunpack.c.l.b16 %v162
      %v231 = vunpack.c.h.b16 %v162
      %v232 = vunpack.c.l.b16 %v163
      %v233 = vunpack.c.h.b16 %v163
      %v234 = vunpack.c.l.b16 %v164
      %v235 = vunpack.c.h.b16 %v164
      %v236 = vunpack.c.l.b16 %v165
      %v237 = vunpack.c.h.b16 %v165
      %v238 = vunpack.c.l.b16 %v166
      %v239 = vunpack.c.h.b16 %v166
      %v240 = vunpack.c.l.b16 %v167
      %v241 = vunpack.c.h.b16 %v167
      %v242 = vunpack.c.l.b16 %v168
      %v243 = vunpack.c.h.b16 %v168
      %v244 = vunpack.c.l.b16 %v169
      %v245 = vunpack.c.h.b16 %v169
      %v246 = vunpack.c.l.b16 %v170
      %v247 = vunpack.c.h.b16 %v170
      %v248 = vunpack.c.l.b16 %v171
      %v249 = vunpack.c.h.b16 %v171
      %v250 = vunpack.c.l.b16 %v172
      %v251 = vunpack.c.h.b16 %v172
      %v252 = vunpack.c.l.b16 %v173
      %v253 = vunpack.c.h.b16 %v173
      %v254 = vunpack.c.l.b16 %v174
      %v255 = vunpack.c.h.b16 %v174
      %v256 = vunpack.c.l.b16 %v175
      %v257 = vunpack.c.h.b16 %v175
      %v258 = vunpack.c.l.b16 %v176
      %v259 = vunpack.c.h.b16 %v176
      %v260 = vunpack.c.l.b16 %v177
      %v261 = vunpack.c.h.b16 %v177
      %v262 = vunpack.c.l.b16 %v178
      %v263 = vunpack.c.h.b16 %v178
      %v264 = vunpack.c.l.b16 %v179
      %v265 = vunpack.c.h.b16 %v179
      %v266 = vunpack.c.l.b16 %v180
      %v267 = vunpack.c.h.b16 %v180
      %v268 = vunpack.c.l.b16 %v181
      %v269 = vunpack.c.h.b16 %v181
      %v270 = vunpack.c.l.b16 %v182
      %v271 = vunpack.c.h.b16 %v182
      %v272 = vunpack.c.l.b16 %v183
      %v273 = vunpack.c.h.b16 %v183
      %v274 = vunpack.c.l.b16 %v184
      %v275 = vunpack.c.h.b16 %v184
      %v276 = vunpack.c.l.b16 %v185
      %v277 = vunpack.c.h.b16 %v185
      %v278 = vunpack.c.l.b16 %v186
      %v279 = vunpack.c.h.b16 %v186
      %v280 = vunpack.c.l.b16 %v187
      %v281 = vunpack.c.h.b16 %v187
      %v282 = vunpack.c.l.b16 %v188
      %v283 = vunpack.c.h.b16 %v188
      %v284 = vunpack.c.l.b16 %v189
      %v285 = vunpack.c.h.b16 %v189
      %v286 = vpack.c.b16 %v226, %v222
      %v287 = vpack.c.b16 %v227, %v223
      %v288 = vpack.c.b16 %v228, %v224
      %v289 = vpack.c.b16 %v229, %v225
      %v290 = vpack.c.b16 %v234, %v230
      %v291 = vpack.c.b16 %v235, %v231
      %v292 = vpack.c.b16 %v236, %v232
      %v293 = vpack.c.b16 %v237, %v233
      %v294 = vpack.c.b16 %v242, %v238
      %v295 = vpack.c.b16 %v243, %v239
      %v296 = vpack.c.b16 %v244, %v240
      %v297 = vpack.c.b16 %v245, %v241
      %v298 = vpack.c.b16 %v250, %v246
      %v299 = vpack.c.b16 %v251, %v247
      %v300 = vpack.c.b16 %v252, %v248
      %v301 = vpack.c.b16 %v253, %v249
      %v302 = vpack.c.b16 %v258, %v254
      %v303 = vpack.c.b16 %v259, %v255
      %v304 = vpack.c.b16 %v260, %v256
      %v305 = vpack.c.b16 %v261, %v257
      %v306 = vpack.c.b16 %v266, %v262
      %v307 = vpack.c.b16 %v267, %v263
      %v308 = vpack.c.b16 %v268, %v264
      %v309 = vpack.c.b16 %v269, %v265
      %v310 = vpack.c.b16 %v274, %v270
      %v311 = vpack.c.b16 %v275, %v271
      %v312 = vpack.c.b16 %v276, %v272
      %v313 = vpack.c.b16 %v277, %v273
      %v314 = vpack.c.b16 %v282, %v278
      %v315 = vpack.c.b16 %v283, %v279
      %v316 = vpack.c.b16 %v284, %v280
      %v317 = vpack.c.b16 %v285, %v281
      %350 = vmatprep.subr.bf16.mxu0 %v287
      %351 = vmatpush1.bf16.msra.mxu0 %v286
      %352 = vmatprep.subr.bf16.mxu0 %v291
      %353 = vmatpush1.bf16.msra.mxu0 %v290
      %354 = vmatprep.subr.bf16.mxu0 %v295
      %355 = vmatpush1.bf16.msra.mxu0 %v294
      %356 = vmatprep.subr.bf16.mxu0 %v299
      %357 = vmatpush1.bf16.msra.mxu0 %v298
      %358 = vmatprep.subr.bf16.mxu0 %v303
      %359 = vmatpush1.bf16.msra.mxu0 %v302
      %360 = vmatprep.subr.bf16.mxu0 %v307
      %361 = vmatpush1.bf16.msra.mxu0 %v306
      %362 = vmatprep.subr.bf16.mxu0 %v311
      %363 = vmatpush1.bf16.msra.mxu0 %v310
      %364 = vmatprep.subr.bf16.mxu0 %v315
      %365 = vmatpush1.bf16.msra.mxu0 %v314
      %366 = vmatprep.subr.bf16.mxu0 0
      %367 = vmatpush1.bf16.msra.mxu0 0
      %368 = vmatprep.subr.bf16.mxu0 0
      %369 = vmatpush1.bf16.msra.mxu0 0
      %370 = vmatprep.subr.bf16.mxu0 0
      %371 = vmatpush1.bf16.msra.mxu0 0
      %372 = vmatprep.subr.bf16.mxu0 0
      %373 = vmatpush1.bf16.msra.mxu0 0
      %374 = vmatprep.subr.bf16.mxu0 0
      %375 = vmatpush1.bf16.msra.mxu0 0
      %376 = vmatprep.subr.bf16.mxu0 0
      %377 = vmatpush1.bf16.msra.mxu0 0
      %378 = vmatprep.subr.bf16.mxu0 0
      %379 = vmatpush1.bf16.msra.mxu0 0
      %380 = vmatprep.subr.bf16.mxu0 0
      %381 = vmatpush1.bf16.msra.mxu0 0
      %382 = vmatprep.mubr.bf16.mxu0 0
      %383 = vmatmul.mubr.bf16.gmra.mrb[0].mxu0 %v157
      %v384 = vpop.f32.mrb[0].mxu0
      %v385 = vadd.f32 0.0, %v384
      %v386 = vpop.f32.mrb[0].mxu0
      %v387 = vadd.f32 0.0, %v386
      %v388 = vpop.f32.mrb[0].mxu0
      %v389 = vpop.f32.mrb[0].mxu0
      %390 = vdwg.mxu0
      %391 = vmatprep.subr.bf16.mxu0 %v289
      %392 = vmatpush1.bf16.msra.mxu0 %v288
      %393 = vmatprep.subr.bf16.mxu0 %v293
      %394 = vmatpush1.bf16.msra.mxu0 %v292
      %395 = vmatprep.subr.bf16.mxu0 %v297
      %396 = vmatpush1.bf16.msra.mxu0 %v296
      %397 = vmatprep.subr.bf16.mxu0 %v301
      %398 = vmatpush1.bf16.msra.mxu0 %v300
      %399 = vmatprep.subr.bf16.mxu0 %v305
      %400 = vmatpush1.bf16.msra.mxu0 %v304
      %401 = vmatprep.subr.bf16.mxu0 %v309
      %402 = vmatpush1.bf16.msra.mxu0 %v308
      %403 = vmatprep.subr.bf16.mxu0 %v313
      %404 = vmatpush1.bf16.msra.mxu0 %v312
      %405 = vmatprep.subr.bf16.mxu0 %v317
      %406 = vmatpush1.bf16.msra.mxu0 %v316
      %407 = vmatprep.subr.bf16.mxu0 0
      %408 = vmatpush1.bf16.msra.mxu0 0
      %409 = vmatprep.subr.bf16.mxu0 0
      %410 = vmatpush1.bf16.msra.mxu0 0
      %411 = vmatprep.subr.bf16.mxu0 0
      %412 = vmatpush1.bf16.msra.mxu0 0
      %413 = vmatprep.subr.bf16.mxu0 0
      %414 = vmatpush1.bf16.msra.mxu0 0
      %415 = vmatprep.subr.bf16.mxu0 0
      %416 = vmatpush1.bf16.msra.mxu0 0
      %417 = vmatprep.subr.bf16.mxu0 0
      %418 = vmatpush1.bf16.msra.mxu0 0
      %419 = vmatprep.subr.bf16.mxu0 0
      %420 = vmatpush1.bf16.msra.mxu0 0
      %421 = vmatprep.subr.bf16.mxu0 0
      %422 = vmatpush1.bf16.msra.mxu0 0
      %423 = vmatprep.mubr.bf16.mxu0 0
      %424 = vmatmul.mubr.bf16.gmra.mrb[0].mxu0 %v157
      %v425 = vpop.f32.mrb[0].mxu0
      %v426 = vadd.f32 0.0, %v425
      %v427 = vpop.f32.mrb[0].mxu0
      %v428 = vadd.f32 0.0, %v427
      %v429 = vpop.f32.mrb[0].mxu0
      %v430 = vpop.f32.mrb[0].mxu0
      %431 = vdwg.mxu0
      %v436 = vcombine.low %v385, %v387
      %v437 = vcombine.low %v426, %v428
      %v439 = vunpack.c.l.s4 1983009808
      %v440 = vunpack.c.0.s8 %v439
      %v441 = vlaneseq
      %v442 = vshrl.u32 %v441, 7
      %v443 = vsub.s32 %v440, %v442
      %v444 = vrot.slane %v436, %v443
      %v446 = vunpack.c.l.s4 1983009808
      %v447 = vunpack.c.0.s8 %v446
      %v448 = vlaneseq
      %v449 = vshrl.u32 %v448, 7
      %v450 = vsub.s32 %v447, %v449
      %v451 = vrot.slane %v437, %v450
      %v452 = vcombine.low %v444, %v451
      %v454 = vadd.f32 %v156, %v452
      %v455 = vxor.u32 %v454, 2147483648
      %v456 = vmul.f32 %v455, 1.442695
      %v457 = vpow.pop %v456
      %v458 = vadd.f32 %v457, 1.0
      %v459 = vrcp.pop %v458
      %v460 = vmul.f32 1.0, %v459
      %v462 = vrot.slane %v454, 2
      %v464 = vxor.u32 %v462, 2147483648
      %v465 = vmul.f32 %v464, 1.442695
      %v466 = vpow.pop %v465
      %v467 = vadd.f32 %v466, 1.0
      %v468 = vrcp.pop %v467
      %v469 = vmul.f32 1.0, %v468
      %v470 = vrot.slane %v454, 4
      %v472 = vtanh.pop %v470
      %v473 = vrot.slane %v454, 6
      %v475 = vxor.u32 %v473, 2147483648
      %v476 = vmul.f32 %v475, 1.442695
      %v477 = vpow.pop %v476
      %v478 = vadd.f32 %v477, 1.0
      %v479 = vrcp.pop %v478
      %v480 = vmul.f32 1.0, %v479
      %v481 = vmul.f32 %v469, %v155
      %v482 = vmul.f32 %v460, %v472
      %v483 = vadd.f32 %v481, %v482
      %v484 = vtanh.pop %v483
      %v485 = vmul.f32 %v480, %v484
      %486 = vst [vmem:[%s145] sm:$0x3] %v485
      %v487 = vld [vmem:[%s139 + $0x8] sm:$0xff]
      %v488 = vpack.c.bf16 %v485, %v485
      %v489 = vld [vmem:[%s1] sm:$0xff]
      %v490 = vld [vmem:[%s1 + $0x8] sm:$0xff]
      %v491 = vld [vmem:[%s1 + $0x10] sm:$0xff]
      %v492 = vld [vmem:[%s1 + $0x18] sm:$0xff]
      %v493 = vld [vmem:[%s1 + $0x20] sm:$0xff]
      %v494 = vld [vmem:[%s1 + $0x28] sm:$0xff]
      %v495 = vld [vmem:[%s1 + $0x30] sm:$0xff]
      %v496 = vld [vmem:[%s1 + $0x38] sm:$0xff]
      %v497 = vld [vmem:[%s1 + $0x40] sm:$0xff]
      %v498 = vld [vmem:[%s1 + $0x48] sm:$0xff]
      %v499 = vld [vmem:[%s1 + $0x50] sm:$0xff]
      %v500 = vld [vmem:[%s1 + $0x58] sm:$0xff]
      %v501 = vld [vmem:[%s1 + $0x60] sm:$0xff]
      %v502 = vld [vmem:[%s1 + $0x68] sm:$0xff]
      %v503 = vld [vmem:[%s1 + $0x70] sm:$0xff]
      %v504 = vld [vmem:[%s1 + $0x78] sm:$0xff]
      %v505 = vld [vmem:[%s1 + $0x80] sm:$0xff]
      %v506 = vld [vmem:[%s1 + $0x88] sm:$0xff]
      %v507 = vld [vmem:[%s1 + $0x90] sm:$0xff]
      %v508 = vld [vmem:[%s1 + $0x98] sm:$0xff]
      %v509 = vld [vmem:[%s1 + $0xa0] sm:$0xff]
      %v510 = vld [vmem:[%s1 + $0xa8] sm:$0xff]
      %v511 = vld [vmem:[%s1 + $0xb0] sm:$0xff]
      %v512 = vld [vmem:[%s1 + $0xb8] sm:$0xff]
      %v513 = vld [vmem:[%s1 + $0xc0] sm:$0xff]
      %v514 = vld [vmem:[%s1 + $0xc8] sm:$0xff]
      %v515 = vld [vmem:[%s1 + $0xd0] sm:$0xff]
      %v516 = vld [vmem:[%s1 + $0xd8] sm:$0xff]
      %v517 = vld [vmem:[%s1 + $0xe0] sm:$0xff]
      %v518 = vld [vmem:[%s1 + $0xe8] sm:$0xff]
      %v519 = vld [vmem:[%s1 + $0xf0] sm:$0xff]
      %v520 = vld [vmem:[%s1 + $0xf8] sm:$0xff]
      %v553 = vunpack.c.l.b16 %v489
      %v554 = vunpack.c.h.b16 %v489
      %v555 = vunpack.c.l.b16 %v490
      %v556 = vunpack.c.h.b16 %v490
      %v557 = vunpack.c.l.b16 %v491
      %v558 = vunpack.c.h.b16 %v491
      %v559 = vunpack.c.l.b16 %v492
      %v560 = vunpack.c.h.b16 %v492
      %v561 = vunpack.c.l.b16 %v493
      %v562 = vunpack.c.h.b16 %v493
      %v563 = vunpack.c.l.b16 %v494
      %v564 = vunpack.c.h.b16 %v494
      %v565 = vunpack.c.l.b16 %v495
      %v566 = vunpack.c.h.b16 %v495
      %v567 = vunpack.c.l.b16 %v496
      %v568 = vunpack.c.h.b16 %v496
      %v569 = vunpack.c.l.b16 %v497
      %v570 = vunpack.c.h.b16 %v497
      %v571 = vunpack.c.l.b16 %v498
      %v572 = vunpack.c.h.b16 %v498
      %v573 = vunpack.c.l.b16 %v499
      %v574 = vunpack.c.h.b16 %v499
      %v575 = vunpack.c.l.b16 %v500
      %v576 = vunpack.c.h.b16 %v500
      %v577 = vunpack.c.l.b16 %v501
      %v578 = vunpack.c.h.b16 %v501
      %v579 = vunpack.c.l.b16 %v502
      %v580 = vunpack.c.h.b16 %v502
      %v581 = vunpack.c.l.b16 %v503
      %v582 = vunpack.c.h.b16 %v503
      %v583 = vunpack.c.l.b16 %v504
      %v584 = vunpack.c.h.b16 %v504
      %v585 = vunpack.c.l.b16 %v505
      %v586 = vunpack.c.h.b16 %v505
      %v587 = vunpack.c.l.b16 %v506
      %v588 = vunpack.c.h.b16 %v506
      %v589 = vunpack.c.l.b16 %v507
      %v590 = vunpack.c.h.b16 %v507
      %v591 = vunpack.c.l.b16 %v508
      %v592 = vunpack.c.h.b16 %v508
      %v593 = vunpack.c.l.b16 %v509
      %v594 = vunpack.c.h.b16 %v509
      %v595 = vunpack.c.l.b16 %v510
      %v596 = vunpack.c.h.b16 %v510
      %v597 = vunpack.c.l.b16 %v511
      %v598 = vunpack.c.h.b16 %v511
      %v599 = vunpack.c.l.b16 %v512
      %v600 = vunpack.c.h.b16 %v512
      %v601 = vunpack.c.l.b16 %v513
      %v602 = vunpack.c.h.b16 %v513
      %v603 = vunpack.c.l.b16 %v514
      %v604 = vunpack.c.h.b16 %v514
      %v605 = vunpack.c.l.b16 %v515
      %v606 = vunpack.c.h.b16 %v515
      %v607 = vunpack.c.l.b16 %v516
      %v608 = vunpack.c.h.b16 %v516
      %v609 = vunpack.c.l.b16 %v517
      %v610 = vunpack.c.h.b16 %v517
      %v611 = vunpack.c.l.b16 %v518
      %v612 = vunpack.c.h.b16 %v518
      %v613 = vunpack.c.l.b16 %v519
      %v614 = vunpack.c.h.b16 %v519
      %v615 = vunpack.c.l.b16 %v520
      %v616 = vunpack.c.h.b16 %v520
      %v617 = vpack.c.b16 %v557, %v553
      %v618 = vpack.c.b16 %v558, %v554
      %v619 = vpack.c.b16 %v559, %v555
      %v620 = vpack.c.b16 %v560, %v556
      %v621 = vpack.c.b16 %v565, %v561
      %v622 = vpack.c.b16 %v566, %v562
      %v623 = vpack.c.b16 %v567, %v563
      %v624 = vpack.c.b16 %v568, %v564
      %v625 = vpack.c.b16 %v573, %v569
      %v626 = vpack.c.b16 %v574, %v570
      %v627 = vpack.c.b16 %v575, %v571
      %v628 = vpack.c.b16 %v576, %v572
      %v629 = vpack.c.b16 %v581, %v577
      %v630 = vpack.c.b16 %v582, %v578
      %v631 = vpack.c.b16 %v583, %v579
      %v632 = vpack.c.b16 %v584, %v580
      %v633 = vpack.c.b16 %v589, %v585
      %v634 = vpack.c.b16 %v590, %v586
      %v635 = vpack.c.b16 %v591, %v587
      %v636 = vpack.c.b16 %v592, %v588
      %v637 = vpack.c.b16 %v597, %v593
      %v638 = vpack.c.b16 %v598, %v594
      %v639 = vpack.c.b16 %v599, %v595
      %v640 = vpack.c.b16 %v600, %v596
      %v641 = vpack.c.b16 %v605, %v601
      %v642 = vpack.c.b16 %v606, %v602
      %v643 = vpack.c.b16 %v607, %v603
      %v644 = vpack.c.b16 %v608, %v604
      %v645 = vpack.c.b16 %v613, %v609
      %v646 = vpack.c.b16 %v614, %v610
      %v647 = vpack.c.b16 %v615, %v611
      %v648 = vpack.c.b16 %v616, %v612
      %681 = vmatprep.subr.bf16.mxu0 %v618
      %682 = vmatpush1.bf16.msra.mxu0 %v617
      %683 = vmatprep.subr.bf16.mxu0 %v622
      %684 = vmatpush1.bf16.msra.mxu0 %v621
      %685 = vmatprep.subr.bf16.mxu0 %v626
      %686 = vmatpush1.bf16.msra.mxu0 %v625
      %687 = vmatprep.subr.bf16.mxu0 %v630
      %688 = vmatpush1.bf16.msra.mxu0 %v629
      %689 = vmatprep.subr.bf16.mxu0 %v634
      %690 = vmatpush1.bf16.msra.mxu0 %v633
      %691 = vmatprep.subr.bf16.mxu0 %v638
      %692 = vmatpush1.bf16.msra.mxu0 %v637
      %693 = vmatprep.subr.bf16.mxu0 %v642
      %694 = vmatpush1.bf16.msra.mxu0 %v641
      %695 = vmatprep.subr.bf16.mxu0 %v646
      %696 = vmatpush1.bf16.msra.mxu0 %v645
      %697 = vmatprep.subr.bf16.mxu0 0
      %698 = vmatpush1.bf16.msra.mxu0 0
      %699 = vmatprep.subr.bf16.mxu0 0
      %700 = vmatpush1.bf16.msra.mxu0 0
      %701 = vmatprep.subr.bf16.mxu0 0
      %702 = vmatpush1.bf16.msra.mxu0 0
      %703 = vmatprep.subr.bf16.mxu0 0
      %704 = vmatpush1.bf16.msra.mxu0 0
      %705 = vmatprep.subr.bf16.mxu0 0
      %706 = vmatpush1.bf16.msra.mxu0 0
      %707 = vmatprep.subr.bf16.mxu0 0
      %708 = vmatpush1.bf16.msra.mxu0 0
      %709 = vmatprep.subr.bf16.mxu0 0
      %710 = vmatpush1.bf16.msra.mxu0 0
      %711 = vmatprep.subr.bf16.mxu0 0
      %712 = vmatpush1.bf16.msra.mxu0 0
      %713 = vmatprep.mubr.bf16.mxu0 0
      %714 = vmatmul.mubr.bf16.gmra.mrb[0].mxu0 %v488
      %v715 = vpop.f32.mrb[0].mxu0
      %v716 = vadd.f32 0.0, %v715
      %v717 = vpop.f32.mrb[0].mxu0
      %v718 = vadd.f32 0.0, %v717
      %v719 = vpop.f32.mrb[0].mxu0
      %v720 = vpop.f32.mrb[0].mxu0
      %721 = vdwg.mxu0
      %722 = vmatprep.subr.bf16.mxu0 %v620
      %723 = vmatpush1.bf16.msra.mxu0 %v619
      %724 = vmatprep.subr.bf16.mxu0 %v624
      %725 = vmatpush1.bf16.msra.mxu0 %v623
      %726 = vmatprep.subr.bf16.mxu0 %v628
      %727 = vmatpush1.bf16.msra.mxu0 %v627
      %728 = vmatprep.subr.bf16.mxu0 %v632
      %729 = vmatpush1.bf16.msra.mxu0 %v631
      %730 = vmatprep.subr.bf16.mxu0 %v636
      %731 = vmatpush1.bf16.msra.mxu0 %v635
      %732 = vmatprep.subr.bf16.mxu0 %v640
      %733 = vmatpush1.bf16.msra.mxu0 %v639
      %734 = vmatprep.subr.bf16.mxu0 %v644
      %735 = vmatpush1.bf16.msra.mxu0 %v643
      %736 = vmatprep.subr.bf16.mxu0 %v648
      %737 = vmatpush1.bf16.msra.mxu0 %v647
      %738 = vmatprep.subr.bf16.mxu0 0
      %739 = vmatpush1.bf16.msra.mxu0 0
      %740 = vmatprep.subr.bf16.mxu0 0
      %741 = vmatpush1.bf16.msra.mxu0 0
      %742 = vmatprep.subr.bf16.mxu0 0
      %743 = vmatpush1.bf16.msra.mxu0 0
      %744 = vmatprep.subr.bf16.mxu0 0
      %745 = vmatpush1.bf16.msra.mxu0 0
      %746 = vmatprep.subr.bf16.mxu0 0
      %747 = vmatpush1.bf16.msra.mxu0 0
      %748 = vmatprep.subr.bf16.mxu0 0
      %749 = vmatpush1.bf16.msra.mxu0 0
      %750 = vmatprep.subr.bf16.mxu0 0
      %751 = vmatpush1.bf16.msra.mxu0 0
      %752 = vmatprep.subr.bf16.mxu0 0
      %753 = vmatpush1.bf16.msra.mxu0 0
      %754 = vmatprep.mubr.bf16.mxu0 0
      %755 = vmatmul.mubr.bf16.gmra.mrb[0].mxu0 %v488
      %v756 = vpop.f32.mrb[0].mxu0
      %v757 = vadd.f32 0.0, %v756
      %v758 = vpop.f32.mrb[0].mxu0
      %v759 = vadd.f32 0.0, %v758
      %v760 = vpop.f32.mrb[0].mxu0
      %v761 = vpop.f32.mrb[0].mxu0
      %762 = vdwg.mxu0
      %v767 = vcombine.low %v716, %v718
      %v768 = vcombine.low %v757, %v759
      %v770 = vunpack.c.l.s4 1983009808
      %v771 = vunpack.c.0.s8 %v770
      %v772 = vlaneseq
      %v773 = vshrl.u32 %v772, 7
      %v774 = vsub.s32 %v771, %v773
      %v775 = vrot.slane %v767, %v774
      %v777 = vunpack.c.l.s4 1983009808
      %v778 = vunpack.c.0.s8 %v777
      %v779 = vlaneseq
      %v780 = vshrl.u32 %v779, 7
      %v781 = vsub.s32 %v778, %v780
      %v782 = vrot.slane %v768, %v781
      %v783 = vcombine.low %v775, %v782
      %v785 = vadd.f32 %v487, %v783
      %v786 = vxor.u32 %v785, 2147483648
      %v787 = vmul.f32 %v786, 1.442695
      %v788 = vpow.pop %v787
      %v789 = vadd.f32 %v788, 1.0
      %v790 = vrcp.pop %v789
      %v791 = vmul.f32 1.0, %v790
      %v793 = vrot.slane %v785, 2
      %v795 = vxor.u32 %v793, 2147483648
      %v796 = vmul.f32 %v795, 1.442695
      %v797 = vpow.pop %v796
      %v798 = vadd.f32 %v797, 1.0
      %v799 = vrcp.pop %v798
      %v800 = vmul.f32 1.0, %v799
      %v801 = vrot.slane %v785, 4
      %v803 = vtanh.pop %v801
      %v804 = vrot.slane %v785, 6
      %v806 = vxor.u32 %v804, 2147483648
      %v807 = vmul.f32 %v806, 1.442695
      %v808 = vpow.pop %v807
      %v809 = vadd.f32 %v808, 1.0
      %v810 = vrcp.pop %v809
      %v811 = vmul.f32 1.0, %v810
      %v812 = vmul.f32 %v800, %v483
      %v813 = vmul.f32 %v791, %v803
      %v814 = vadd.f32 %v812, %v813
      %v815 = vtanh.pop %v814
      %v816 = vmul.f32 %v811, %v815
      %817 = vst [vmem:[%s145 + $0x2] sm:$0x3] %v816
      %v818 = vld [vmem:[%s139 + $0x10] sm:$0xff]
      %v819 = vpack.c.bf16 %v816, %v816
      %v820 = vld [vmem:[%s1] sm:$0xff]
      %v821 = vld [vmem:[%s1 + $0x8] sm:$0xff]
      %v822 = vld [vmem:[%s1 + $0x10] sm:$0xff]
      %v823 = vld [vmem:[%s1 + $0x18] sm:$0xff]
      %v824 = vld [vmem:[%s1 + $0x20] sm:$0xff]
      %v825 = vld [vmem:[%s1 + $0x28] sm:$0xff]
      %v826 = vld [vmem:[%s1 + $0x30] sm:$0xff]
      %v827 = vld [vmem:[%s1 + $0x38] sm:$0xff]
      %v828 = vld [vmem:[%s1 + $0x40] sm:$0xff]
      %v829 = vld [vmem:[%s1 + $0x48] sm:$0xff]
      %v830 = vld [vmem:[%s1 + $0x50] sm:$0xff]
      %v831 = vld [vmem:[%s1 + $0x58] sm:$0xff]
      %v832 = vld [vmem:[%s1 + $0x60] sm:$0xff]
      %v833 = vld [vmem:[%s1 + $0x68] sm:$0xff]
      %v834 = vld [vmem:[%s1 + $0x70] sm:$0xff]
      %v835 = vld [vmem:[%s1 + $0x78] sm:$0xff]
      %v836 = vld [vmem:[%s1 + $0x80] sm:$0xff]
      %v837 = vld [vmem:[%s1 + $0x88] sm:$0xff]
      %v838 = vld [vmem:[%s1 + $0x90] sm:$0xff]
      %v839 = vld [vmem:[%s1 + $0x98] sm:$0xff]
      %v840 = vld [vmem:[%s1 + $0xa0] sm:$0xff]
      %v841 = vld [vmem:[%s1 + $0xa8] sm:$0xff]
      %v842 = vld [vmem:[%s1 + $0xb0] sm:$0xff]
      %v843 = vld [vmem:[%s1 + $0xb8] sm:$0xff]
      %v844 = vld [vmem:[%s1 + $0xc0] sm:$0xff]
      %v845 = vld [vmem:[%s1 + $0xc8] sm:$0xff]
      %v846 = vld [vmem:[%s1 + $0xd0] sm:$0xff]
      %v847 = vld [vmem:[%s1 + $0xd8] sm:$0xff]
      %v848 = vld [vmem:[%s1 + $0xe0] sm:$0xff]
      %v849 = vld [vmem:[%s1 + $0xe8] sm:$0xff]
      %v850 = vld [vmem:[%s1 + $0xf0] sm:$0xff]
      %v851 = vld [vmem:[%s1 + $0xf8] sm:$0xff]
      %v884 = vunpack.c.l.b16 %v820
      %v885 = vunpack.c.h.b16 %v820
      %v886 = vunpack.c.l.b16 %v821
      %v887 = vunpack.c.h.b16 %v821
      %v888 = vunpack.c.l.b16 %v822
      %v889 = vunpack.c.h.b16 %v822
      %v890 = vunpack.c.l.b16 %v823
      %v891 = vunpack.c.h.b16 %v823
      %v892 = vunpack.c.l.b16 %v824
      %v893 = vunpack.c.h.b16 %v824
      %v894 = vunpack.c.l.b16 %v825
      %v895 = vunpack.c.h.b16 %v825
      %v896 = vunpack.c.l.b16 %v826
      %v897 = vunpack.c.h.b16 %v826
      %v898 = vunpack.c.l.b16 %v827
      %v899 = vunpack.c.h.b16 %v827
      %v900 = vunpack.c.l.b16 %v828
      %v901 = vunpack.c.h.b16 %v828
      %v902 = vunpack.c.l.b16 %v829
      %v903 = vunpack.c.h.b16 %v829
      %v904 = vunpack.c.l.b16 %v830
      %v905 = vunpack.c.h.b16 %v830
      %v906 = vunpack.c.l.b16 %v831
      %v907 = vunpack.c.h.b16 %v831
      %v908 = vunpack.c.l.b16 %v832
      %v909 = vunpack.c.h.b16 %v832
      %v910 = vunpack.c.l.b16 %v833
      %v911 = vunpack.c.h.b16 %v833
      %v912 = vunpack.c.l.b16 %v834
      %v913 = vunpack.c.h.b16 %v834
      %v914 = vunpack.c.l.b16 %v835
      %v915 = vunpack.c.h.b16 %v835
      %v916 = vunpack.c.l.b16 %v836
      %v917 = vunpack.c.h.b16 %v836
      %v918 = vunpack.c.l.b16 %v837
      %v919 = vunpack.c.h.b16 %v837
      %v920 = vunpack.c.l.b16 %v838
      %v921 = vunpack.c.h.b16 %v838
      %v922 = vunpack.c.l.b16 %v839
      %v923 = vunpack.c.h.b16 %v839
      %v924 = vunpack.c.l.b16 %v840
      %v925 = vunpack.c.h.b16 %v840
      %v926 = vunpack.c.l.b16 %v841
      %v927 = vunpack.c.h.b16 %v841
      %v928 = vunpack.c.l.b16 %v842
      %v929 = vunpack.c.h.b16 %v842
      %v930 = vunpack.c.l.b16 %v843
      %v931 = vunpack.c.h.b16 %v843
      %v932 = vunpack.c.l.b16 %v844
      %v933 = vunpack.c.h.b16 %v844
      %v934 = vunpack.c.l.b16 %v845
      %v935 = vunpack.c.h.b16 %v845
      %v936 = vunpack.c.l.b16 %v846
      %v937 = vunpack.c.h.b16 %v846
      %v938 = vunpack.c.l.b16 %v847
      %v939 = vunpack.c.h.b16 %v847
      %v940 = vunpack.c.l.b16 %v848
      %v941 = vunpack.c.h.b16 %v848
      %v942 = vunpack.c.l.b16 %v849
      %v943 = vunpack.c.h.b16 %v849
      %v944 = vunpack.c.l.b16 %v850
      %v945 = vunpack.c.h.b16 %v850
      %v946 = vunpack.c.l.b16 %v851
      %v947 = vunpack.c.h.b16 %v851
      %v948 = vpack.c.b16 %v888, %v884
      %v949 = vpack.c.b16 %v889, %v885
      %v950 = vpack.c.b16 %v890, %v886
      %v951 = vpack.c.b16 %v891, %v887
      %v952 = vpack.c.b16 %v896, %v892
      %v953 = vpack.c.b16 %v897, %v893
      %v954 = vpack.c.b16 %v898, %v894
      %v955 = vpack.c.b16 %v899, %v895
      %v956 = vpack.c.b16 %v904, %v900
      %v957 = vpack.c.b16 %v905, %v901
      %v958 = vpack.c.b16 %v906, %v902
      %v959 = vpack.c.b16 %v907, %v903
      %v960 = vpack.c.b16 %v912, %v908
      %v961 = vpack.c.b16 %v913, %v909
      %v962 = vpack.c.b16 %v914, %v910
      %v963 = vpack.c.b16 %v915, %v911
      %v964 = vpack.c.b16 %v920, %v916
      %v965 = vpack.c.b16 %v921, %v917
      %v966 = vpack.c.b16 %v922, %v918
      %v967 = vpack.c.b16 %v923, %v919
      %v968 = vpack.c.b16 %v928, %v924
      %v969 = vpack.c.b16 %v929, %v925
      %v970 = vpack.c.b16 %v930, %v926
      %v971 = vpack.c.b16 %v931, %v927
      %v972 = vpack.c.b16 %v936, %v932
      %v973 = vpack.c.b16 %v937, %v933
      %v974 = vpack.c.b16 %v938, %v934
      %v975 = vpack.c.b16 %v939, %v935
      %v976 = vpack.c.b16 %v944, %v940
      %v977 = vpack.c.b16 %v945, %v941
      %v978 = vpack.c.b16 %v946, %v942
      %v979 = vpack.c.b16 %v947, %v943
      %1012 = vmatprep.subr.bf16.mxu0 %v949
      %1013 = vmatpush1.bf16.msra.mxu0 %v948
      %1014 = vmatprep.subr.bf16.mxu0 %v953
      %1015 = vmatpush1.bf16.msra.mxu0 %v952
      %1016 = vmatprep.subr.bf16.mxu0 %v957
      %1017 = vmatpush1.bf16.msra.mxu0 %v956
      %1018 = vmatprep.subr.bf16.mxu0 %v961
      %1019 = vmatpush1.bf16.msra.mxu0 %v960
      %1020 = vmatprep.subr.bf16.mxu0 %v965
      %1021 = vmatpush1.bf16.msra.mxu0 %v964
      %1022 = vmatprep.subr.bf16.mxu0 %v969
      %1023 = vmatpush1.bf16.msra.mxu0 %v968
      %1024 = vmatprep.subr.bf16.mxu0 %v973
      %1025 = vmatpush1.bf16.msra.mxu0 %v972
      %1026 = vmatprep.subr.bf16.mxu0 %v977
      %1027 = vmatpush1.bf16.msra.mxu0 %v976
      %1028 = vmatprep.subr.bf16.mxu0 0
      %1029 = vmatpush1.bf16.msra.mxu0 0
      %1030 = vmatprep.subr.bf16.mxu0 0
      %1031 = vmatpush1.bf16.msra.mxu0 0
      %1032 = vmatprep.subr.bf16.mxu0 0
      %1033 = vmatpush1.bf16.msra.mxu0 0
      %1034 = vmatprep.subr.bf16.mxu0 0
      %1035 = vmatpush1.bf16.msra.mxu0 0
      %1036 = vmatprep.subr.bf16.mxu0 0
      %1037 = vmatpush1.bf16.msra.mxu0 0
      %1038 = vmatprep.subr.bf16.mxu0 0
      %1039 = vmatpush1.bf16.msra.mxu0 0
      %1040 = vmatprep.subr.bf16.mxu0 0
      %1041 = vmatpush1.bf16.msra.mxu0 0
      %1042 = vmatprep.subr.bf16.mxu0 0
      %1043 = vmatpush1.bf16.msra.mxu0 0
      %1044 = vmatprep.mubr.bf16.mxu0 0
      %1045 = vmatmul.mubr.bf16.gmra.mrb[0].mxu0 %v819
      %v1046 = vpop.f32.mrb[0].mxu0
      %v1047 = vadd.f32 0.0, %v1046
      %v1048 = vpop.f32.mrb[0].mxu0
      %v1049 = vadd.f32 0.0, %v1048
      %v1050 = vpop.f32.mrb[0].mxu0
      %v1051 = vpop.f32.mrb[0].mxu0
      %1052 = vdwg.mxu0
      %1053 = vmatprep.subr.bf16.mxu0 %v951
      %1054 = vmatpush1.bf16.msra.mxu0 %v950
      %1055 = vmatprep.subr.bf16.mxu0 %v955
      %1056 = vmatpush1.bf16.msra.mxu0 %v954
      %1057 = vmatprep.subr.bf16.mxu0 %v959
      %1058 = vmatpush1.bf16.msra.mxu0 %v958
      %1059 = vmatprep.subr.bf16.mxu0 %v963
      %1060 = vmatpush1.bf16.msra.mxu0 %v962
      %1061 = vmatprep.subr.bf16.mxu0 %v967
      %1062 = vmatpush1.bf16.msra.mxu0 %v966
      %1063 = vmatprep.subr.bf16.mxu0 %v971
      %1064 = vmatpush1.bf16.msra.mxu0 %v970
      %1065 = vmatprep.subr.bf16.mxu0 %v975
      %1066 = vmatpush1.bf16.msra.mxu0 %v974
      %1067 = vmatprep.subr.bf16.mxu0 %v979
      %1068 = vmatpush1.bf16.msra.mxu0 %v978
      %1069 = vmatprep.subr.bf16.mxu0 0
      %1070 = vmatpush1.bf16.msra.mxu0 0
      %1071 = vmatprep.subr.bf16.mxu0 0
      %1072 = vmatpush1.bf16.msra.mxu0 0
      %1073 = vmatprep.subr.bf16.mxu0 0
      %1074 = vmatpush1.bf16.msra.mxu0 0
      %1075 = vmatprep.subr.bf16.mxu0 0
      %1076 = vmatpush1.bf16.msra.mxu0 0
      %1077 = vmatprep.subr.bf16.mxu0 0
      %1078 = vmatpush1.bf16.msra.mxu0 0
      %1079 = vmatprep.subr.bf16.mxu0 0
      %1080 = vmatpush1.bf16.msra.mxu0 0
      %1081 = vmatprep.subr.bf16.mxu0 0
      %1082 = vmatpush1.bf16.msra.mxu0 0
      %1083 = vmatprep.subr.bf16.mxu0 0
      %1084 = vmatpush1.bf16.msra.mxu0 0
      %1085 = vmatprep.mubr.bf16.mxu0 0
      %1086 = vmatmul.mubr.bf16.gmra.mrb[0].mxu0 %v819
      %v1087 = vpop.f32.mrb[0].mxu0
      %v1088 = vadd.f32 0.0, %v1087
      %v1089 = vpop.f32.mrb[0].mxu0
      %v1090 = vadd.f32 0.0, %v1089
      %v1091 = vpop.f32.mrb[0].mxu0
      %v1092 = vpop.f32.mrb[0].mxu0
      %1093 = vdwg.mxu0
      %v1098 = vcombine.low %v1047, %v1049
      %v1099 = vcombine.low %v1088, %v1090
      %v1101 = vunpack.c.l.s4 1983009808
      %v1102 = vunpack.c.0.s8 %v1101
      %v1103 = vlaneseq
      %v1104 = vshrl.u32 %v1103, 7
      %v1105 = vsub.s32 %v1102, %v1104
      %v1106 = vrot.slane %v1098, %v1105
      %v1108 = vunpack.c.l.s4 1983009808
      %v1109 = vunpack.c.0.s8 %v1108
      %v1110 = vlaneseq
      %v1111 = vshrl.u32 %v1110, 7
      %v1112 = vsub.s32 %v1109, %v1111
      %v1113 = vrot.slane %v1099, %v1112
      %v1114 = vcombine.low %v1106, %v1113
      %v1116 = vadd.f32 %v818, %v1114
      %v1117 = vxor.u32 %v1116, 2147483648
      %v1118 = vmul.f32 %v1117, 1.442695
      %v1119 = vpow.pop %v1118
      %v1120 = vadd.f32 %v1119, 1.0
      %v1121 = vrcp.pop %v1120
      %v1122 = vmul.f32 1.0, %v1121
      %v1124 = vrot.slane %v1116, 2
      %v1126 = vxor.u32 %v1124, 2147483648
      %v1127 = vmul.f32 %v1126, 1.442695
      %v1128 = vpow.pop %v1127
      %v1129 = vadd.f32 %v1128, 1.0
      %v1130 = vrcp.pop %v1129
      %v1131 = vmul.f32 1.0, %v1130
      %v1132 = vrot.slane %v1116, 4
      %v1134 = vtanh.pop %v1132
      %v1135 = vrot.slane %v1116, 6
      %v1137 = vxor.u32 %v1135, 2147483648
      %v1138 = vmul.f32 %v1137, 1.442695
      %v1139 = vpow.pop %v1138
      %v1140 = vadd.f32 %v1139, 1.0
      %v1141 = vrcp.pop %v1140
      %v1142 = vmul.f32 1.0, %v1141
      %v1143 = vmul.f32 %v1131, %v814
      %v1144 = vmul.f32 %v1122, %v1134
      %v1145 = vadd.f32 %v1143, %v1144
      %v1146 = vtanh.pop %v1145
      %v1147 = vmul.f32 %v1142, %v1146
      %1148 = vst [vmem:[%s145 + $0x4] sm:$0x3] %v1147
      %v1149 = vld [vmem:[%s139 + $0x18] sm:$0xff]
      %v1150 = vpack.c.bf16 %v1147, %v1147
      %v1151 = vld [vmem:[%s1] sm:$0xff]
      %v1152 = vld [vmem:[%s1 + $0x8] sm:$0xff]
      %v1153 = vld [vmem:[%s1 + $0x10] sm:$0xff]
      %v1154 = vld [vmem:[%s1 + $0x18] sm:$0xff]
      %v1155 = vld [vmem:[%s1 + $0x20] sm:$0xff]
      %v1156 = vld [vmem:[%s1 + $0x28] sm:$0xff]
      %v1157 = vld [vmem:[%s1 + $0x30] sm:$0xff]
      %v1158 = vld [vmem:[%s1 + $0x38] sm:$0xff]
      %v1159 = vld [vmem:[%s1 + $0x40] sm:$0xff]
      %v1160 = vld [vmem:[%s1 + $0x48] sm:$0xff]
      %v1161 = vld [vmem:[%s1 + $0x50] sm:$0xff]
      %v1162 = vld [vmem:[%s1 + $0x58] sm:$0xff]
      %v1163 = vld [vmem:[%s1 + $0x60] sm:$0xff]
      %v1164 = vld [vmem:[%s1 + $0x68] sm:$0xff]
      %v1165 = vld [vmem:[%s1 + $0x70] sm:$0xff]
      %v1166 = vld [vmem:[%s1 + $0x78] sm:$0xff]
      %v1167 = vld [vmem:[%s1 + $0x80] sm:$0xff]
      %v1168 = vld [vmem:[%s1 + $0x88] sm:$0xff]
      %v1169 = vld [vmem:[%s1 + $0x90] sm:$0xff]
      %v1170 = vld [vmem:[%s1 + $0x98] sm:$0xff]
      %v1171 = vld [vmem:[%s1 + $0xa0] sm:$0xff]
      %v1172 = vld [vmem:[%s1 + $0xa8] sm:$0xff]
      %v1173 = vld [vmem:[%s1 + $0xb0] sm:$0xff]
      %v1174 = vld [vmem:[%s1 + $0xb8] sm:$0xff]
      %v1175 = vld [vmem:[%s1 + $0xc0] sm:$0xff]
      %v1176 = vld [vmem:[%s1 + $0xc8] sm:$0xff]
      %v1177 = vld [vmem:[%s1 + $0xd0] sm:$0xff]
      %v1178 = vld [vmem:[%s1 + $0xd8] sm:$0xff]
      %v1179 = vld [vmem:[%s1 + $0xe0] sm:$0xff]
      %v1180 = vld [vmem:[%s1 + $0xe8] sm:$0xff]
      %v1181 = vld [vmem:[%s1 + $0xf0] sm:$0xff]
      %v1182 = vld [vmem:[%s1 + $0xf8] sm:$0xff]
      %v1215 = vunpack.c.l.b16 %v1151
      %v1216 = vunpack.c.h.b16 %v1151
      %v1217 = vunpack.c.l.b16 %v1152
      %v1218 = vunpack.c.h.b16 %v1152
      %v1219 = vunpack.c.l.b16 %v1153
      %v1220 = vunpack.c.h.b16 %v1153
      %v1221 = vunpack.c.l.b16 %v1154
      %v1222 = vunpack.c.h.b16 %v1154
      %v1223 = vunpack.c.l.b16 %v1155
      %v1224 = vunpack.c.h.b16 %v1155
      %v1225 = vunpack.c.l.b16 %v1156
      %v1226 = vunpack.c.h.b16 %v1156
      %v1227 = vunpack.c.l.b16 %v1157
      %v1228 = vunpack.c.h.b16 %v1157
      %v1229 = vunpack.c.l.b16 %v1158
      %v1230 = vunpack.c.h.b16 %v1158
      %v1231 = vunpack.c.l.b16 %v1159
      %v1232 = vunpack.c.h.b16 %v1159
      %v1233 = vunpack.c.l.b16 %v1160
      %v1234 = vunpack.c.h.b16 %v1160
      %v1235 = vunpack.c.l.b16 %v1161
      %v1236 = vunpack.c.h.b16 %v1161
      %v1237 = vunpack.c.l.b16 %v1162
      %v1238 = vunpack.c.h.b16 %v1162
      %v1239 = vunpack.c.l.b16 %v1163
      %v1240 = vunpack.c.h.b16 %v1163
      %v1241 = vunpack.c.l.b16 %v1164
      %v1242 = vunpack.c.h.b16 %v1164
      %v1243 = vunpack.c.l.b16 %v1165
      %v1244 = vunpack.c.h.b16 %v1165
      %v1245 = vunpack.c.l.b16 %v1166
      %v1246 = vunpack.c.h.b16 %v1166
      %v1247 = vunpack.c.l.b16 %v1167
      %v1248 = vunpack.c.h.b16 %v1167
      %v1249 = vunpack.c.l.b16 %v1168
      %v1250 = vunpack.c.h.b16 %v1168
      %v1251 = vunpack.c.l.b16 %v1169
      %v1252 = vunpack.c.h.b16 %v1169
      %v1253 = vunpack.c.l.b16 %v1170
      %v1254 = vunpack.c.h.b16 %v1170
      %v1255 = vunpack.c.l.b16 %v1171
      %v1256 = vunpack.c.h.b16 %v1171
      %v1257 = vunpack.c.l.b16 %v1172
      %v1258 = vunpack.c.h.b16 %v1172
      %v1259 = vunpack.c.l.b16 %v1173
      %v1260 = vunpack.c.h.b16 %v1173
      %v1261 = vunpack.c.l.b16 %v1174
      %v1262 = vunpack.c.h.b16 %v1174
      %v1263 = vunpack.c.l.b16 %v1175
      %v1264 = vunpack.c.h.b16 %v1175
      %v1265 = vunpack.c.l.b16 %v1176
      %v1266 = vunpack.c.h.b16 %v1176
      %v1267 = vunpack.c.l.b16 %v1177
      %v1268 = vunpack.c.h.b16 %v1177
      %v1269 = vunpack.c.l.b16 %v1178
      %v1270 = vunpack.c.h.b16 %v1178
      %v1271 = vunpack.c.l.b16 %v1179
      %v1272 = vunpack.c.h.b16 %v1179
      %v1273 = vunpack.c.l.b16 %v1180
      %v1274 = vunpack.c.h.b16 %v1180
      %v1275 = vunpack.c.l.b16 %v1181
      %v1276 = vunpack.c.h.b16 %v1181
      %v1277 = vunpack.c.l.b16 %v1182
      %v1278 = vunpack.c.h.b16 %v1182
      %v1279 = vpack.c.b16 %v1219, %v1215
      %v1280 = vpack.c.b16 %v1220, %v1216
      %v1281 = vpack.c.b16 %v1221, %v1217
      %v1282 = vpack.c.b16 %v1222, %v1218
      %v1283 = vpack.c.b16 %v1227, %v1223
      %v1284 = vpack.c.b16 %v1228, %v1224
      %v1285 = vpack.c.b16 %v1229, %v1225
      %v1286 = vpack.c.b16 %v1230, %v1226
      %v1287 = vpack.c.b16 %v1235, %v1231
      %v1288 = vpack.c.b16 %v1236, %v1232
      %v1289 = vpack.c.b16 %v1237, %v1233
      %v1290 = vpack.c.b16 %v1238, %v1234
      %v1291 = vpack.c.b16 %v1243, %v1239
      %v1292 = vpack.c.b16 %v1244, %v1240
      %v1293 = vpack.c.b16 %v1245, %v1241
      %v1294 = vpack.c.b16 %v1246, %v1242
      %v1295 = vpack.c.b16 %v1251, %v1247
      %v1296 = vpack.c.b16 %v1252, %v1248
      %v1297 = vpack.c.b16 %v1253, %v1249
      %v1298 = vpack.c.b16 %v1254, %v1250
      %v1299 = vpack.c.b16 %v1259, %v1255
      %v1300 = vpack.c.b16 %v1260, %v1256
      %v1301 = vpack.c.b16 %v1261, %v1257
      %v1302 = vpack.c.b16 %v1262, %v1258
      %v1303 = vpack.c.b16 %v1267, %v1263
      %v1304 = vpack.c.b16 %v1268, %v1264
      %v1305 = vpack.c.b16 %v1269, %v1265
      %v1306 = vpack.c.b16 %v1270, %v1266
      %v1307 = vpack.c.b16 %v1275, %v1271
      %v1308 = vpack.c.b16 %v1276, %v1272
      %v1309 = vpack.c.b16 %v1277, %v1273
      %v1310 = vpack.c.b16 %v1278, %v1274
      %1343 = vmatprep.subr.bf16.mxu0 %v1280
      %1344 = vmatpush1.bf16.msra.mxu0 %v1279
      %1345 = vmatprep.subr.bf16.mxu0 %v1284
      %1346 = vmatpush1.bf16.msra.mxu0 %v1283
      %1347 = vmatprep.subr.bf16.mxu0 %v1288
      %1348 = vmatpush1.bf16.msra.mxu0 %v1287
      %1349 = vmatprep.subr.bf16.mxu0 %v1292
      %1350 = vmatpush1.bf16.msra.mxu0 %v1291
      %1351 = vmatprep.subr.bf16.mxu0 %v1296
      %1352 = vmatpush1.bf16.msra.mxu0 %v1295
      %1353 = vmatprep.subr.bf16.mxu0 %v1300
      %1354 = vmatpush1.bf16.msra.mxu0 %v1299
      %1355 = vmatprep.subr.bf16.mxu0 %v1304
      %1356 = vmatpush1.bf16.msra.mxu0 %v1303
      %1357 = vmatprep.subr.bf16.mxu0 %v1308
      %1358 = vmatpush1.bf16.msra.mxu0 %v1307
      %1359 = vmatprep.subr.bf16.mxu0 0
      %1360 = vmatpush1.bf16.msra.mxu0 0
      %1361 = vmatprep.subr.bf16.mxu0 0
      %1362 = vmatpush1.bf16.msra.mxu0 0
      %1363 = vmatprep.subr.bf16.mxu0 0
      %1364 = vmatpush1.bf16.msra.mxu0 0
      %1365 = vmatprep.subr.bf16.mxu0 0
      %1366 = vmatpush1.bf16.msra.mxu0 0
      %1367 = vmatprep.subr.bf16.mxu0 0
      %1368 = vmatpush1.bf16.msra.mxu0 0
      %1369 = vmatprep.subr.bf16.mxu0 0
      %1370 = vmatpush1.bf16.msra.mxu0 0
      %1371 = vmatprep.subr.bf16.mxu0 0
      %1372 = vmatpush1.bf16.msra.mxu0 0
      %1373 = vmatprep.subr.bf16.mxu0 0
      %1374 = vmatpush1.bf16.msra.mxu0 0
      %1375 = vmatprep.mubr.bf16.mxu0 0
      %1376 = vmatmul.mubr.bf16.gmra.mrb[0].mxu0 %v1150
      %v1377 = vpop.f32.mrb[0].mxu0
      %v1378 = vadd.f32 0.0, %v1377
      %v1379 = vpop.f32.mrb[0].mxu0
      %v1380 = vadd.f32 0.0, %v1379
      %v1381 = vpop.f32.mrb[0].mxu0
      %v1382 = vpop.f32.mrb[0].mxu0
      %1383 = vdwg.mxu0
      %1384 = vmatprep.subr.bf16.mxu0 %v1282
      %1385 = vmatpush1.bf16.msra.mxu0 %v1281
      %1386 = vmatprep.subr.bf16.mxu0 %v1286
      %1387 = vmatpush1.bf16.msra.mxu0 %v1285
      %1388 = vmatprep.subr.bf16.mxu0 %v1290
      %1389 = vmatpush1.bf16.msra.mxu0 %v1289
      %1390 = vmatprep.subr.bf16.mxu0 %v1294
      %1391 = vmatpush1.bf16.msra.mxu0 %v1293
      %1392 = vmatprep.subr.bf16.mxu0 %v1298
      %1393 = vmatpush1.bf16.msra.mxu0 %v1297
      %1394 = vmatprep.subr.bf16.mxu0 %v1302
      %1395 = vmatpush1.bf16.msra.mxu0 %v1301
      %1396 = vmatprep.subr.bf16.mxu0 %v1306
      %1397 = vmatpush1.bf16.msra.mxu0 %v1305
      %1398 = vmatprep.subr.bf16.mxu0 %v1310
      %1399 = vmatpush1.bf16.msra.mxu0 %v1309
      %1400 = vmatprep.subr.bf16.mxu0 0
      %1401 = vmatpush1.bf16.msra.mxu0 0
      %1402 = vmatprep.subr.bf16.mxu0 0
      %1403 = vmatpush1.bf16.msra.mxu0 0
      %1404 = vmatprep.subr.bf16.mxu0 0
      %1405 = vmatpush1.bf16.msra.mxu0 0
      %1406 = vmatprep.subr.bf16.mxu0 0
      %1407 = vmatpush1.bf16.msra.mxu0 0
      %1408 = vmatprep.subr.bf16.mxu0 0
      %1409 = vmatpush1.bf16.msra.mxu0 0
      %1410 = vmatprep.subr.bf16.mxu0 0
      %1411 = vmatpush1.bf16.msra.mxu0 0
      %1412 = vmatprep.subr.bf16.mxu0 0
      %1413 = vmatpush1.bf16.msra.mxu0 0
      %1414 = vmatprep.subr.bf16.mxu0 0
      %1415 = vmatpush1.bf16.msra.mxu0 0
      %1416 = vmatprep.mubr.bf16.mxu0 0
      %1417 = vmatmul.mubr.bf16.gmra.mrb[0].mxu0 %v1150
      %v1418 = vpop.f32.mrb[0].mxu0
      %v1419 = vadd.f32 0.0, %v1418
      %v1420 = vpop.f32.mrb[0].mxu0
      %v1421 = vadd.f32 0.0, %v1420
      %v1422 = vpop.f32.mrb[0].mxu0
      %v1423 = vpop.f32.mrb[0].mxu0
      %1424 = vdwg.mxu0
      %v1429 = vcombine.low %v1378, %v1380
      %v1430 = vcombine.low %v1419, %v1421
      %v1432 = vunpack.c.l.s4 1983009808
      %v1433 = vunpack.c.0.s8 %v1432
      %v1434 = vlaneseq
      %v1435 = vshrl.u32 %v1434, 7
      %v1436 = vsub.s32 %v1433, %v1435
      %v1437 = vrot.slane %v1429, %v1436
      %v1439 = vunpack.c.l.s4 1983009808
      %v1440 = vunpack.c.0.s8 %v1439
      %v1441 = vlaneseq
      %v1442 = vshrl.u32 %v1441, 7
      %v1443 = vsub.s32 %v1440, %v1442
      %v1444 = vrot.slane %v1430, %v1443
      %v1445 = vcombine.low %v1437, %v1444
      %v1447 = vadd.f32 %v1149, %v1445
      %v1448 = vxor.u32 %v1447, 2147483648
      %v1449 = vmul.f32 %v1448, 1.442695
      %v1450 = vpow.pop %v1449
      %v1451 = vadd.f32 %v1450, 1.0
      %v1452 = vrcp.pop %v1451
      %v1453 = vmul.f32 1.0, %v1452
      %v1455 = vrot.slane %v1447, 2
      %v1457 = vxor.u32 %v1455, 2147483648
      %v1458 = vmul.f32 %v1457, 1.442695
      %v1459 = vpow.pop %v1458
      %v1460 = vadd.f32 %v1459, 1.0
      %v1461 = vrcp.pop %v1460
      %v1462 = vmul.f32 1.0, %v1461
      %v1463 = vrot.slane %v1447, 4
      %v1465 = vtanh.pop %v1463
      %v1466 = vrot.slane %v1447, 6
      %v1468 = vxor.u32 %v1466, 2147483648
      %v1469 = vmul.f32 %v1468, 1.442695
      %v1470 = vpow.pop %v1469
      %v1471 = vadd.f32 %v1470, 1.0
      %v1472 = vrcp.pop %v1471
      %v1473 = vmul.f32 1.0, %v1472
      %v1474 = vmul.f32 %v1462, %v1145
      %v1475 = vmul.f32 %v1453, %v1465
      %v1476 = vadd.f32 %v1474, %v1475
      %v1477 = vtanh.pop %v1476
      %v1478 = vmul.f32 %v1473, %v1477
      %1479 = vst [vmem:[%s145 + $0x6] sm:$0x3] %v1478
      %v1480 = vld [vmem:[%s139 + $0x20] sm:$0xff]
      %v1481 = vpack.c.bf16 %v1478, %v1478
      %v1482 = vld [vmem:[%s1] sm:$0xff]
      %v1483 = vld [vmem:[%s1 + $0x8] sm:$0xff]
      %v1484 = vld [vmem:[%s1 + $0x10] sm:$0xff]
      %v1485 = vld [vmem:[%s1 + $0x18] sm:$0xff]
      %v1486 = vld [vmem:[%s1 + $0x20] sm:$0xff]
      %v1487 = vld [vmem:[%s1 + $0x28] sm:$0xff]
      %v1488 = vld [vmem:[%s1 + $0x30] sm:$0xff]
      %v1489 = vld [vmem:[%s1 + $0x38] sm:$0xff]
      %v1490 = vld [vmem:[%s1 + $0x40] sm:$0xff]
      %v1491 = vld [vmem:[%s1 + $0x48] sm:$0xff]
      %v1492 = vld [vmem:[%s1 + $0x50] sm:$0xff]
      %v1493 = vld [vmem:[%s1 + $0x58] sm:$0xff]
      %v1494 = vld [vmem:[%s1 + $0x60] sm:$0xff]
      %v1495 = vld [vmem:[%s1 + $0x68] sm:$0xff]
      %v1496 = vld [vmem:[%s1 + $0x70] sm:$0xff]
      %v1497 = vld [vmem:[%s1 + $0x78] sm:$0xff]
      %v1498 = vld [vmem:[%s1 + $0x80] sm:$0xff]
      %v1499 = vld [vmem:[%s1 + $0x88] sm:$0xff]
      %v1500 = vld [vmem:[%s1 + $0x90] sm:$0xff]
      %v1501 = vld [vmem:[%s1 + $0x98] sm:$0xff]
      %v1502 = vld [vmem:[%s1 + $0xa0] sm:$0xff]
      %v1503 = vld [vmem:[%s1 + $0xa8] sm:$0xff]
      %v1504 = vld [vmem:[%s1 + $0xb0] sm:$0xff]
      %v1505 = vld [vmem:[%s1 + $0xb8] sm:$0xff]
      %v1506 = vld [vmem:[%s1 + $0xc0] sm:$0xff]
      %v1507 = vld [vmem:[%s1 + $0xc8] sm:$0xff]
      %v1508 = vld [vmem:[%s1 + $0xd0] sm:$0xff]
      %v1509 = vld [vmem:[%s1 + $0xd8] sm:$0xff]
      %v1510 = vld [vmem:[%s1 + $0xe0] sm:$0xff]
      %v1511 = vld [vmem:[%s1 + $0xe8] sm:$0xff]
      %v1512 = vld [vmem:[%s1 + $0xf0] sm:$0xff]
      %v1513 = vld [vmem:[%s1 + $0xf8] sm:$0xff]
      %v1546 = vunpack.c.l.b16 %v1482
      %v1547 = vunpack.c.h.b16 %v1482
      %v1548 = vunpack.c.l.b16 %v1483
      %v1549 = vunpack.c.h.b16 %v1483
      %v1550 = vunpack.c.l.b16 %v1484
      %v1551 = vunpack.c.h.b16 %v1484
      %v1552 = vunpack.c.l.b16 %v1485
      %v1553 = vunpack.c.h.b16 %v1485
      %v1554 = vunpack.c.l.b16 %v1486
      %v1555 = vunpack.c.h.b16 %v1486
      %v1556 = vunpack.c.l.b16 %v1487
      %v1557 = vunpack.c.h.b16 %v1487
      %v1558 = vunpack.c.l.b16 %v1488
      %v1559 = vunpack.c.h.b16 %v1488
      %v1560 = vunpack.c.l.b16 %v1489
      %v1561 = vunpack.c.h.b16 %v1489
      %v1562 = vunpack.c.l.b16 %v1490
      %v1563 = vunpack.c.h.b16 %v1490
      %v1564 = vunpack.c.l.b16 %v1491
      %v1565 = vunpack.c.h.b16 %v1491
      %v1566 = vunpack.c.l.b16 %v1492
      %v1567 = vunpack.c.h.b16 %v1492
      %v1568 = vunpack.c.l.b16 %v1493
      %v1569 = vunpack.c.h.b16 %v1493
      %v1570 = vunpack.c.l.b16 %v1494
      %v1571 = vunpack.c.h.b16 %v1494
      %v1572 = vunpack.c.l.b16 %v1495
      %v1573 = vunpack.c.h.b16 %v1495
      %v1574 = vunpack.c.l.b16 %v1496
      %v1575 = vunpack.c.h.b16 %v1496
      %v1576 = vunpack.c.l.b16 %v1497
      %v1577 = vunpack.c.h.b16 %v1497
      %v1578 = vunpack.c.l.b16 %v1498
      %v1579 = vunpack.c.h.b16 %v1498
      %v1580 = vunpack.c.l.b16 %v1499
      %v1581 = vunpack.c.h.b16 %v1499
      %v1582 = vunpack.c.l.b16 %v1500
      %v1583 = vunpack.c.h.b16 %v1500
      %v1584 = vunpack.c.l.b16 %v1501
      %v1585 = vunpack.c.h.b16 %v1501
      %v1586 = vunpack.c.l.b16 %v1502
      %v1587 = vunpack.c.h.b16 %v1502
      %v1588 = vunpack.c.l.b16 %v1503
      %v1589 = vunpack.c.h.b16 %v1503
      %v1590 = vunpack.c.l.b16 %v1504
      %v1591 = vunpack.c.h.b16 %v1504
      %v1592 = vunpack.c.l.b16 %v1505
      %v1593 = vunpack.c.h.b16 %v1505
      %v1594 = vunpack.c.l.b16 %v1506
      %v1595 = vunpack.c.h.b16 %v1506
      %v1596 = vunpack.c.l.b16 %v1507
      %v1597 = vunpack.c.h.b16 %v1507
      %v1598 = vunpack.c.l.b16 %v1508
      %v1599 = vunpack.c.h.b16 %v1508
      %v1600 = vunpack.c.l.b16 %v1509
      %v1601 = vunpack.c.h.b16 %v1509
      %v1602 = vunpack.c.l.b16 %v1510
      %v1603 = vunpack.c.h.b16 %v1510
      %v1604 = vunpack.c.l.b16 %v1511
      %v1605 = vunpack.c.h.b16 %v1511
      %v1606 = vunpack.c.l.b16 %v1512
      %v1607 = vunpack.c.h.b16 %v1512
      %v1608 = vunpack.c.l.b16 %v1513
      %v1609 = vunpack.c.h.b16 %v1513
      %v1610 = vpack.c.b16 %v1550, %v1546
      %v1611 = vpack.c.b16 %v1551, %v1547
      %v1612 = vpack.c.b16 %v1552, %v1548
      %v1613 = vpack.c.b16 %v1553, %v1549
      %v1614 = vpack.c.b16 %v1558, %v1554
      %v1615 = vpack.c.b16 %v1559, %v1555
      %v1616 = vpack.c.b16 %v1560, %v1556
      %v1617 = vpack.c.b16 %v1561, %v1557
      %v1618 = vpack.c.b16 %v1566, %v1562
      %v1619 = vpack.c.b16 %v1567, %v1563
      %v1620 = vpack.c.b16 %v1568, %v1564
      %v1621 = vpack.c.b16 %v1569, %v1565
      %v1622 = vpack.c.b16 %v1574, %v1570
      %v1623 = vpack.c.b16 %v1575, %v1571
      %v1624 = vpack.c.b16 %v1576, %v1572
      %v1625 = vpack.c.b16 %v1577, %v1573
      %v1626 = vpack.c.b16 %v1582, %v1578
      %v1627 = vpack.c.b16 %v1583, %v1579
      %v1628 = vpack.c.b16 %v1584, %v1580
      %v1629 = vpack.c.b16 %v1585, %v1581
      %v1630 = vpack.c.b16 %v1590, %v1586
      %v1631 = vpack.c.b16 %v1591, %v1587
      %v1632 = vpack.c.b16 %v1592, %v1588
      %v1633 = vpack.c.b16 %v1593, %v1589
      %v1634 = vpack.c.b16 %v1598, %v1594
      %v1635 = vpack.c.b16 %v1599, %v1595
      %v1636 = vpack.c.b16 %v1600, %v1596
      %v1637 = vpack.c.b16 %v1601, %v1597
      %v1638 = vpack.c.b16 %v1606, %v1602
      %v1639 = vpack.c.b16 %v1607, %v1603
      %v1640 = vpack.c.b16 %v1608, %v1604
      %v1641 = vpack.c.b16 %v1609, %v1605
      %1674 = vmatprep.subr.bf16.mxu0 %v1611
      %1675 = vmatpush1.bf16.msra.mxu0 %v1610
      %1676 = vmatprep.subr.bf16.mxu0 %v1615
      %1677 = vmatpush1.bf16.msra.mxu0 %v1614
      %1678 = vmatprep.subr.bf16.mxu0 %v1619
      %1679 = vmatpush1.bf16.msra.mxu0 %v1618
      %1680 = vmatprep.subr.bf16.mxu0 %v1623
      %1681 = vmatpush1.bf16.msra.mxu0 %v1622
      %1682 = vmatprep.subr.bf16.mxu0 %v1627
      %1683 = vmatpush1.bf16.msra.mxu0 %v1626
      %1684 = vmatprep.subr.bf16.mxu0 %v1631
      %1685 = vmatpush1.bf16.msra.mxu0 %v1630
      %1686 = vmatprep.subr.bf16.mxu0 %v1635
      %1687 = vmatpush1.bf16.msra.mxu0 %v1634
      %1688 = vmatprep.subr.bf16.mxu0 %v1639
      %1689 = vmatpush1.bf16.msra.mxu0 %v1638
      %1690 = vmatprep.subr.bf16.mxu0 0
      %1691 = vmatpush1.bf16.msra.mxu0 0
      %1692 = vmatprep.subr.bf16.mxu0 0
      %1693 = vmatpush1.bf16.msra.mxu0 0
      %1694 = vmatprep.subr.bf16.mxu0 0
      %1695 = vmatpush1.bf16.msra.mxu0 0
      %1696 = vmatprep.subr.bf16.mxu0 0
      %1697 = vmatpush1.bf16.msra.mxu0 0
      %1698 = vmatprep.subr.bf16.mxu0 0
      %1699 = vmatpush1.bf16.msra.mxu0 0
      %1700 = vmatprep.subr.bf16.mxu0 0
      %1701 = vmatpush1.bf16.msra.mxu0 0
      %1702 = vmatprep.subr.bf16.mxu0 0
      %1703 = vmatpush1.bf16.msra.mxu0 0
      %1704 = vmatprep.subr.bf16.mxu0 0
      %1705 = vmatpush1.bf16.msra.mxu0 0
      %1706 = vmatprep.mubr.bf16.mxu0 0
      %1707 = vmatmul.mubr.bf16.gmra.mrb[0].mxu0 %v1481
      %v1708 = vpop.f32.mrb[0].mxu0
      %v1709 = vadd.f32 0.0, %v1708
      %v1710 = vpop.f32.mrb[0].mxu0
      %v1711 = vadd.f32 0.0, %v1710
      %v1712 = vpop.f32.mrb[0].mxu0
      %v1713 = vpop.f32.mrb[0].mxu0
      %1714 = vdwg.mxu0
      %1715 = vmatprep.subr.bf16.mxu0 %v1613
      %1716 = vmatpush1.bf16.msra.mxu0 %v1612
      %1717 = vmatprep.subr.bf16.mxu0 %v1617
      %1718 = vmatpush1.bf16.msra.mxu0 %v1616
      %1719 = vmatprep.subr.bf16.mxu0 %v1621
      %1720 = vmatpush1.bf16.msra.mxu0 %v1620
      %1721 = vmatprep.subr.bf16.mxu0 %v1625
      %1722 = vmatpush1.bf16.msra.mxu0 %v1624
      %1723 = vmatprep.subr.bf16.mxu0 %v1629
      %1724 = vmatpush1.bf16.msra.mxu0 %v1628
      %1725 = vmatprep.subr.bf16.mxu0 %v1633
      %1726 = vmatpush1.bf16.msra.mxu0 %v1632
      %1727 = vmatprep.subr.bf16.mxu0 %v1637
      %1728 = vmatpush1.bf16.msra.mxu0 %v1636
      %1729 = vmatprep.subr.bf16.mxu0 %v1641
      %1730 = vmatpush1.bf16.msra.mxu0 %v1640
      %1731 = vmatprep.subr.bf16.mxu0 0
      %1732 = vmatpush1.bf16.msra.mxu0 0
      %1733 = vmatprep.subr.bf16.mxu0 0
      %1734 = vmatpush1.bf16.msra.mxu0 0
      %1735 = vmatprep.subr.bf16.mxu0 0
      %1736 = vmatpush1.bf16.msra.mxu0 0
      %1737 = vmatprep.subr.bf16.mxu0 0
      %1738 = vmatpush1.bf16.msra.mxu0 0
      %1739 = vmatprep.subr.bf16.mxu0 0
      %1740 = vmatpush1.bf16.msra.mxu0 0
      %1741 = vmatprep.subr.bf16.mxu0 0
      %1742 = vmatpush1.bf16.msra.mxu0 0
      %1743 = vmatprep.subr.bf16.mxu0 0
      %1744 = vmatpush1.bf16.msra.mxu0 0
      %1745 = vmatprep.subr.bf16.mxu0 0
      %1746 = vmatpush1.bf16.msra.mxu0 0
      %1747 = vmatprep.mubr.bf16.mxu0 0
      %1748 = vmatmul.mubr.bf16.gmra.mrb[0].mxu0 %v1481
      %v1749 = vpop.f32.mrb[0].mxu0
      %v1750 = vadd.f32 0.0, %v1749
      %v1751 = vpop.f32.mrb[0].mxu0
      %v1752 = vadd.f32 0.0, %v1751
      %v1753 = vpop.f32.mrb[0].mxu0
      %v1754 = vpop.f32.mrb[0].mxu0
      %1755 = vdwg.mxu0
      %v1760 = vcombine.low %v1709, %v1711
      %v1761 = vcombine.low %v1750, %v1752
      %v1763 = vunpack.c.l.s4 1983009808
      %v1764 = vunpack.c.0.s8 %v1763
      %v1765 = vlaneseq
      %v1766 = vshrl.u32 %v1765, 7
      %v1767 = vsub.s32 %v1764, %v1766
      %v1768 = vrot.slane %v1760, %v1767
      %v1770 = vunpack.c.l.s4 1983009808
      %v1771 = vunpack.c.0.s8 %v1770
      %v1772 = vlaneseq
      %v1773 = vshrl.u32 %v1772, 7
      %v1774 = vsub.s32 %v1771, %v1773
      %v1775 = vrot.slane %v1761, %v1774
      %v1776 = vcombine.low %v1768, %v1775
      %v1778 = vadd.f32 %v1480, %v1776
      %v1779 = vxor.u32 %v1778, 2147483648
      %v1780 = vmul.f32 %v1779, 1.442695
      %v1781 = vpow.pop %v1780
      %v1782 = vadd.f32 %v1781, 1.0
      %v1783 = vrcp.pop %v1782
      %v1784 = vmul.f32 1.0, %v1783
      %v1786 = vrot.slane %v1778, 2
      %v1788 = vxor.u32 %v1786, 2147483648
      %v1789 = vmul.f32 %v1788, 1.442695
      %v1790 = vpow.pop %v1789
      %v1791 = vadd.f32 %v1790, 1.0
      %v1792 = vrcp.pop %v1791
      %v1793 = vmul.f32 1.0, %v1792
      %v1794 = vrot.slane %v1778, 4
      %v1796 = vtanh.pop %v1794
      %v1797 = vrot.slane %v1778, 6
      %v1799 = vxor.u32 %v1797, 2147483648
      %v1800 = vmul.f32 %v1799, 1.442695
      %v1801 = vpow.pop %v1800
      %v1802 = vadd.f32 %v1801, 1.0
      %v1803 = vrcp.pop %v1802
      %v1804 = vmul.f32 1.0, %v1803
      %v1805 = vmul.f32 %v1793, %v1476
      %v1806 = vmul.f32 %v1784, %v1796
      %v1807 = vadd.f32 %v1805, %v1806
      %v1808 = vtanh.pop %v1807
      %v1809 = vmul.f32 %v1804, %v1808
      %1810 = vst [vmem:[%s145 + $0x8] sm:$0x3] %v1809
      %v1811 = vld [vmem:[%s139 + $0x28] sm:$0xff]
      %v1812 = vpack.c.bf16 %v1809, %v1809
      %v1813 = vld [vmem:[%s1] sm:$0xff]
      %v1814 = vld [vmem:[%s1 + $0x8] sm:$0xff]
      %v1815 = vld [vmem:[%s1 + $0x10] sm:$0xff]
      %v1816 = vld [vmem:[%s1 + $0x18] sm:$0xff]
      %v1817 = vld [vmem:[%s1 + $0x20] sm:$0xff]
      %v1818 = vld [vmem:[%s1 + $0x28] sm:$0xff]
      %v1819 = vld [vmem:[%s1 + $0x30] sm:$0xff]
      %v1820 = vld [vmem:[%s1 + $0x38] sm:$0xff]
      %v1821 = vld [vmem:[%s1 + $0x40] sm:$0xff]
      %v1822 = vld [vmem:[%s1 + $0x48] sm:$0xff]
      %v1823 = vld [vmem:[%s1 + $0x50] sm:$0xff]
      %v1824 = vld [vmem:[%s1 + $0x58] sm:$0xff]
      %v1825 = vld [vmem:[%s1 + $0x60] sm:$0xff]
      %v1826 = vld [vmem:[%s1 + $0x68] sm:$0xff]
      %v1827 = vld [vmem:[%s1 + $0x70] sm:$0xff]
      %v1828 = vld [vmem:[%s1 + $0x78] sm:$0xff]
      %v1829 = vld [vmem:[%s1 + $0x80] sm:$0xff]
      %v1830 = vld [vmem:[%s1 + $0x88] sm:$0xff]
      %v1831 = vld [vmem:[%s1 + $0x90] sm:$0xff]
      %v1832 = vld [vmem:[%s1 + $0x98] sm:$0xff]
      %v1833 = vld [vmem:[%s1 + $0xa0] sm:$0xff]
      %v1834 = vld [vmem:[%s1 + $0xa8] sm:$0xff]
      %v1835 = vld [vmem:[%s1 + $0xb0] sm:$0xff]
      %v1836 = vld [vmem:[%s1 + $0xb8] sm:$0xff]
      %v1837 = vld [vmem:[%s1 + $0xc0] sm:$0xff]
      %v1838 = vld [vmem:[%s1 + $0xc8] sm:$0xff]
      %v1839 = vld [vmem:[%s1 + $0xd0] sm:$0xff]
      %v1840 = vld [vmem:[%s1 + $0xd8] sm:$0xff]
      %v1841 = vld [vmem:[%s1 + $0xe0] sm:$0xff]
      %v1842 = vld [vmem:[%s1 + $0xe8] sm:$0xff]
      %v1843 = vld [vmem:[%s1 + $0xf0] sm:$0xff]
      %v1844 = vld [vmem:[%s1 + $0xf8] sm:$0xff]
      %v1877 = vunpack.c.l.b16 %v1813
      %v1878 = vunpack.c.h.b16 %v1813
      %v1879 = vunpack.c.l.b16 %v1814
      %v1880 = vunpack.c.h.b16 %v1814
      %v1881 = vunpack.c.l.b16 %v1815
      %v1882 = vunpack.c.h.b16 %v1815
      %v1883 = vunpack.c.l.b16 %v1816
      %v1884 = vunpack.c.h.b16 %v1816
      %v1885 = vunpack.c.l.b16 %v1817
      %v1886 = vunpack.c.h.b16 %v1817
      %v1887 = vunpack.c.l.b16 %v1818
      %v1888 = vunpack.c.h.b16 %v1818
      %v1889 = vunpack.c.l.b16 %v1819
      %v1890 = vunpack.c.h.b16 %v1819
      %v1891 = vunpack.c.l.b16 %v1820
      %v1892 = vunpack.c.h.b16 %v1820
      %v1893 = vunpack.c.l.b16 %v1821
      %v1894 = vunpack.c.h.b16 %v1821
      %v1895 = vunpack.c.l.b16 %v1822
      %v1896 = vunpack.c.h.b16 %v1822
      %v1897 = vunpack.c.l.b16 %v1823
      %v1898 = vunpack.c.h.b16 %v1823
      %v1899 = vunpack.c.l.b16 %v1824
      %v1900 = vunpack.c.h.b16 %v1824
      %v1901 = vunpack.c.l.b16 %v1825
      %v1902 = vunpack.c.h.b16 %v1825
      %v1903 = vunpack.c.l.b16 %v1826
      %v1904 = vunpack.c.h.b16 %v1826
      %v1905 = vunpack.c.l.b16 %v1827
      %v1906 = vunpack.c.h.b16 %v1827
      %v1907 = vunpack.c.l.b16 %v1828
      %v1908 = vunpack.c.h.b16 %v1828
      %v1909 = vunpack.c.l.b16 %v1829
      %v1910 = vunpack.c.h.b16 %v1829
      %v1911 = vunpack.c.l.b16 %v1830
      %v1912 = vunpack.c.h.b16 %v1830
      %v1913 = vunpack.c.l.b16 %v1831
      %v1914 = vunpack.c.h.b16 %v1831
      %v1915 = vunpack.c.l.b16 %v1832
      %v1916 = vunpack.c.h.b16 %v1832
      %v1917 = vunpack.c.l.b16 %v1833
      %v1918 = vunpack.c.h.b16 %v1833
      %v1919 = vunpack.c.l.b16 %v1834
      %v1920 = vunpack.c.h.b16 %v1834
      %v1921 = vunpack.c.l.b16 %v1835
      %v1922 = vunpack.c.h.b16 %v1835
      %v1923 = vunpack.c.l.b16 %v1836
      %v1924 = vunpack.c.h.b16 %v1836
      %v1925 = vunpack.c.l.b16 %v1837
      %v1926 = vunpack.c.h.b16 %v1837
      %v1927 = vunpack.c.l.b16 %v1838
      %v1928 = vunpack.c.h.b16 %v1838
      %v1929 = vunpack.c.l.b16 %v1839
      %v1930 = vunpack.c.h.b16 %v1839
      %v1931 = vunpack.c.l.b16 %v1840
      %v1932 = vunpack.c.h.b16 %v1840
      %v1933 = vunpack.c.l.b16 %v1841
      %v1934 = vunpack.c.h.b16 %v1841
      %v1935 = vunpack.c.l.b16 %v1842
      %v1936 = vunpack.c.h.b16 %v1842
      %v1937 = vunpack.c.l.b16 %v1843
      %v1938 = vunpack.c.h.b16 %v1843
      %v1939 = vunpack.c.l.b16 %v1844
      %v1940 = vunpack.c.h.b16 %v1844
      %v1941 = vpack.c.b16 %v1881, %v1877
      %v1942 = vpack.c.b16 %v1882, %v1878
      %v1943 = vpack.c.b16 %v1883, %v1879
      %v1944 = vpack.c.b16 %v1884, %v1880
      %v1945 = vpack.c.b16 %v1889, %v1885
      %v1946 = vpack.c.b16 %v1890, %v1886
      %v1947 = vpack.c.b16 %v1891, %v1887
      %v1948 = vpack.c.b16 %v1892, %v1888
      %v1949 = vpack.c.b16 %v1897, %v1893
      %v1950 = vpack.c.b16 %v1898, %v1894
      %v1951 = vpack.c.b16 %v1899, %v1895
      %v1952 = vpack.c.b16 %v1900, %v1896
      %v1953 = vpack.c.b16 %v1905, %v1901
      %v1954 = vpack.c.b16 %v1906, %v1902
      %v1955 = vpack.c.b16 %v1907, %v1903
      %v1956 = vpack.c.b16 %v1908, %v1904
      %v1957 = vpack.c.b16 %v1913, %v1909
      %v1958 = vpack.c.b16 %v1914, %v1910
      %v1959 = vpack.c.b16 %v1915, %v1911
      %v1960 = vpack.c.b16 %v1916, %v1912
      %v1961 = vpack.c.b16 %v1921, %v1917
      %v1962 = vpack.c.b16 %v1922, %v1918
      %v1963 = vpack.c.b16 %v1923, %v1919
      %v1964 = vpack.c.b16 %v1924, %v1920
      %v1965 = vpack.c.b16 %v1929, %v1925
      %v1966 = vpack.c.b16 %v1930, %v1926
      %v1967 = vpack.c.b16 %v1931, %v1927
      %v1968 = vpack.c.b16 %v1932, %v1928
      %v1969 = vpack.c.b16 %v1937, %v1933
      %v1970 = vpack.c.b16 %v1938, %v1934
      %v1971 = vpack.c.b16 %v1939, %v1935
      %v1972 = vpack.c.b16 %v1940, %v1936
      %2005 = vmatprep.subr.bf16.mxu0 %v1942
      %2006 = vmatpush1.bf16.msra.mxu0 %v1941
      %2007 = vmatprep.subr.bf16.mxu0 %v1946
      %2008 = vmatpush1.bf16.msra.mxu0 %v1945
      %2009 = vmatprep.subr.bf16.mxu0 %v1950
      %2010 = vmatpush1.bf16.msra.mxu0 %v1949
      %2011 = vmatprep.subr.bf16.mxu0 %v1954
      %2012 = vmatpush1.bf16.msra.mxu0 %v1953
      %2013 = vmatprep.subr.bf16.mxu0 %v1958
      %2014 = vmatpush1.bf16.msra.mxu0 %v1957
      %2015 = vmatprep.subr.bf16.mxu0 %v1962
      %2016 = vmatpush1.bf16.msra.mxu0 %v1961
      %2017 = vmatprep.subr.bf16.mxu0 %v1966
      %2018 = vmatpush1.bf16.msra.mxu0 %v1965
      %2019 = vmatprep.subr.bf16.mxu0 %v1970
      %2020 = vmatpush1.bf16.msra.mxu0 %v1969
      %2021 = vmatprep.subr.bf16.mxu0 0
      %2022 = vmatpush1.bf16.msra.mxu0 0
      %2023 = vmatprep.subr.bf16.mxu0 0
      %2024 = vmatpush1.bf16.msra.mxu0 0
      %2025 = vmatprep.subr.bf16.mxu0 0
      %2026 = vmatpush1.bf16.msra.mxu0 0
      %2027 = vmatprep.subr.bf16.mxu0 0
      %2028 = vmatpush1.bf16.msra.mxu0 0
      %2029 = vmatprep.subr.bf16.mxu0 0
      %2030 = vmatpush1.bf16.msra.mxu0 0
      %2031 = vmatprep.subr.bf16.mxu0 0
      %2032 = vmatpush1.bf16.msra.mxu0 0
      %2033 = vmatprep.subr.bf16.mxu0 0
      %2034 = vmatpush1.bf16.msra.mxu0 0
      %2035 = vmatprep.subr.bf16.mxu0 0
      %2036 = vmatpush1.bf16.msra.mxu0 0
      %2037 = vmatprep.mubr.bf16.mxu0 0
      %2038 = vmatmul.mubr.bf16.gmra.mrb[0].mxu0 %v1812
      %v2039 = vpop.f32.mrb[0].mxu0
      %v2040 = vadd.f32 0.0, %v2039
      %v2041 = vpop.f32.mrb[0].mxu0
      %v2042 = vadd.f32 0.0, %v2041
      %v2043 = vpop.f32.mrb[0].mxu0
      %v2044 = vpop.f32.mrb[0].mxu0
      %2045 = vdwg.mxu0
      %2046 = vmatprep.subr.bf16.mxu0 %v1944
      %2047 = vmatpush1.bf16.msra.mxu0 %v1943
      %2048 = vmatprep.subr.bf16.mxu0 %v1948
      %2049 = vmatpush1.bf16.msra.mxu0 %v1947
      %2050 = vmatprep.subr.bf16.mxu0 %v1952
      %2051 = vmatpush1.bf16.msra.mxu0 %v1951
      %2052 = vmatprep.subr.bf16.mxu0 %v1956
      %2053 = vmatpush1.bf16.msra.mxu0 %v1955
      %2054 = vmatprep.subr.bf16.mxu0 %v1960
      %2055 = vmatpush1.bf16.msra.mxu0 %v1959
      %2056 = vmatprep.subr.bf16.mxu0 %v1964
      %2057 = vmatpush1.bf16.msra.mxu0 %v1963
      %2058 = vmatprep.subr.bf16.mxu0 %v1968
      %2059 = vmatpush1.bf16.msra.mxu0 %v1967
      %2060 = vmatprep.subr.bf16.mxu0 %v1972
      %2061 = vmatpush1.bf16.msra.mxu0 %v1971
      %2062 = vmatprep.subr.bf16.mxu0 0
      %2063 = vmatpush1.bf16.msra.mxu0 0
      %2064 = vmatprep.subr.bf16.mxu0 0
      %2065 = vmatpush1.bf16.msra.mxu0 0
      %2066 = vmatprep.subr.bf16.mxu0 0
      %2067 = vmatpush1.bf16.msra.mxu0 0
      %2068 = vmatprep.subr.bf16.mxu0 0
      %2069 = vmatpush1.bf16.msra.mxu0 0
      %2070 = vmatprep.subr.bf16.mxu0 0
      %2071 = vmatpush1.bf16.msra.mxu0 0
      %2072 = vmatprep.subr.bf16.mxu0 0
      %2073 = vmatpush1.bf16.msra.mxu0 0
      %2074 = vmatprep.subr.bf16.mxu0 0
      %2075 = vmatpush1.bf16.msra.mxu0 0
      %2076 = vmatprep.subr.bf16.mxu0 0
      %2077 = vmatpush1.bf16.msra.mxu0 0
      %2078 = vmatprep.mubr.bf16.mxu0 0
      %2079 = vmatmul.mubr.bf16.gmra.mrb[0].mxu0 %v1812
      %v2080 = vpop.f32.mrb[0].mxu0
      %v2081 = vadd.f32 0.0, %v2080
      %v2082 = vpop.f32.mrb[0].mxu0
      %v2083 = vadd.f32 0.0, %v2082
      %v2084 = vpop.f32.mrb[0].mxu0
      %v2085 = vpop.f32.mrb[0].mxu0
      %2086 = vdwg.mxu0
      %v2091 = vcombine.low %v2040, %v2042
      %v2092 = vcombine.low %v2081, %v2083
      %v2094 = vunpack.c.l.s4 1983009808
      %v2095 = vunpack.c.0.s8 %v2094
      %v2096 = vlaneseq
      %v2097 = vshrl.u32 %v2096, 7
      %v2098 = vsub.s32 %v2095, %v2097
      %v2099 = vrot.slane %v2091, %v2098
      %v2101 = vunpack.c.l.s4 1983009808
      %v2102 = vunpack.c.0.s8 %v2101
      %v2103 = vlaneseq
      %v2104 = vshrl.u32 %v2103, 7
      %v2105 = vsub.s32 %v2102, %v2104
      %v2106 = vrot.slane %v2092, %v2105
      %v2107 = vcombine.low %v2099, %v2106
      %v2109 = vadd.f32 %v1811, %v2107
      %v2110 = vxor.u32 %v2109, 2147483648
      %v2111 = vmul.f32 %v2110, 1.442695
      %v2112 = vpow.pop %v2111
      %v2113 = vadd.f32 %v2112, 1.0
      %v2114 = vrcp.pop %v2113
      %v2115 = vmul.f32 1.0, %v2114
      %v2117 = vrot.slane %v2109, 2
      %v2119 = vxor.u32 %v2117, 2147483648
      %v2120 = vmul.f32 %v2119, 1.442695
      %v2121 = vpow.pop %v2120
      %v2122 = vadd.f32 %v2121, 1.0
      %v2123 = vrcp.pop %v2122
      %v2124 = vmul.f32 1.0, %v2123
      %v2125 = vrot.slane %v2109, 4
      %v2127 = vtanh.pop %v2125
      %v2128 = vrot.slane %v2109, 6
      %v2130 = vxor.u32 %v2128, 2147483648
      %v2131 = vmul.f32 %v2130, 1.442695
      %v2132 = vpow.pop %v2131
      %v2133 = vadd.f32 %v2132, 1.0
      %v2134 = vrcp.pop %v2133
      %v2135 = vmul.f32 1.0, %v2134
      %v2136 = vmul.f32 %v2124, %v1807
      %v2137 = vmul.f32 %v2115, %v2127
      %v2138 = vadd.f32 %v2136, %v2137
      %v2139 = vtanh.pop %v2138
      %v2140 = vmul.f32 %v2135, %v2139
      %2141 = vst [vmem:[%s145 + $0xa] sm:$0x3] %v2140
      %v2142 = vld [vmem:[%s139 + $0x30] sm:$0xff]
      %v2143 = vpack.c.bf16 %v2140, %v2140
      %v2144 = vld [vmem:[%s1] sm:$0xff]
      %v2145 = vld [vmem:[%s1 + $0x8] sm:$0xff]
      %v2146 = vld [vmem:[%s1 + $0x10] sm:$0xff]
      %v2147 = vld [vmem:[%s1 + $0x18] sm:$0xff]
      %v2148 = vld [vmem:[%s1 + $0x20] sm:$0xff]
      %v2149 = vld [vmem:[%s1 + $0x28] sm:$0xff]
      %v2150 = vld [vmem:[%s1 + $0x30] sm:$0xff]
      %v2151 = vld [vmem:[%s1 + $0x38] sm:$0xff]
      %v2152 = vld [vmem:[%s1 + $0x40] sm:$0xff]
      %v2153 = vld [vmem:[%s1 + $0x48] sm:$0xff]
      %v2154 = vld [vmem:[%s1 + $0x50] sm:$0xff]
      %v2155 = vld [vmem:[%s1 + $0x58] sm:$0xff]
      %v2156 = vld [vmem:[%s1 + $0x60] sm:$0xff]
      %v2157 = vld [vmem:[%s1 + $0x68] sm:$0xff]
      %v2158 = vld [vmem:[%s1 + $0x70] sm:$0xff]
      %v2159 = vld [vmem:[%s1 + $0x78] sm:$0xff]
      %v2160 = vld [vmem:[%s1 + $0x80] sm:$0xff]
      %v2161 = vld [vmem:[%s1 + $0x88] sm:$0xff]
      %v2162 = vld [vmem:[%s1 + $0x90] sm:$0xff]
      %v2163 = vld [vmem:[%s1 + $0x98] sm:$0xff]
      %v2164 = vld [vmem:[%s1 + $0xa0] sm:$0xff]
      %v2165 = vld [vmem:[%s1 + $0xa8] sm:$0xff]
      %v2166 = vld [vmem:[%s1 + $0xb0] sm:$0xff]
      %v2167 = vld [vmem:[%s1 + $0xb8] sm:$0xff]
      %v2168 = vld [vmem:[%s1 + $0xc0] sm:$0xff]
      %v2169 = vld [vmem:[%s1 + $0xc8] sm:$0xff]
      %v2170 = vld [vmem:[%s1 + $0xd0] sm:$0xff]
      %v2171 = vld [vmem:[%s1 + $0xd8] sm:$0xff]
      %v2172 = vld [vmem:[%s1 + $0xe0] sm:$0xff]
      %v2173 = vld [vmem:[%s1 + $0xe8] sm:$0xff]
      %v2174 = vld [vmem:[%s1 + $0xf0] sm:$0xff]
      %v2175 = vld [vmem:[%s1 + $0xf8] sm:$0xff]
      %v2208 = vunpack.c.l.b16 %v2144
      %v2209 = vunpack.c.h.b16 %v2144
      %v2210 = vunpack.c.l.b16 %v2145
      %v2211 = vunpack.c.h.b16 %v2145
      %v2212 = vunpack.c.l.b16 %v2146
      %v2213 = vunpack.c.h.b16 %v2146
      %v2214 = vunpack.c.l.b16 %v2147
      %v2215 = vunpack.c.h.b16 %v2147
      %v2216 = vunpack.c.l.b16 %v2148
      %v2217 = vunpack.c.h.b16 %v2148
      %v2218 = vunpack.c.l.b16 %v2149
      %v2219 = vunpack.c.h.b16 %v2149
      %v2220 = vunpack.c.l.b16 %v2150
      %v2221 = vunpack.c.h.b16 %v2150
      %v2222 = vunpack.c.l.b16 %v2151
      %v2223 = vunpack.c.h.b16 %v2151
      %v2224 = vunpack.c.l.b16 %v2152
      %v2225 = vunpack.c.h.b16 %v2152
      %v2226 = vunpack.c.l.b16 %v2153
      %v2227 = vunpack.c.h.b16 %v2153
      %v2228 = vunpack.c.l.b16 %v2154
      %v2229 = vunpack.c.h.b16 %v2154
      %v2230 = vunpack.c.l.b16 %v2155
      %v2231 = vunpack.c.h.b16 %v2155
      %v2232 = vunpack.c.l.b16 %v2156
      %v2233 = vunpack.c.h.b16 %v2156
      %v2234 = vunpack.c.l.b16 %v2157
      %v2235 = vunpack.c.h.b16 %v2157
      %v2236 = vunpack.c.l.b16 %v2158
      %v2237 = vunpack.c.h.b16 %v2158
      %v2238 = vunpack.c.l.b16 %v2159
      %v2239 = vunpack.c.h.b16 %v2159
      %v2240 = vunpack.c.l.b16 %v2160
      %v2241 = vunpack.c.h.b16 %v2160
      %v2242 = vunpack.c.l.b16 %v2161
      %v2243 = vunpack.c.h.b16 %v2161
      %v2244 = vunpack.c.l.b16 %v2162
      %v2245 = vunpack.c.h.b16 %v2162
      %v2246 = vunpack.c.l.b16 %v2163
      %v2247 = vunpack.c.h.b16 %v2163
      %v2248 = vunpack.c.l.b16 %v2164
      %v2249 = vunpack.c.h.b16 %v2164
      %v2250 = vunpack.c.l.b16 %v2165
      %v2251 = vunpack.c.h.b16 %v2165
      %v2252 = vunpack.c.l.b16 %v2166
      %v2253 = vunpack.c.h.b16 %v2166
      %v2254 = vunpack.c.l.b16 %v2167
      %v2255 = vunpack.c.h.b16 %v2167
      %v2256 = vunpack.c.l.b16 %v2168
      %v2257 = vunpack.c.h.b16 %v2168
      %v2258 = vunpack.c.l.b16 %v2169
      %v2259 = vunpack.c.h.b16 %v2169
      %v2260 = vunpack.c.l.b16 %v2170
      %v2261 = vunpack.c.h.b16 %v2170
      %v2262 = vunpack.c.l.b16 %v2171
      %v2263 = vunpack.c.h.b16 %v2171
      %v2264 = vunpack.c.l.b16 %v2172
      %v2265 = vunpack.c.h.b16 %v2172
      %v2266 = vunpack.c.l.b16 %v2173
      %v2267 = vunpack.c.h.b16 %v2173
      %v2268 = vunpack.c.l.b16 %v2174
      %v2269 = vunpack.c.h.b16 %v2174
      %v2270 = vunpack.c.l.b16 %v2175
      %v2271 = vunpack.c.h.b16 %v2175
      %v2272 = vpack.c.b16 %v2212, %v2208
      %v2273 = vpack.c.b16 %v2213, %v2209
      %v2274 = vpack.c.b16 %v2214, %v2210
      %v2275 = vpack.c.b16 %v2215, %v2211
      %v2276 = vpack.c.b16 %v2220, %v2216
      %v2277 = vpack.c.b16 %v2221, %v2217
      %v2278 = vpack.c.b16 %v2222, %v2218
      %v2279 = vpack.c.b16 %v2223, %v2219
      %v2280 = vpack.c.b16 %v2228, %v2224
      %v2281 = vpack.c.b16 %v2229, %v2225
      %v2282 = vpack.c.b16 %v2230, %v2226
      %v2283 = vpack.c.b16 %v2231, %v2227
      %v2284 = vpack.c.b16 %v2236, %v2232
      %v2285 = vpack.c.b16 %v2237, %v2233
      %v2286 = vpack.c.b16 %v2238, %v2234
      %v2287 = vpack.c.b16 %v2239, %v2235
      %v2288 = vpack.c.b16 %v2244, %v2240
      %v2289 = vpack.c.b16 %v2245, %v2241
      %v2290 = vpack.c.b16 %v2246, %v2242
      %v2291 = vpack.c.b16 %v2247, %v2243
      %v2292 = vpack.c.b16 %v2252, %v2248
      %v2293 = vpack.c.b16 %v2253, %v2249
      %v2294 = vpack.c.b16 %v2254, %v2250
      %v2295 = vpack.c.b16 %v2255, %v2251
      %v2296 = vpack.c.b16 %v2260, %v2256
      %v2297 = vpack.c.b16 %v2261, %v2257
      %v2298 = vpack.c.b16 %v2262, %v2258
      %v2299 = vpack.c.b16 %v2263, %v2259
      %v2300 = vpack.c.b16 %v2268, %v2264
      %v2301 = vpack.c.b16 %v2269, %v2265
      %v2302 = vpack.c.b16 %v2270, %v2266
      %v2303 = vpack.c.b16 %v2271, %v2267
      %2336 = vmatprep.subr.bf16.mxu0 %v2273
      %2337 = vmatpush1.bf16.msra.mxu0 %v2272
      %2338 = vmatprep.subr.bf16.mxu0 %v2277
      %2339 = vmatpush1.bf16.msra.mxu0 %v2276
      %2340 = vmatprep.subr.bf16.mxu0 %v2281
      %2341 = vmatpush1.bf16.msra.mxu0 %v2280
      %2342 = vmatprep.subr.bf16.mxu0 %v2285
      %2343 = vmatpush1.bf16.msra.mxu0 %v2284
      %2344 = vmatprep.subr.bf16.mxu0 %v2289
      %2345 = vmatpush1.bf16.msra.mxu0 %v2288
      %2346 = vmatprep.subr.bf16.mxu0 %v2293
      %2347 = vmatpush1.bf16.msra.mxu0 %v2292
      %2348 = vmatprep.subr.bf16.mxu0 %v2297
      %2349 = vmatpush1.bf16.msra.mxu0 %v2296
      %2350 = vmatprep.subr.bf16.mxu0 %v2301
      %2351 = vmatpush1.bf16.msra.mxu0 %v2300
      %2352 = vmatprep.subr.bf16.mxu0 0
      %2353 = vmatpush1.bf16.msra.mxu0 0
      %2354 = vmatprep.subr.bf16.mxu0 0
      %2355 = vmatpush1.bf16.msra.mxu0 0
      %2356 = vmatprep.subr.bf16.mxu0 0
      %2357 = vmatpush1.bf16.msra.mxu0 0
      %2358 = vmatprep.subr.bf16.mxu0 0
      %2359 = vmatpush1.bf16.msra.mxu0 0
      %2360 = vmatprep.subr.bf16.mxu0 0
      %2361 = vmatpush1.bf16.msra.mxu0 0
      %2362 = vmatprep.subr.bf16.mxu0 0
      %2363 = vmatpush1.bf16.msra.mxu0 0
      %2364 = vmatprep.subr.bf16.mxu0 0
      %2365 = vmatpush1.bf16.msra.mxu0 0
      %2366 = vmatprep.subr.bf16.mxu0 0
      %2367 = vmatpush1.bf16.msra.mxu0 0
      %2368 = vmatprep.mubr.bf16.mxu0 0
      %2369 = vmatmul.mubr.bf16.gmra.mrb[0].mxu0 %v2143
      %v2370 = vpop.f32.mrb[0].mxu0
      %v2371 = vadd.f32 0.0, %v2370
      %v2372 = vpop.f32.mrb[0].mxu0
      %v2373 = vadd.f32 0.0, %v2372
      %v2374 = vpop.f32.mrb[0].mxu0
      %v2375 = vpop.f32.mrb[0].mxu0
      %2376 = vdwg.mxu0
      %2377 = vmatprep.subr.bf16.mxu0 %v2275
      %2378 = vmatpush1.bf16.msra.mxu0 %v2274
      %2379 = vmatprep.subr.bf16.mxu0 %v2279
      %2380 = vmatpush1.bf16.msra.mxu0 %v2278
      %2381 = vmatprep.subr.bf16.mxu0 %v2283
      %2382 = vmatpush1.bf16.msra.mxu0 %v2282
      %2383 = vmatprep.subr.bf16.mxu0 %v2287
      %2384 = vmatpush1.bf16.msra.mxu0 %v2286
      %2385 = vmatprep.subr.bf16.mxu0 %v2291
      %2386 = vmatpush1.bf16.msra.mxu0 %v2290
      %2387 = vmatprep.subr.bf16.mxu0 %v2295
      %2388 = vmatpush1.bf16.msra.mxu0 %v2294
      %2389 = vmatprep.subr.bf16.mxu0 %v2299
      %2390 = vmatpush1.bf16.msra.mxu0 %v2298
      %2391 = vmatprep.subr.bf16.mxu0 %v2303
      %2392 = vmatpush1.bf16.msra.mxu0 %v2302
      %2393 = vmatprep.subr.bf16.mxu0 0
      %2394 = vmatpush1.bf16.msra.mxu0 0
      %2395 = vmatprep.subr.bf16.mxu0 0
      %2396 = vmatpush1.bf16.msra.mxu0 0
      %2397 = vmatprep.subr.bf16.mxu0 0
      %2398 = vmatpush1.bf16.msra.mxu0 0
      %2399 = vmatprep.subr.bf16.mxu0 0
      %2400 = vmatpush1.bf16.msra.mxu0 0
      %2401 = vmatprep.subr.bf16.mxu0 0
      %2402 = vmatpush1.bf16.msra.mxu0 0
      %2403 = vmatprep.subr.bf16.mxu0 0
      %2404 = vmatpush1.bf16.msra.mxu0 0
      %2405 = vmatprep.subr.bf16.mxu0 0
      %2406 = vmatpush1.bf16.msra.mxu0 0
      %2407 = vmatprep.subr.bf16.mxu0 0
      %2408 = vmatpush1.bf16.msra.mxu0 0
      %2409 = vmatprep.mubr.bf16.mxu0 0
      %2410 = vmatmul.mubr.bf16.gmra.mrb[0].mxu0 %v2143
      %v2411 = vpop.f32.mrb[0].mxu0
      %v2412 = vadd.f32 0.0, %v2411
      %v2413 = vpop.f32.mrb[0].mxu0
      %v2414 = vadd.f32 0.0, %v2413
      %v2415 = vpop.f32.mrb[0].mxu0
      %v2416 = vpop.f32.mrb[0].mxu0
      %2417 = vdwg.mxu0
      %v2422 = vcombine.low %v2371, %v2373
      %v2423 = vcombine.low %v2412, %v2414
      %v2425 = vunpack.c.l.s4 1983009808
      %v2426 = vunpack.c.0.s8 %v2425
      %v2427 = vlaneseq
      %v2428 = vshrl.u32 %v2427, 7
      %v2429 = vsub.s32 %v2426, %v2428
      %v2430 = vrot.slane %v2422, %v2429
      %v2432 = vunpack.c.l.s4 1983009808
      %v2433 = vunpack.c.0.s8 %v2432
      %v2434 = vlaneseq
      %v2435 = vshrl.u32 %v2434, 7
      %v2436 = vsub.s32 %v2433, %v2435
      %v2437 = vrot.slane %v2423, %v2436
      %v2438 = vcombine.low %v2430, %v2437
      %v2440 = vadd.f32 %v2142, %v2438
      %v2441 = vxor.u32 %v2440, 2147483648
      %v2442 = vmul.f32 %v2441, 1.442695
      %v2443 = vpow.pop %v2442
      %v2444 = vadd.f32 %v2443, 1.0
      %v2445 = vrcp.pop %v2444
      %v2446 = vmul.f32 1.0, %v2445
      %v2448 = vrot.slane %v2440, 2
      %v2450 = vxor.u32 %v2448, 2147483648
      %v2451 = vmul.f32 %v2450, 1.442695
      %v2452 = vpow.pop %v2451
      %v2453 = vadd.f32 %v2452, 1.0
      %v2454 = vrcp.pop %v2453
      %v2455 = vmul.f32 1.0, %v2454
      %v2456 = vrot.slane %v2440, 4
      %v2458 = vtanh.pop %v2456
      %v2459 = vrot.slane %v2440, 6
      %v2461 = vxor.u32 %v2459, 2147483648
      %v2462 = vmul.f32 %v2461, 1.442695
      %v2463 = vpow.pop %v2462
      %v2464 = vadd.f32 %v2463, 1.0
      %v2465 = vrcp.pop %v2464
      %v2466 = vmul.f32 1.0, %v2465
      %v2467 = vmul.f32 %v2455, %v2138
      %v2468 = vmul.f32 %v2446, %v2458
      %v2469 = vadd.f32 %v2467, %v2468
      %v2470 = vtanh.pop %v2469
      %v2471 = vmul.f32 %v2466, %v2470
      %2472 = vst [vmem:[%s145 + $0xc] sm:$0x3] %v2471
      %v2473 = vld [vmem:[%s139 + $0x38] sm:$0xff]
      %v2474 = vpack.c.bf16 %v2471, %v2471
      %v2475 = vld [vmem:[%s1] sm:$0xff]
      %v2476 = vld [vmem:[%s1 + $0x8] sm:$0xff]
      %v2477 = vld [vmem:[%s1 + $0x10] sm:$0xff]
      %v2478 = vld [vmem:[%s1 + $0x18] sm:$0xff]
      %v2479 = vld [vmem:[%s1 + $0x20] sm:$0xff]
      %v2480 = vld [vmem:[%s1 + $0x28] sm:$0xff]
      %v2481 = vld [vmem:[%s1 + $0x30] sm:$0xff]
      %v2482 = vld [vmem:[%s1 + $0x38] sm:$0xff]
      %v2483 = vld [vmem:[%s1 + $0x40] sm:$0xff]
      %v2484 = vld [vmem:[%s1 + $0x48] sm:$0xff]
      %v2485 = vld [vmem:[%s1 + $0x50] sm:$0xff]
      %v2486 = vld [vmem:[%s1 + $0x58] sm:$0xff]
      %v2487 = vld [vmem:[%s1 + $0x60] sm:$0xff]
      %v2488 = vld [vmem:[%s1 + $0x68] sm:$0xff]
      %v2489 = vld [vmem:[%s1 + $0x70] sm:$0xff]
      %v2490 = vld [vmem:[%s1 + $0x78] sm:$0xff]
      %v2491 = vld [vmem:[%s1 + $0x80] sm:$0xff]
      %v2492 = vld [vmem:[%s1 + $0x88] sm:$0xff]
      %v2493 = vld [vmem:[%s1 + $0x90] sm:$0xff]
      %v2494 = vld [vmem:[%s1 + $0x98] sm:$0xff]
      %v2495 = vld [vmem:[%s1 + $0xa0] sm:$0xff]
      %v2496 = vld [vmem:[%s1 + $0xa8] sm:$0xff]
      %v2497 = vld [vmem:[%s1 + $0xb0] sm:$0xff]
      %v2498 = vld [vmem:[%s1 + $0xb8] sm:$0xff]
      %v2499 = vld [vmem:[%s1 + $0xc0] sm:$0xff]
      %v2500 = vld [vmem:[%s1 + $0xc8] sm:$0xff]
      %v2501 = vld [vmem:[%s1 + $0xd0] sm:$0xff]
      %v2502 = vld [vmem:[%s1 + $0xd8] sm:$0xff]
      %v2503 = vld [vmem:[%s1 + $0xe0] sm:$0xff]
      %v2504 = vld [vmem:[%s1 + $0xe8] sm:$0xff]
      %v2505 = vld [vmem:[%s1 + $0xf0] sm:$0xff]
      %v2506 = vld [vmem:[%s1 + $0xf8] sm:$0xff]
      %v2539 = vunpack.c.l.b16 %v2475
      %v2540 = vunpack.c.h.b16 %v2475
      %v2541 = vunpack.c.l.b16 %v2476
      %v2542 = vunpack.c.h.b16 %v2476
      %v2543 = vunpack.c.l.b16 %v2477
      %v2544 = vunpack.c.h.b16 %v2477
      %v2545 = vunpack.c.l.b16 %v2478
      %v2546 = vunpack.c.h.b16 %v2478
      %v2547 = vunpack.c.l.b16 %v2479
      %v2548 = vunpack.c.h.b16 %v2479
      %v2549 = vunpack.c.l.b16 %v2480
      %v2550 = vunpack.c.h.b16 %v2480
      %v2551 = vunpack.c.l.b16 %v2481
      %v2552 = vunpack.c.h.b16 %v2481
      %v2553 = vunpack.c.l.b16 %v2482
      %v2554 = vunpack.c.h.b16 %v2482
      %v2555 = vunpack.c.l.b16 %v2483
      %v2556 = vunpack.c.h.b16 %v2483
      %v2557 = vunpack.c.l.b16 %v2484
      %v2558 = vunpack.c.h.b16 %v2484
      %v2559 = vunpack.c.l.b16 %v2485
      %v2560 = vunpack.c.h.b16 %v2485
      %v2561 = vunpack.c.l.b16 %v2486
      %v2562 = vunpack.c.h.b16 %v2486
      %v2563 = vunpack.c.l.b16 %v2487
      %v2564 = vunpack.c.h.b16 %v2487
      %v2565 = vunpack.c.l.b16 %v2488
      %v2566 = vunpack.c.h.b16 %v2488
      %v2567 = vunpack.c.l.b16 %v2489
      %v2568 = vunpack.c.h.b16 %v2489
      %v2569 = vunpack.c.l.b16 %v2490
      %v2570 = vunpack.c.h.b16 %v2490
      %v2571 = vunpack.c.l.b16 %v2491
      %v2572 = vunpack.c.h.b16 %v2491
      %v2573 = vunpack.c.l.b16 %v2492
      %v2574 = vunpack.c.h.b16 %v2492
      %v2575 = vunpack.c.l.b16 %v2493
      %v2576 = vunpack.c.h.b16 %v2493
      %v2577 = vunpack.c.l.b16 %v2494
      %v2578 = vunpack.c.h.b16 %v2494
      %v2579 = vunpack.c.l.b16 %v2495
      %v2580 = vunpack.c.h.b16 %v2495
      %v2581 = vunpack.c.l.b16 %v2496
      %v2582 = vunpack.c.h.b16 %v2496
      %v2583 = vunpack.c.l.b16 %v2497
      %v2584 = vunpack.c.h.b16 %v2497
      %v2585 = vunpack.c.l.b16 %v2498
      %v2586 = vunpack.c.h.b16 %v2498
      %v2587 = vunpack.c.l.b16 %v2499
      %v2588 = vunpack.c.h.b16 %v2499
      %v2589 = vunpack.c.l.b16 %v2500
      %v2590 = vunpack.c.h.b16 %v2500
      %v2591 = vunpack.c.l.b16 %v2501
      %v2592 = vunpack.c.h.b16 %v2501
      %v2593 = vunpack.c.l.b16 %v2502
      %v2594 = vunpack.c.h.b16 %v2502
      %v2595 = vunpack.c.l.b16 %v2503
      %v2596 = vunpack.c.h.b16 %v2503
      %v2597 = vunpack.c.l.b16 %v2504
      %v2598 = vunpack.c.h.b16 %v2504
      %v2599 = vunpack.c.l.b16 %v2505
      %v2600 = vunpack.c.h.b16 %v2505
      %v2601 = vunpack.c.l.b16 %v2506
      %v2602 = vunpack.c.h.b16 %v2506
      %v2603 = vpack.c.b16 %v2543, %v2539
      %v2604 = vpack.c.b16 %v2544, %v2540
      %v2605 = vpack.c.b16 %v2545, %v2541
      %v2606 = vpack.c.b16 %v2546, %v2542
      %v2607 = vpack.c.b16 %v2551, %v2547
      %v2608 = vpack.c.b16 %v2552, %v2548
      %v2609 = vpack.c.b16 %v2553, %v2549
      %v2610 = vpack.c.b16 %v2554, %v2550
      %v2611 = vpack.c.b16 %v2559, %v2555
      %v2612 = vpack.c.b16 %v2560, %v2556
      %v2613 = vpack.c.b16 %v2561, %v2557
      %v2614 = vpack.c.b16 %v2562, %v2558
      %v2615 = vpack.c.b16 %v2567, %v2563
      %v2616 = vpack.c.b16 %v2568, %v2564
      %v2617 = vpack.c.b16 %v2569, %v2565
      %v2618 = vpack.c.b16 %v2570, %v2566
      %v2619 = vpack.c.b16 %v2575, %v2571
      %v2620 = vpack.c.b16 %v2576, %v2572
      %v2621 = vpack.c.b16 %v2577, %v2573
      %v2622 = vpack.c.b16 %v2578, %v2574
      %v2623 = vpack.c.b16 %v2583, %v2579
      %v2624 = vpack.c.b16 %v2584, %v2580
      %v2625 = vpack.c.b16 %v2585, %v2581
      %v2626 = vpack.c.b16 %v2586, %v2582
      %v2627 = vpack.c.b16 %v2591, %v2587
      %v2628 = vpack.c.b16 %v2592, %v2588
      %v2629 = vpack.c.b16 %v2593, %v2589
      %v2630 = vpack.c.b16 %v2594, %v2590
      %v2631 = vpack.c.b16 %v2599, %v2595
      %v2632 = vpack.c.b16 %v2600, %v2596
      %v2633 = vpack.c.b16 %v2601, %v2597
      %v2634 = vpack.c.b16 %v2602, %v2598
      %2667 = vmatprep.subr.bf16.mxu0 %v2604
      %2668 = vmatpush1.bf16.msra.mxu0 %v2603
      %2669 = vmatprep.subr.bf16.mxu0 %v2608
      %2670 = vmatpush1.bf16.msra.mxu0 %v2607
      %2671 = vmatprep.subr.bf16.mxu0 %v2612
      %2672 = vmatpush1.bf16.msra.mxu0 %v2611
      %2673 = vmatprep.subr.bf16.mxu0 %v2616
      %2674 = vmatpush1.bf16.msra.mxu0 %v2615
      %2675 = vmatprep.subr.bf16.mxu0 %v2620
      %2676 = vmatpush1.bf16.msra.mxu0 %v2619
      %2677 = vmatprep.subr.bf16.mxu0 %v2624
      %2678 = vmatpush1.bf16.msra.mxu0 %v2623
      %2679 = vmatprep.subr.bf16.mxu0 %v2628
      %2680 = vmatpush1.bf16.msra.mxu0 %v2627
      %2681 = vmatprep.subr.bf16.mxu0 %v2632
      %2682 = vmatpush1.bf16.msra.mxu0 %v2631
      %2683 = vmatprep.subr.bf16.mxu0 0
      %2684 = vmatpush1.bf16.msra.mxu0 0
      %2685 = vmatprep.subr.bf16.mxu0 0
      %2686 = vmatpush1.bf16.msra.mxu0 0
      %2687 = vmatprep.subr.bf16.mxu0 0
      %2688 = vmatpush1.bf16.msra.mxu0 0
      %2689 = vmatprep.subr.bf16.mxu0 0
      %2690 = vmatpush1.bf16.msra.mxu0 0
      %2691 = vmatprep.subr.bf16.mxu0 0
      %2692 = vmatpush1.bf16.msra.mxu0 0
      %2693 = vmatprep.subr.bf16.mxu0 0
      %2694 = vmatpush1.bf16.msra.mxu0 0
      %2695 = vmatprep.subr.bf16.mxu0 0
      %2696 = vmatpush1.bf16.msra.mxu0 0
      %2697 = vmatprep.subr.bf16.mxu0 0
      %2698 = vmatpush1.bf16.msra.mxu0 0
      %2699 = vmatprep.mubr.bf16.mxu0 0
      %2700 = vmatmul.mubr.bf16.gmra.mrb[0].mxu0 %v2474
      %v2701 = vpop.f32.mrb[0].mxu0
      %v2702 = vadd.f32 0.0, %v2701
      %v2703 = vpop.f32.mrb[0].mxu0
      %v2704 = vadd.f32 0.0, %v2703
      %v2705 = vpop.f32.mrb[0].mxu0
      %v2706 = vpop.f32.mrb[0].mxu0
      %2707 = vdwg.mxu0
      %2708 = vmatprep.subr.bf16.mxu0 %v2606
      %2709 = vmatpush1.bf16.msra.mxu0 %v2605
      %2710 = vmatprep.subr.bf16.mxu0 %v2610
      %2711 = vmatpush1.bf16.msra.mxu0 %v2609
      %2712 = vmatprep.subr.bf16.mxu0 %v2614
      %2713 = vmatpush1.bf16.msra.mxu0 %v2613
      %2714 = vmatprep.subr.bf16.mxu0 %v2618
      %2715 = vmatpush1.bf16.msra.mxu0 %v2617
      %2716 = vmatprep.subr.bf16.mxu0 %v2622
      %2717 = vmatpush1.bf16.msra.mxu0 %v2621
      %2718 = vmatprep.subr.bf16.mxu0 %v2626
      %2719 = vmatpush1.bf16.msra.mxu0 %v2625
      %2720 = vmatprep.subr.bf16.mxu0 %v2630
      %2721 = vmatpush1.bf16.msra.mxu0 %v2629
      %2722 = vmatprep.subr.bf16.mxu0 %v2634
      %2723 = vmatpush1.bf16.msra.mxu0 %v2633
      %2724 = vmatprep.subr.bf16.mxu0 0
      %2725 = vmatpush1.bf16.msra.mxu0 0
      %2726 = vmatprep.subr.bf16.mxu0 0
      %2727 = vmatpush1.bf16.msra.mxu0 0
      %2728 = vmatprep.subr.bf16.mxu0 0
      %2729 = vmatpush1.bf16.msra.mxu0 0
      %2730 = vmatprep.subr.bf16.mxu0 0
      %2731 = vmatpush1.bf16.msra.mxu0 0
      %2732 = vmatprep.subr.bf16.mxu0 0
      %2733 = vmatpush1.bf16.msra.mxu0 0
      %2734 = vmatprep.subr.bf16.mxu0 0
      %2735 = vmatpush1.bf16.msra.mxu0 0
      %2736 = vmatprep.subr.bf16.mxu0 0
      %2737 = vmatpush1.bf16.msra.mxu0 0
      %2738 = vmatprep.subr.bf16.mxu0 0
      %2739 = vmatpush1.bf16.msra.mxu0 0
      %2740 = vmatprep.mubr.bf16.mxu0 0
      %2741 = vmatmul.mubr.bf16.gmra.mrb[0].mxu0 %v2474
      %v2742 = vpop.f32.mrb[0].mxu0
      %v2743 = vadd.f32 0.0, %v2742
      %v2744 = vpop.f32.mrb[0].mxu0
      %v2745 = vadd.f32 0.0, %v2744
      %v2746 = vpop.f32.mrb[0].mxu0
      %v2747 = vpop.f32.mrb[0].mxu0
      %2748 = vdwg.mxu0
      %v2753 = vcombine.low %v2702, %v2704
      %v2754 = vcombine.low %v2743, %v2745
      %v2756 = vunpack.c.l.s4 1983009808
      %v2757 = vunpack.c.0.s8 %v2756
      %v2758 = vlaneseq
      %v2759 = vshrl.u32 %v2758, 7
      %v2760 = vsub.s32 %v2757, %v2759
      %v2761 = vrot.slane %v2753, %v2760
      %v2763 = vunpack.c.l.s4 1983009808
      %v2764 = vunpack.c.0.s8 %v2763
      %v2765 = vlaneseq
      %v2766 = vshrl.u32 %v2765, 7
      %v2767 = vsub.s32 %v2764, %v2766
      %v2768 = vrot.slane %v2754, %v2767
      %v2769 = vcombine.low %v2761, %v2768
      %v2771 = vadd.f32 %v2473, %v2769
      %v2772 = vxor.u32 %v2771, 2147483648
      %v2773 = vmul.f32 %v2772, 1.442695
      %v2774 = vpow.pop %v2773
      %v2775 = vadd.f32 %v2774, 1.0
      %v2776 = vrcp.pop %v2775
      %v2777 = vmul.f32 1.0, %v2776
      %v2779 = vrot.slane %v2771, 2
      %v2781 = vxor.u32 %v2779, 2147483648
      %v2782 = vmul.f32 %v2781, 1.442695
      %v2783 = vpow.pop %v2782
      %v2784 = vadd.f32 %v2783, 1.0
      %v2785 = vrcp.pop %v2784
      %v2786 = vmul.f32 1.0, %v2785
      %v2787 = vrot.slane %v2771, 4
      %v2789 = vtanh.pop %v2787
      %v2790 = vrot.slane %v2771, 6
      %v2792 = vxor.u32 %v2790, 2147483648
      %v2793 = vmul.f32 %v2792, 1.442695
      %v2794 = vpow.pop %v2793
      %v2795 = vadd.f32 %v2794, 1.0
      %v2796 = vrcp.pop %v2795
      %v2797 = vmul.f32 1.0, %v2796
      %v2798 = vmul.f32 %v2786, %v2469
      %v2799 = vmul.f32 %v2777, %v2789
      %v2800 = vadd.f32 %v2798, %v2799
      %v2801 = vtanh.pop %v2800
      %v2802 = vmul.f32 %v2797, %v2801
      %2803 = vst [vmem:[%s145 + $0xe] sm:$0x3] %v2802
      %2804 = vst [vmem:[#allocation2] sm:$0x3] %v2802
      %2805 = vst [vmem:[#allocation3] sm:$0x3] %v2800
      %s2806 = smul.u32 8, %s13
      %p2807 = scmp.lt.s32.totalorder %s2806, 15
      %s2808 = scalar_select %p2807, %s2806, 15
      %s2809 = smul.addr %s2808, 2
      %s2810 = scalar_lea.vmem %s2, %s2809
      // Predicated region
      $region33: #{lstm_network_forward.6} parent=27 // pred_check
        %p2811 = pneg %p78
      $region34: #{lstm_network_forward.6} parent=27 // pred_check_branch
        %2813 = sbr.rel (%p2811) target = $region36
      $region35: #{lstm_network_forward.6} parent=27 // pred_region
        %s2814 = smul.u32 8, %s13
      $region36: #{lstm_network_forward.6} parent=27 // pred_fallthru
        _
    $region28: #{lstm_network_forward.6} parent=5 // pred_fallthru
      _
    %p2815 = scmp.le.s32.totalorder 2, %s8
    // Predicated region
    $region37: #{lstm_network_forward.6} parent=5 // pred_check
      %p2816 = pneg %p2815
    $region38: #{lstm_network_forward.6} parent=5 // pred_check_branch
      %2818 = sbr.rel (%p2816) target = $region40
    $region39: #{lstm_network_forward.6} parent=5 // pred_region
      %s2819 = ssub.s32 %s8, 2
      // Predicated region
      $region41: #{lstm_network_forward.6} parent=39 // pred_check
        %p2820 = pneg %p84
      $region42: #{lstm_network_forward.6} parent=39 // pred_check_branch
        %2822 = sbr.rel (%p2820) target = $region44
      $region43: #{lstm_network_forward.6} parent=39 // pred_region
        %s2823 = smul.u32 8, %s14
        %p2824 = scmp.lt.s32.totalorder %s2823, 15
        %s2825 = scalar_select %p2824, %s2823, 15
        %s2826 = smul.addr %s2825, 2
        %s2827 = scalar_lea.vmem %s2, %s2826
      $region44: #{lstm_network_forward.6} parent=39 // pred_fallthru
        _
    $region40: #{lstm_network_forward.6} parent=5 // pred_fallthru
      _
  $region6: #{lstm_network_forward.6} parent=0 // loop_footer
    %s12 = sadd.s32 1, %s8
  $region7: #{lstm_network_forward.6} parent=0 // loop_footer_branch
    %7 = sbr.rel target = $region3
  $region8: #{lstm_network_forward.6} parent=0 // loop_exit
    _

</llo_original>
